<compile_context>
chip_gen: v7x
topology: tpu7x:2x2x1
jax: 0.10.0
libtpu: 0.0.40
codegen_flags: <defaults>
</compile_context>

<pallas_src>
import jax
import jax.numpy as jnp
from jax.experimental import pallas as pl
from jax.experimental.pallas import tpu as pltpu

# ---------------------------------------------------------------- config ----
BATCH = 2
CHANNELS = 4           # FLAIR aerial channels (kept small)
IMG_SIZE = 500         # hard requirement of the module's main forward path
PATCH = 20             # 500 / 20 = 25 -> 625 patches per image
EMBED_DIM = 32
NUM_CLASSES = 8
K_PATCH = PATCH * PATCH * CHANNELS  # 1600


def _round_up(x, m):
    return ((x + m - 1) // m) * m


# ------------------------------------------------------------ Pallas kernel --
def _fused_forward_kernel(x_ref, wf_ref, bf_ref, wm_ref, bm_ref, o_ref):
    """One (tm, NUM_CLASSES) output tile of  mlp(gelu(x @ W_fused + b_fused))."""
    # bf16 x bf16 MXU matmul, f32 accumulation (embed + encoder Linear folded).
    h = jnp.dot(x_ref[...], wf_ref[...], preferred_element_type=jnp.float32)
    h = h + bf_ref[...]                       # f32 bias
    h = jax.nn.gelu(h, approximate=True)      # f32 elementwise (v5e-safe)
    # Classification head: tiny (tm, D) @ (D, NUM_CLASSES) in f32.
    y = jnp.dot(h, wm_ref[...], preferred_element_type=jnp.float32) + bm_ref[...]
    o_ref[...] = y.astype(o_ref.dtype)


def fused_patch_forward(patches, w_fused, b_fused, w_mlp, b_mlp, tm=320):
    """mlp(gelu(patches @ W_fused + b_fused)) for all patch tokens.

    patches: (M, K_PATCH) bf16 row-major; returns (M, NUM_CLASSES) f32.
    Ragged last M block handled by Pallas (rows >= M never written back;
    all ops are row-independent so pad rows cannot contaminate valid rows).
    """
    M, K = patches.shape
    D = w_fused.shape[1]
    C = w_mlp.shape[1]
    tm = min(tm, _round_up(M, 8))          # block sublane dim must be /8
    grid = (pl.cdiv(M, tm),)

    return pl.pallas_call(
        _fused_forward_kernel,
        out_shape=jax.ShapeDtypeStruct((M, C), jnp.float32),
        grid=grid,
        in_specs=[
            pl.BlockSpec((tm, K), lambda i: (i, 0)),     # bf16 patch rows (streamed)
            pl.BlockSpec((K, D), lambda i: (0, 0)),      # W_fused (resident, bf16)
            pl.BlockSpec((1, D), lambda i: (0, 0)),      # b_fused (f32)
            pl.BlockSpec((D, C), lambda i: (0, 0)),      # w_mlp   (f32)
            pl.BlockSpec((1, C), lambda i: (0, 0)),      # b_mlp   (f32)
        ],
        out_specs=pl.BlockSpec((tm, C), lambda i: (i, 0)),
        compiler_params=pltpu.CompilerParams(
            dimension_semantics=("parallel",)),
    )(patches, w_fused, b_fused, w_mlp, b_mlp)


# ---------------------------------------------------------- synthetic model --
def init_params(key):
    k0, k1, k2, k3 = jax.random.split(key, 4)
    s_embed = 1.0 / jnp.sqrt(jnp.float32(K_PATCH))
    s_d = 1.0 / jnp.sqrt(jnp.float32(EMBED_DIM))
    return {
        "w_embed": jax.random.normal(k0, (K_PATCH, EMBED_DIM), jnp.float32) * s_embed,
        "b_embed": jnp.zeros((EMBED_DIM,), jnp.float32),
        "cls_token": jax.random.normal(k1, (EMBED_DIM,), jnp.float32) * 0.02,
        "w_enc": jax.random.normal(k2, (EMBED_DIM, EMBED_DIM), jnp.float32) * s_d,
        "b_enc": jnp.zeros((EMBED_DIM,), jnp.float32),
        "w_mlp": jax.random.normal(k3, (EMBED_DIM, NUM_CLASSES), jnp.float32) * s_d,
        "b_mlp": jnp.zeros((NUM_CLASSES,), jnp.float32),
    }


def _patchify(img):
    # img: (B, C, H, W) NCHW -> (B * num_patches, C * P * P)
    B, C, H, W = img.shape
    gh, gw = H // PATCH, W // PATCH
    x = img.reshape(B, C, gh, PATCH, gw, PATCH)
    x = x.transpose(0, 2, 4, 1, 3, 5)              # (B, gh, gw, C, P, P)
    return x.reshape(B * gh * gw, C * PATCH * PATCH), gh * gw


def mono_modal_flair_forward(x, params):
    """Mirrors MonoModalFLAIR.forward for the main (H == 500) path."""
    img = x["aerial-flair"]
    if img.shape[2] != 500:
        # TODO(synk): forward_test overlapping-crop path not implemented (see header).
        raise NotImplementedError("forward_test path requires a dense segmentation mlp")
    B = img.shape[0]

    # --- fold patch embedding + encoder Linear (exact: no nonlinearity between) --
    w_fused = jnp.dot(params["w_embed"], params["w_enc"]).astype(jnp.bfloat16)
    b_fused = (params["b_embed"] @ params["w_enc"] + params["b_enc"]).reshape(1, EMBED_DIM)
    w_mlp = params["w_mlp"]
    b_mlp = params["b_mlp"].reshape(1, NUM_CLASSES)

    # --- patchify in bf16: XLA fuses convert+transpose into one HBM pass and
    #     the kernel's streamed read is halved.
    patches, n_patches = _patchify(img.astype(jnp.bfloat16))     # (B*N, 1600) bf16
    patch_logits = fused_patch_forward(patches, w_fused, b_fused, w_mlp, b_mlp)
    patch_logits = patch_logits.reshape(B, n_patches, NUM_CLASSES)

    # --- class token (1 x D, identical across the batch): plain JAX f32 -------
    h_cls = jax.nn.gelu(params["cls_token"] @ params["w_enc"] + params["b_enc"],
                        approximate=True)
    y_cls = h_cls @ params["w_mlp"] + params["b_mlp"]            # (NUM_CLASSES,)
    cls_logits = jnp.broadcast_to(y_cls[None, None, :], (B, 1, NUM_CLASSES))

    # omni=False -> keep all tokens; no 'dataset' key -> plain mlp(out)
    return jnp.concatenate([cls_logits, patch_logits], axis=1)   # (B, N+1, C)


# ------------------------------------------------------------- references ---
def ref_forward(x, params):
    """Pure-f32 JAX reference of the module semantics (no Pallas, no bf16)."""
    img = x["aerial-flair"]
    B = img.shape[0]
    patches, n_patches = _patchify(img)
    tok = patches @ params["w_embed"] + params["b_embed"]
    tok = tok.reshape(B, n_patches, EMBED_DIM)
    cls = jnp.broadcast_to(params["cls_token"][None, None, :], (B, 1, EMBED_DIM))
    tok = jnp.concatenate([cls, tok], axis=1)
    tok = jax.nn.gelu(tok @ params["w_enc"] + params["b_enc"], approximate=True)
    return tok @ params["w_mlp"] + params["b_mlp"]


def ref_forward_matched(x, params):
    """Same math as the Pallas path (bf16 operands, f32 accumulation)."""
    img = x["aerial-flair"]
    B = img.shape[0]
    patches, n_patches = _patchify(img.astype(jnp.bfloat16))
    w_fused = jnp.dot(params["w_embed"], params["w_enc"]).astype(jnp.bfloat16)
    b_fused = params["b_embed"] @ params["w_enc"] + params["b_enc"]
    h = jnp.dot(patches, w_fused, preferred_element_type=jnp.float32) + b_fused
    h = jax.nn.gelu(h, approximate=True)
    y = (h @ params["w_mlp"] + params["b_mlp"]).reshape(B, n_patches, NUM_CLASSES)
    h_cls = jax.nn.gelu(params["cls_token"] @ params["w_enc"] + params["b_enc"],
                        approximate=True)
    y_cls = h_cls @ params["w_mlp"] + params["b_mlp"]
    cls = jnp.broadcast_to(y_cls[None, None, :], (B, 1, NUM_CLASSES))
    return jnp.concatenate([cls, y], axis=1)


if __name__ == "__main__":
    key = jax.random.PRNGKey(0)
    k_img, k_par = jax.random.split(key)
    img = jax.random.normal(k_img, (BATCH, CHANNELS, IMG_SIZE, IMG_SIZE), jnp.float32)
    params = init_params(k_par)

    fwd = jax.jit(lambda im, p: mono_modal_flair_forward({"aerial-flair": im}, p))
    out = jax.block_until_ready(fwd(img, params))

    ref_m = jax.block_until_ready(ref_forward_matched({"aerial-flair": img}, params))
    ref32 = jax.block_until_ready(ref_forward({"aerial-flair": img}, params))

    assert out.shape == (BATCH, (IMG_SIZE // PATCH) ** 2 + 1, NUM_CLASSES)
    # Tight check against the matched-precision (bf16-operand) reference.
    assert jnp.allclose(out, ref_m, rtol=5e-3, atol=5e-3), \
        "Pallas output mismatch vs matched-precision reference"
    # Looser semantic check against the full-f32 module reference (bf16 stream).
    assert jnp.allclose(out, ref32, rtol=5e-2, atol=5e-2), \
        "Pallas output mismatch vs f32 module reference"
    print("KERNEL_OK")
</pallas_src>

<mosaic_0001>
module attributes {stable_mosaic.version = 11 : i64} {
  func.func @_fused_forward_kernel(%arg0: i32, %arg1: memref<320x1600xbf16, #tpu.memory_space<vmem>>, %arg2: memref<1600x32xbf16, #tpu.memory_space<vmem>>, %arg3: memref<1x32xf32, #tpu.memory_space<vmem>>, %arg4: memref<32x8xf32, #tpu.memory_space<vmem>>, %arg5: memref<1x8xf32, #tpu.memory_space<vmem>>, %arg6: memref<320x8xf32, #tpu.memory_space<vmem>>) attributes {dimension_semantics = [#tpu.dimension_semantics<parallel>], iteration_bounds = array<i64: 4>, scalar_prefetch = 0 : i64, scratch_operands = 0 : i64, tpu.core_type = #tpu.core_type<tc>, window_params = [{transform_indices = @transform_0, window_bounds = array<i64: 320, 1600>}, {pipeline_mode = #tpu.pipeline_mode<synchronous>, transform_indices = @transform_1, window_bounds = array<i64: 1600, 32>}, {pipeline_mode = #tpu.pipeline_mode<synchronous>, transform_indices = @transform_2, window_bounds = array<i64: 1, 32>}, {pipeline_mode = #tpu.pipeline_mode<synchronous>, transform_indices = @transform_3, window_bounds = array<i64: 32, 8>}, {pipeline_mode = #tpu.pipeline_mode<synchronous>, transform_indices = @transform_4, window_bounds = array<i64: 1, 8>}, {transform_indices = @transform_5, window_bounds = array<i64: 320, 8>}]} {
    %c0 = arith.constant 0 : index
    %c0_0 = arith.constant 0 : index
    %0 = vector.load %arg1[%c0, %c0_0] : memref<320x1600xbf16, #tpu.memory_space<vmem>>, vector<320x1600xbf16>
    %c0_1 = arith.constant 0 : index
    %c0_2 = arith.constant 0 : index
    %1 = vector.load %arg2[%c0_1, %c0_2] : memref<1600x32xbf16, #tpu.memory_space<vmem>>, vector<1600x32xbf16>
    %cst = arith.constant dense<0.000000e+00> : vector<320x32xf32>
    %2 = tpu.matmul %0, %1, %cst {dimension_numbers = #tpu.dot_dimension_numbers<[1], [0], [0], [1], [0, 0, 1, 1], [], []>} : vector<320x1600xbf16>, vector<1600x32xbf16>, vector<320x32xf32> -> vector<320x32xf32>
    %c0_3 = arith.constant 0 : index
    %c0_4 = arith.constant 0 : index
    %3 = vector.load %arg3[%c0_3, %c0_4] : memref<1x32xf32, #tpu.memory_space<vmem>>, vector<1x32xf32>
    %4 = vector.broadcast %3 : vector<1x32xf32> to vector<320x32xf32>
    %5 = arith.addf %2, %4 : vector<320x32xf32>
    %6 = arith.mulf %5, %5 : vector<320x32xf32>
    %7 = arith.mulf %5, %6 : vector<320x32xf32>
    %cst_5 = arith.constant 4.471500e-02 : f32
    %8 = vector.broadcast %cst_5 : f32 to vector<320x32xf32>
    %9 = arith.mulf %8, %7 : vector<320x32xf32>
    %10 = arith.addf %5, %9 : vector<320x32xf32>
    %cst_6 = arith.constant 0.797884583 : f32
    %11 = vector.broadcast %cst_6 : f32 to vector<320x32xf32>
    %12 = arith.mulf %11, %10 : vector<320x32xf32>
    %13 = math.tanh %12 : vector<320x32xf32>
    %cst_7 = arith.constant 1.000000e+00 : f32
    %14 = vector.broadcast %cst_7 : f32 to vector<320x32xf32>
    %15 = arith.addf %14, %13 : vector<320x32xf32>
    %cst_8 = arith.constant 5.000000e-01 : f32
    %16 = vector.broadcast %cst_8 : f32 to vector<320x32xf32>
    %17 = arith.mulf %16, %15 : vector<320x32xf32>
    %18 = arith.mulf %5, %17 : vector<320x32xf32>
    %c0_9 = arith.constant 0 : index
    %c0_10 = arith.constant 0 : index
    %19 = vector.load %arg4[%c0_9, %c0_10] : memref<32x8xf32, #tpu.memory_space<vmem>>, vector<32x8xf32>
    %cst_11 = arith.constant dense<0.000000e+00> : vector<320x8xf32>
    %20 = tpu.matmul %18, %19, %cst_11 {dimension_numbers = #tpu.dot_dimension_numbers<[1], [0], [0], [1], [0, 0, 1, 1], [], []>} : vector<320x32xf32>, vector<32x8xf32>, vector<320x8xf32> -> vector<320x8xf32>
    %c0_12 = arith.constant 0 : index
    %c0_13 = arith.constant 0 : index
    %21 = vector.load %arg5[%c0_12, %c0_13] : memref<1x8xf32, #tpu.memory_space<vmem>>, vector<1x8xf32>
    %22 = vector.broadcast %21 : vector<1x8xf32> to vector<320x8xf32>
    %23 = arith.addf %20, %22 : vector<320x8xf32>
    %c0_14 = arith.constant 0 : index
    %c0_15 = arith.constant 0 : index
    %24 = vector.load %arg6[%c0_14, %c0_15] : memref<320x8xf32, #tpu.memory_space<vmem>>, vector<320x8xf32>
    tpu.vector_store %arg6[%c0_14, %c0_15], %23 {strides = array<i32>} : memref<320x8xf32, #tpu.memory_space<vmem>>, vector<320x8xf32>,
    return
  }
  func.func @transform_0(%arg0: i32) -> (i32, i32) {
    %c0_i32 = arith.constant 0 : i32
    %c0_i32_0 = arith.constant 0 : i32
    return %arg0, %c0_i32 : i32, i32
  }
  func.func @transform_1(%arg0: i32) -> (i32, i32) {
    %c0_i32 = arith.constant 0 : i32
    %c0_i32_0 = arith.constant 0 : i32
    %c0_i32_1 = arith.constant 0 : i32
    return %c0_i32, %c0_i32_0 : i32, i32
  }
  func.func @transform_2(%arg0: i32) -> (i32, i32) {
    %c0_i32 = arith.constant 0 : i32
    %c0_i32_0 = arith.constant 0 : i32
    %c0_i32_1 = arith.constant 0 : i32
    return %c0_i32, %c0_i32_0 : i32, i32
  }
  func.func @transform_3(%arg0: i32) -> (i32, i32) {
    %c0_i32 = arith.constant 0 : i32
    %c0_i32_0 = arith.constant 0 : i32
    %c0_i32_1 = arith.constant 0 : i32
    return %c0_i32, %c0_i32_0 : i32, i32
  }
  func.func @transform_4(%arg0: i32) -> (i32, i32) {
    %c0_i32 = arith.constant 0 : i32
    %c0_i32_0 = arith.constant 0 : i32
    %c0_i32_1 = arith.constant 0 : i32
    return %c0_i32, %c0_i32_0 : i32, i32
  }
  func.func @transform_5(%arg0: i32) -> (i32, i32) {
    %c0_i32 = arith.constant 0 : i32
    %c0_i32_0 = arith.constant 0 : i32
    return %arg0, %c0_i32 : i32, i32
  }
}

</mosaic_0001>

<llo_original>
// kernel: _lambda_.1
$region0: #{_lambda_.1}
  #allocation0 [shape = 'u32[]', space=smem, size = 0x4, offset = 0x4, fixed_abs, tag = 'smem constant byte address 0x4 - core index']
  #allocation1 [shape = 'u32[144,128]{1,0:T(1,128)}', space=vmem, size = 0x12000, scoped, tag = 'internal scratch']
  %s0 = inlined_call_operand.vmem [shape: bf16[1250,1600], index: 0, kind: input, shape index: {}]
  %s1 = inlined_call_operand.vmem [shape: bf16[1600,32], index: 1, kind: input, shape index: {}]
  %s2 = inlined_call_operand.vmem [shape: f32[1,32], index: 2, kind: input, shape index: {}]
  %s3 = inlined_call_operand.vmem [shape: f32[32,8], index: 3, kind: input, shape index: {}]
  %s4 = inlined_call_operand.vmem [shape: f32[1,8], index: 4, kind: input, shape index: {}]
  %s5 = inlined_call_operand.vmem [shape: f32[1250,8], index: 5, kind: output, shape index: {}]
  %s6 = sld [smem:[#allocation0]]
  $region101: #{_lambda_.1} parent=0
    _
  %s8 = ssub.s32 1, %s6
  %s9 = scalar_select 0, %s8, %s6
  $region1: #{_lambda_.1} parent=0
    #allocation2 [shape = 'u8[327680]{0}', space=vmem, size = 0x50000, scoped, tag = 'output window, operand 0']
    loop: start=0, step=1, limit=6
    $region2: #{_lambda_.1} parent=1 // loop_pre_header
      _
    $region3: #{_lambda_.1} parent=1 // loop_header
      %s11 = sphi 0, %s15
      %p12 = scmp.ge.s32.totalorder %s11, 6
      %s21 = sphi 0, %s23
      %s24 = sphi 0, %s21
      %s25 = sphi 0, %s24
      %s41 = sphi 0, %s25
      %s45 = sphi 0, %s45
      %s47 = sphi 0, %s45
      %s48 = sphi 0, %s47
      %s62 = sphi 0, %s48
      %s66 = sphi 0, %s66
      %s68 = sphi 0, %s66
      %s69 = sphi 0, %s68
      %s83 = sphi 0, %s69
      %s87 = sphi 0, %s87
      %s89 = sphi 0, %s87
      %s90 = sphi 0, %s89
      %s104 = sphi 0, %s90
      %s108 = sphi 0, %s108
      %s110 = sphi 0, %s108
      %s111 = sphi 0, %s110
      %s125 = sphi 0, %s111
      %s131 = sphi 0, %s133
      %s134 = sphi 0, %s131
      %s135 = sphi 0, %s134
      %s151 = sphi 0, %s135
    $region4: #{_lambda_.1} parent=1 // loop_header_branch
      %14 = sbr.rel (%p12) target = $region8
    $region5: #{_lambda_.1} parent=1 // loop_body
      %s16 = ssub.s32 %s11, 1
      %s17 = ssub.s32 %s11, 2
      %s18 = sadd.s32 %s11, 1
      %s19 = ssub.s32 %s11, %s18
      %p20 = scmp.eq.s32.totalorder %s19, 0
      %s22 = sadd.s32 %s21, 1
      %s23 = scalar_select %p20, %s21, %s22
      %p26 = pneg %p20
      %p27 = scmp.eq.s32.totalorder %s11, 3
      %p28 = por %p26, %p27
      %p29 = scmp.ne.s32.totalorder %s21, %s24
      %p30 = scmp.eq.s32.totalorder %s11, 0
      %p31 = por %p29, %p30
      %p32 = scmp.ne.s32.totalorder %s21, %s24
      %p33 = scmp.eq.s32.totalorder %s16, 3
      %p34 = por %p32, %p33
      %p35 = scmp.ne.s32.totalorder %s24, %s25
      %p36 = scmp.eq.s32.totalorder %s16, 0
      %p37 = por %p35, %p36
      %p38 = scmp.ne.s32.totalorder %s24, %s25
      %p39 = scmp.eq.s32.totalorder %s17, 3
      %p40 = por %p38, %p39
      %p42 = scmp.ne.s32.totalorder %s25, %s41
      %p43 = scmp.eq.s32.totalorder %s17, 0
      %p44 = por %p42, %p43
      %s46 = sadd.s32 %s45, 1
      %p49 = scmp.eq.s32.totalorder %s11, 3
      %p50 = scmp.ne.s32.totalorder %s45, %s47
      %p51 = scmp.eq.s32.totalorder %s11, 0
      %p52 = por %p50, %p51
      %p53 = scmp.ne.s32.totalorder %s45, %s47
      %p54 = scmp.eq.s32.totalorder %s16, 3
      %p55 = por %p53, %p54
      %p56 = scmp.ne.s32.totalorder %s47, %s48
      %p57 = scmp.eq.s32.totalorder %s16, 0
      %p58 = por %p56, %p57
      %p59 = scmp.ne.s32.totalorder %s47, %s48
      %p60 = scmp.eq.s32.totalorder %s17, 3
      %p61 = por %p59, %p60
      %p63 = scmp.ne.s32.totalorder %s48, %s62
      %p64 = scmp.eq.s32.totalorder %s17, 0
      %p65 = por %p63, %p64
      %s67 = sadd.s32 %s66, 1
      %p70 = scmp.eq.s32.totalorder %s11, 3
      %p71 = scmp.ne.s32.totalorder %s66, %s68
      %p72 = scmp.eq.s32.totalorder %s11, 0
      %p73 = por %p71, %p72
      %p74 = scmp.ne.s32.totalorder %s66, %s68
      %p75 = scmp.eq.s32.totalorder %s16, 3
      %p76 = por %p74, %p75
      %p77 = scmp.ne.s32.totalorder %s68, %s69
      %p78 = scmp.eq.s32.totalorder %s16, 0
      %p79 = por %p77, %p78
      %p80 = scmp.ne.s32.totalorder %s68, %s69
      %p81 = scmp.eq.s32.totalorder %s17, 3
      %p82 = por %p80, %p81
      %p84 = scmp.ne.s32.totalorder %s69, %s83
      %p85 = scmp.eq.s32.totalorder %s17, 0
      %p86 = por %p84, %p85
      %s88 = sadd.s32 %s87, 1
      %p91 = scmp.eq.s32.totalorder %s11, 3
      %p92 = scmp.ne.s32.totalorder %s87, %s89
      %p93 = scmp.eq.s32.totalorder %s11, 0
      %p94 = por %p92, %p93
      %p95 = scmp.ne.s32.totalorder %s87, %s89
      %p96 = scmp.eq.s32.totalorder %s16, 3
      %p97 = por %p95, %p96
      %p98 = scmp.ne.s32.totalorder %s89, %s90
      %p99 = scmp.eq.s32.totalorder %s16, 0
      %p100 = por %p98, %p99
      %p101 = scmp.ne.s32.totalorder %s89, %s90
      %p102 = scmp.eq.s32.totalorder %s17, 3
      %p103 = por %p101, %p102
      %p105 = scmp.ne.s32.totalorder %s90, %s104
      %p106 = scmp.eq.s32.totalorder %s17, 0
      %p107 = por %p105, %p106
      %s109 = sadd.s32 %s108, 1
      %p112 = scmp.eq.s32.totalorder %s11, 3
      %p113 = scmp.ne.s32.totalorder %s108, %s110
      %p114 = scmp.eq.s32.totalorder %s11, 0
      %p115 = por %p113, %p114
      %p116 = scmp.ne.s32.totalorder %s108, %s110
      %p117 = scmp.eq.s32.totalorder %s16, 3
      %p118 = por %p116, %p117
      %p119 = scmp.ne.s32.totalorder %s110, %s111
      %p120 = scmp.eq.s32.totalorder %s16, 0
      %p121 = por %p119, %p120
      %p122 = scmp.ne.s32.totalorder %s110, %s111
      %p123 = scmp.eq.s32.totalorder %s17, 3
      %p124 = por %p122, %p123
      %p126 = scmp.ne.s32.totalorder %s111, %s125
      %p127 = scmp.eq.s32.totalorder %s17, 0
      %p128 = por %p126, %p127
      %s129 = ssub.s32 %s11, %s18
      %p130 = scmp.eq.s32.totalorder %s129, 0
      %s132 = sadd.s32 %s131, 1
      %s133 = scalar_select %p130, %s131, %s132
      %p136 = pneg %p130
      %p137 = scmp.eq.s32.totalorder %s11, 3
      %p138 = por %p136, %p137
      %p139 = scmp.ne.s32.totalorder %s131, %s134
      %p140 = scmp.eq.s32.totalorder %s11, 0
      %p141 = por %p139, %p140
      %p142 = scmp.ne.s32.totalorder %s131, %s134
      %p143 = scmp.eq.s32.totalorder %s16, 3
      %p144 = por %p142, %p143
      %p145 = scmp.ne.s32.totalorder %s134, %s135
      %p146 = scmp.eq.s32.totalorder %s16, 0
      %p147 = por %p145, %p146
      %p148 = scmp.ne.s32.totalorder %s134, %s135
      %p149 = scmp.eq.s32.totalorder %s17, 3
      %p150 = por %p148, %p149
      %p152 = scmp.ne.s32.totalorder %s135, %s151
      %p153 = scmp.eq.s32.totalorder %s17, 0
      %p154 = por %p152, %p153
      %p155 = scmp.le.s32.totalorder 1, %s11
      %p156 = scmp.lt.s32.totalorder %s11, 5
      %p157 = pnand %p155, %p156
      %p158 = pneg %p157
      // Predicated region
      $region9: #{_lambda_.1} parent=5 // pred_check
        _
      $region10: #{_lambda_.1} parent=5 // pred_check_branch
        %160 = sbr.rel (%p157) target = $region12
      $region11: #{_lambda_.1} parent=5 // pred_region
        %s161 = ssub.s32 %s11, 1
        // Predicated region
        $region13: #{_lambda_.1} parent=11 // pred_check
          %p162 = pneg %p58
        $region14: #{_lambda_.1} parent=11 // pred_check_branch
          %164 = sbr.rel (%p162) target = $region16
        $region15: #{_lambda_.1} parent=11 // pred_region
          _
        $region16: #{_lambda_.1} parent=11 // pred_fallthru
          _
        // Predicated region
        $region17: #{_lambda_.1} parent=11 // pred_check
          %p165 = pneg %p79
        $region18: #{_lambda_.1} parent=11 // pred_check_branch
          %167 = sbr.rel (%p165) target = $region20
        $region19: #{_lambda_.1} parent=11 // pred_region
          _
        $region20: #{_lambda_.1} parent=11 // pred_fallthru
          _
        // Predicated region
        $region21: #{_lambda_.1} parent=11 // pred_check
          %p168 = pneg %p100
        $region22: #{_lambda_.1} parent=11 // pred_check_branch
          %170 = sbr.rel (%p168) target = $region24
        $region23: #{_lambda_.1} parent=11 // pred_region
          _
        $region24: #{_lambda_.1} parent=11 // pred_fallthru
          _
        // Predicated region
        $region25: #{_lambda_.1} parent=11 // pred_check
          %p171 = pneg %p121
        $region26: #{_lambda_.1} parent=11 // pred_check_branch
          %173 = sbr.rel (%p171) target = $region28
        $region27: #{_lambda_.1} parent=11 // pred_region
          _
        $region28: #{_lambda_.1} parent=11 // pred_fallthru
          _
      $region12: #{_lambda_.1} parent=5 // pred_fallthru
        _
      %p174 = scmp.lt.s32.totalorder %s11, 4
      // Predicated region
      $region29: #{_lambda_.1} parent=5 // pred_check
        %p175 = pneg %p174
      $region30: #{_lambda_.1} parent=5 // pred_check_branch
        %177 = sbr.rel (%p175) target = $region32
      $region31: #{_lambda_.1} parent=5 // pred_region
        // Predicated region
        $region33: #{_lambda_.1} parent=31 // pred_check
          %p178 = pneg %p31
        $region34: #{_lambda_.1} parent=31 // pred_check_branch
          %180 = sbr.rel (%p178) target = $region36
        $region35: #{_lambda_.1} parent=31 // pred_region
          %s181 = smul.u32 40, %s11
          %s182 = ssub.s32 157, %s181
          %p183 = scmp.lt.s32.totalorder %s182, 40
          %s184 = scalar_select %p183, %s182, 40
          %s185 = smul.u32 64, %s184
          %s186 = smul.u32 %s185, 13
          %p187 = scmp.lt.s32.totalorder %s181, 156
          %s188 = scalar_select %p187, %s181, 156
          %s189 = smul.addr %s188, 13
          %s190 = smul.addr %s189, 4
          %s191 = scalar_lea.vmem %s0, %s190
          %s192 = smul.u32 40, %s11
          %s193 = ssub.s32 157, %s192
          %p194 = scmp.lt.s32.totalorder %s193, 40
          %s195 = scalar_select %p194, %s193, 40
          %s196 = smul.u32 64, %s195
          %s197 = smul.u32 %s196, 13
        $region36: #{_lambda_.1} parent=31 // pred_fallthru
          _
      $region32: #{_lambda_.1} parent=5 // pred_fallthru
        _
      %p198 = scmp.le.s32.totalorder 1, %s11
      %p199 = scmp.lt.s32.totalorder %s11, 5
      %p200 = pnand %p198, %p199
      %p201 = pneg %p200
      // Predicated region
      $region37: #{_lambda_.1} parent=5 // pred_check
        _
      $region38: #{_lambda_.1} parent=5 // pred_check_branch
        %203 = sbr.rel (%p200) target = $region40
      $region39: #{_lambda_.1} parent=5 // pred_region
        %s204 = ssub.s32 %s11, 1
        %s205 = smul.u32 40, %s16
        %s206 = ssub.s32 157, %s205
        %p207 = scmp.lt.s32.totalorder %s206, 40
        %s208 = scalar_select %p207, %s206, 40
        %s209 = smul.u32 64, %s208
        %s210 = smul.u32 %s209, 13
        %p211 = scmp.lt.s32.totalorder %s205, 156
        %s212 = scalar_select %p211, %s205, 156
        %s213 = smul.addr %s212, 13
        %s214 = smul.addr %s213, 4
        %s215 = scalar_lea.vmem %s0, %s214
        %p216 = pneg %p37
        %p217 = pneg %p34
        %p218 = pneg %p58
        %p219 = pneg %p55
        %p220 = pneg %p79
        %p221 = pneg %p76
        %p222 = pneg %p100
        %p223 = pneg %p97
        %p224 = pneg %p121
        %p225 = pneg %p118
        %p226 = pneg %p147
        %p227 = pneg %p144
        %s228 = sand.u32 %s134, 1
        %s229 = sand.u32 %s134, 1
        %s230 = smul.addr %s229, 320
        %s231 = scalar_lea.vmem [#allocation2], %s230
        %s232 = smul.u32 40, %s16
        %s233 = ssub.s32 157, %s232
        %p234 = scmp.lt.s32.totalorder %s233, 40
        %s235 = scalar_select %p234, %s233, 40
        %s236 = smul.u32 64, %s235
        %s237 = smul.u32 %s236, 13
        %p238 = scmp.lt.s32.totalorder %s232, 156
        %s239 = scalar_select %p238, %s232, 156
        %s240 = smul.addr %s239, 13
        %s241 = smul.addr %s240, 4
        %s242 = scalar_lea.vmem %s0, %s241
        %s243 = smul.u32 40, %s16
        %s244 = ssub.s32 157, %s243
        %p245 = scmp.lt.s32.totalorder %s244, 40
        %s246 = scalar_select %p245, %s244, 40
        %s247 = smul.u32 64, %s246
        %s248 = smul.u32 %s247, 13
        %s249 = smul.u32 40, %s16
        %s250 = ssub.s32 157, %s249
        %p251 = scmp.lt.s32.totalorder %s250, 40
        %s252 = scalar_select %p251, %s250, 40
        %s253 = smul.u32 128, %s252
        %v255 = vld [vmem:[%s242] sm:$0xff]
        %v256 = vld [vmem:[%s242 + $0x8] sm:$0xff]
        %v257 = vld [vmem:[%s242 + $0x10] sm:$0xff]
        %v258 = vld [vmem:[%s242 + $0x18] sm:$0xff]
        %v259 = vld [vmem:[%s242 + $0x20] sm:$0xff]
        %v260 = vld [vmem:[%s242 + $0x28] sm:$0xff]
        %v261 = vld [vmem:[%s242 + $0x30] sm:$0xf]
        %v262 = vld [vmem:[%s242 + $0x34] sm:$0xff]
        %v263 = vld [vmem:[%s242 + $0x3c] sm:$0xff]
        %v264 = vld [vmem:[%s242 + $0x44] sm:$0xff]
        %v265 = vld [vmem:[%s242 + $0x4c] sm:$0xff]
        %v266 = vld [vmem:[%s242 + $0x54] sm:$0xff]
        %v267 = vld [vmem:[%s242 + $0x5c] sm:$0xff]
        %v268 = vld [vmem:[%s242 + $0x64] sm:$0xf]
        %v269 = vld [vmem:[%s242 + $0x68] sm:$0xff]
        %v270 = vld [vmem:[%s242 + $0x70] sm:$0xff]
        %v271 = vld [vmem:[%s242 + $0x78] sm:$0xff]
        %v272 = vld [vmem:[%s242 + $0x80] sm:$0xff]
        %v273 = vld [vmem:[%s242 + $0x88] sm:$0xff]
        %v274 = vld [vmem:[%s242 + $0x90] sm:$0xff]
        %v275 = vld [vmem:[%s242 + $0x98] sm:$0xf]
        %v276 = vld [vmem:[%s242 + $0x9c] sm:$0xff]
        %v277 = vld [vmem:[%s242 + $0xa4] sm:$0xff]
        %v278 = vld [vmem:[%s242 + $0xac] sm:$0xff]
        %v279 = vld [vmem:[%s242 + $0xb4] sm:$0xff]
        %v280 = vld [vmem:[%s242 + $0xbc] sm:$0xff]
        %v281 = vld [vmem:[%s242 + $0xc4] sm:$0xff]
        %v282 = vld [vmem:[%s242 + $0xcc] sm:$0xf]
        %v283 = vld [vmem:[%s242 + $0xd0] sm:$0xff]
        %v284 = vld [vmem:[%s242 + $0xd8] sm:$0xff]
        %v285 = vld [vmem:[%s242 + $0xe0] sm:$0xff]
        %v286 = vld [vmem:[%s242 + $0xe8] sm:$0xff]
        %v287 = vld [vmem:[%s242 + $0xf0] sm:$0xff]
        %v288 = vld [vmem:[%s242 + $0xf8] sm:$0xff]
        %v289 = vld [vmem:[%s242 + $0x100] sm:$0xf]
        %v290 = vld [vmem:[%s242 + $0x104] sm:$0xff]
        %v291 = vld [vmem:[%s242 + $0x10c] sm:$0xff]
        %v292 = vld [vmem:[%s242 + $0x114] sm:$0xff]
        %v293 = vld [vmem:[%s242 + $0x11c] sm:$0xff]
        %v294 = vld [vmem:[%s242 + $0x124] sm:$0xff]
        %v295 = vld [vmem:[%s242 + $0x12c] sm:$0xff]
        %v296 = vld [vmem:[%s242 + $0x134] sm:$0xf]
        %v297 = vld [vmem:[%s242 + $0x138] sm:$0xff]
        %v298 = vld [vmem:[%s242 + $0x140] sm:$0xff]
        %v299 = vld [vmem:[%s242 + $0x148] sm:$0xff]
        %v300 = vld [vmem:[%s242 + $0x150] sm:$0xff]
        %v301 = vld [vmem:[%s242 + $0x158] sm:$0xff]
        %v302 = vld [vmem:[%s242 + $0x160] sm:$0xff]
        %v303 = vld [vmem:[%s242 + $0x168] sm:$0xf]
        %v304 = vld [vmem:[%s242 + $0x16c] sm:$0xff]
        %v305 = vld [vmem:[%s242 + $0x174] sm:$0xff]
        %v306 = vld [vmem:[%s242 + $0x17c] sm:$0xff]
        %v307 = vld [vmem:[%s242 + $0x184] sm:$0xff]
        %v308 = vld [vmem:[%s242 + $0x18c] sm:$0xff]
        %v309 = vld [vmem:[%s242 + $0x194] sm:$0xff]
        %v310 = vld [vmem:[%s242 + $0x19c] sm:$0xf]
        %v311 = vld [vmem:[%s242 + $0x1a0] sm:$0xff]
        %v312 = vld [vmem:[%s242 + $0x1a8] sm:$0xff]
        %v313 = vld [vmem:[%s242 + $0x1b0] sm:$0xff]
        %v314 = vld [vmem:[%s242 + $0x1b8] sm:$0xff]
        %v315 = vld [vmem:[%s242 + $0x1c0] sm:$0xff]
        %v316 = vld [vmem:[%s242 + $0x1c8] sm:$0xff]
        %v317 = vld [vmem:[%s242 + $0x1d0] sm:$0xf]
        %v318 = vld [vmem:[%s242 + $0x1d4] sm:$0xff]
        %v319 = vld [vmem:[%s242 + $0x1dc] sm:$0xff]
        %v320 = vld [vmem:[%s242 + $0x1e4] sm:$0xff]
        %v321 = vld [vmem:[%s242 + $0x1ec] sm:$0xff]
        %v322 = vld [vmem:[%s242 + $0x1f4] sm:$0xff]
        %v323 = vld [vmem:[%s242 + $0x1fc] sm:$0xff]
        %v324 = vld [vmem:[%s242 + $0x204] sm:$0xf]
        %v325 = vld [vmem:[%s242 + $0x208] sm:$0xff]
        %v326 = vld [vmem:[%s242 + $0x210] sm:$0xff]
        %v327 = vld [vmem:[%s242 + $0x218] sm:$0xff]
        %v328 = vld [vmem:[%s242 + $0x220] sm:$0xff]
        %v329 = vld [vmem:[%s242 + $0x228] sm:$0xff]
        %v330 = vld [vmem:[%s242 + $0x230] sm:$0xff]
        %v331 = vld [vmem:[%s242 + $0x238] sm:$0xf]
        %v332 = vld [vmem:[%s242 + $0x23c] sm:$0xff]
        %v333 = vld [vmem:[%s242 + $0x244] sm:$0xff]
        %v334 = vld [vmem:[%s242 + $0x24c] sm:$0xff]
        %v335 = vld [vmem:[%s242 + $0x254] sm:$0xff]
        %v336 = vld [vmem:[%s242 + $0x25c] sm:$0xff]
        %v337 = vld [vmem:[%s242 + $0x264] sm:$0xff]
        %v338 = vld [vmem:[%s242 + $0x26c] sm:$0xf]
        %v339 = vld [vmem:[%s242 + $0x270] sm:$0xff]
        %v340 = vld [vmem:[%s242 + $0x278] sm:$0xff]
        %v341 = vld [vmem:[%s242 + $0x280] sm:$0xff]
        %v342 = vld [vmem:[%s242 + $0x288] sm:$0xff]
        %v343 = vld [vmem:[%s242 + $0x290] sm:$0xff]
        %v344 = vld [vmem:[%s242 + $0x298] sm:$0xff]
        %v345 = vld [vmem:[%s242 + $0x2a0] sm:$0xf]
        %v346 = vld [vmem:[%s242 + $0x2a4] sm:$0xff]
        %v347 = vld [vmem:[%s242 + $0x2ac] sm:$0xff]
        %v348 = vld [vmem:[%s242 + $0x2b4] sm:$0xff]
        %v349 = vld [vmem:[%s242 + $0x2bc] sm:$0xff]
        %v350 = vld [vmem:[%s242 + $0x2c4] sm:$0xff]
        %v351 = vld [vmem:[%s242 + $0x2cc] sm:$0xff]
        %v352 = vld [vmem:[%s242 + $0x2d4] sm:$0xf]
        %v353 = vld [vmem:[%s242 + $0x2d8] sm:$0xff]
        %v354 = vld [vmem:[%s242 + $0x2e0] sm:$0xff]
        %v355 = vld [vmem:[%s242 + $0x2e8] sm:$0xff]
        %v356 = vld [vmem:[%s242 + $0x2f0] sm:$0xff]
        %v357 = vld [vmem:[%s242 + $0x2f8] sm:$0xff]
        %v358 = vld [vmem:[%s242 + $0x300] sm:$0xff]
        %v359 = vld [vmem:[%s242 + $0x308] sm:$0xf]
        %v360 = vld [vmem:[%s242 + $0x30c] sm:$0xff]
        %v361 = vld [vmem:[%s242 + $0x314] sm:$0xff]
        %v362 = vld [vmem:[%s242 + $0x31c] sm:$0xff]
        %v363 = vld [vmem:[%s242 + $0x324] sm:$0xff]
        %v364 = vld [vmem:[%s242 + $0x32c] sm:$0xff]
        %v365 = vld [vmem:[%s242 + $0x334] sm:$0xff]
        %v366 = vld [vmem:[%s242 + $0x33c] sm:$0xf]
        %v367 = vld [vmem:[%s242 + $0x340] sm:$0xff]
        %v368 = vld [vmem:[%s242 + $0x348] sm:$0xff]
        %v369 = vld [vmem:[%s242 + $0x350] sm:$0xff]
        %v370 = vld [vmem:[%s242 + $0x358] sm:$0xff]
        %v371 = vld [vmem:[%s242 + $0x360] sm:$0xff]
        %v372 = vld [vmem:[%s242 + $0x368] sm:$0xff]
        %v373 = vld [vmem:[%s242 + $0x370] sm:$0xf]
        %v374 = vld [vmem:[%s242 + $0x374] sm:$0xff]
        %v375 = vld [vmem:[%s242 + $0x37c] sm:$0xff]
        %v376 = vld [vmem:[%s242 + $0x384] sm:$0xff]
        %v377 = vld [vmem:[%s242 + $0x38c] sm:$0xff]
        %v378 = vld [vmem:[%s242 + $0x394] sm:$0xff]
        %v379 = vld [vmem:[%s242 + $0x39c] sm:$0xff]
        %v380 = vld [vmem:[%s242 + $0x3a4] sm:$0xf]
        %v381 = vld [vmem:[%s242 + $0x3a8] sm:$0xff]
        %v382 = vld [vmem:[%s242 + $0x3b0] sm:$0xff]
        %v383 = vld [vmem:[%s242 + $0x3b8] sm:$0xff]
        %v384 = vld [vmem:[%s242 + $0x3c0] sm:$0xff]
        %v385 = vld [vmem:[%s242 + $0x3c8] sm:$0xff]
        %v386 = vld [vmem:[%s242 + $0x3d0] sm:$0xff]
        %v387 = vld [vmem:[%s242 + $0x3d8] sm:$0xf]
        %v388 = vld [vmem:[%s242 + $0x3dc] sm:$0xff]
        %v389 = vld [vmem:[%s242 + $0x3e4] sm:$0xff]
        %v390 = vld [vmem:[%s242 + $0x3ec] sm:$0xff]
        %v391 = vld [vmem:[%s242 + $0x3f4] sm:$0xff]
        %v392 = vld [vmem:[%s242 + $0x3fc] sm:$0xff]
        %v393 = vld [vmem:[%s242 + $0x404] sm:$0xff]
        %v394 = vld [vmem:[%s242 + $0x40c] sm:$0xf]
        %v395 = vld [vmem:[%s242 + $0x410] sm:$0xff]
        %v396 = vld [vmem:[%s242 + $0x418] sm:$0xff]
        %v397 = vld [vmem:[%s242 + $0x420] sm:$0xff]
        %v398 = vld [vmem:[%s242 + $0x428] sm:$0xff]
        %v399 = vld [vmem:[%s242 + $0x430] sm:$0xff]
        %v400 = vld [vmem:[%s242 + $0x438] sm:$0xff]
        %v401 = vld [vmem:[%s242 + $0x440] sm:$0xf]
        %v402 = vld [vmem:[%s242 + $0x444] sm:$0xff]
        %v403 = vld [vmem:[%s242 + $0x44c] sm:$0xff]
        %v404 = vld [vmem:[%s242 + $0x454] sm:$0xff]
        %v405 = vld [vmem:[%s242 + $0x45c] sm:$0xff]
        %v406 = vld [vmem:[%s242 + $0x464] sm:$0xff]
        %v407 = vld [vmem:[%s242 + $0x46c] sm:$0xff]
        %v408 = vld [vmem:[%s242 + $0x474] sm:$0xf]
        %v409 = vld [vmem:[%s242 + $0x478] sm:$0xff]
        %v410 = vld [vmem:[%s242 + $0x480] sm:$0xff]
        %v411 = vld [vmem:[%s242 + $0x488] sm:$0xff]
        %v412 = vld [vmem:[%s242 + $0x490] sm:$0xff]
        %v413 = vld [vmem:[%s242 + $0x498] sm:$0xff]
        %v414 = vld [vmem:[%s242 + $0x4a0] sm:$0xff]
        %v415 = vld [vmem:[%s242 + $0x4a8] sm:$0xf]
        %v416 = vld [vmem:[%s242 + $0x4ac] sm:$0xff]
        %v417 = vld [vmem:[%s242 + $0x4b4] sm:$0xff]
        %v418 = vld [vmem:[%s242 + $0x4bc] sm:$0xff]
        %v419 = vld [vmem:[%s242 + $0x4c4] sm:$0xff]
        %v420 = vld [vmem:[%s242 + $0x4cc] sm:$0xff]
        %v421 = vld [vmem:[%s242 + $0x4d4] sm:$0xff]
        %v422 = vld [vmem:[%s242 + $0x4dc] sm:$0xf]
        %v423 = vld [vmem:[%s242 + $0x4e0] sm:$0xff]
        %v424 = vld [vmem:[%s242 + $0x4e8] sm:$0xff]
        %v425 = vld [vmem:[%s242 + $0x4f0] sm:$0xff]
        %v426 = vld [vmem:[%s242 + $0x4f8] sm:$0xff]
        %v427 = vld [vmem:[%s242 + $0x500] sm:$0xff]
        %v428 = vld [vmem:[%s242 + $0x508] sm:$0xff]
        %v429 = vld [vmem:[%s242 + $0x510] sm:$0xf]
        %v430 = vld [vmem:[%s242 + $0x514] sm:$0xff]
        %v431 = vld [vmem:[%s242 + $0x51c] sm:$0xff]
        %v432 = vld [vmem:[%s242 + $0x524] sm:$0xff]
        %v433 = vld [vmem:[%s242 + $0x52c] sm:$0xff]
        %v434 = vld [vmem:[%s242 + $0x534] sm:$0xff]
        %v435 = vld [vmem:[%s242 + $0x53c] sm:$0xff]
        %v436 = vld [vmem:[%s242 + $0x544] sm:$0xf]
        %v437 = vld [vmem:[%s242 + $0x548] sm:$0xff]
        %v438 = vld [vmem:[%s242 + $0x550] sm:$0xff]
        %v439 = vld [vmem:[%s242 + $0x558] sm:$0xff]
        %v440 = vld [vmem:[%s242 + $0x560] sm:$0xff]
        %v441 = vld [vmem:[%s242 + $0x568] sm:$0xff]
        %v442 = vld [vmem:[%s242 + $0x570] sm:$0xff]
        %v443 = vld [vmem:[%s242 + $0x578] sm:$0xf]
        %v444 = vld [vmem:[%s242 + $0x57c] sm:$0xff]
        %v445 = vld [vmem:[%s242 + $0x584] sm:$0xff]
        %v446 = vld [vmem:[%s242 + $0x58c] sm:$0xff]
        %v447 = vld [vmem:[%s242 + $0x594] sm:$0xff]
        %v448 = vld [vmem:[%s242 + $0x59c] sm:$0xff]
        %v449 = vld [vmem:[%s242 + $0x5a4] sm:$0xff]
        %v450 = vld [vmem:[%s242 + $0x5ac] sm:$0xf]
        %v451 = vld [vmem:[%s242 + $0x5b0] sm:$0xff]
        %v452 = vld [vmem:[%s242 + $0x5b8] sm:$0xff]
        %v453 = vld [vmem:[%s242 + $0x5c0] sm:$0xff]
        %v454 = vld [vmem:[%s242 + $0x5c8] sm:$0xff]
        %v455 = vld [vmem:[%s242 + $0x5d0] sm:$0xff]
        %v456 = vld [vmem:[%s242 + $0x5d8] sm:$0xff]
        %v457 = vld [vmem:[%s242 + $0x5e0] sm:$0xf]
        %v458 = vld [vmem:[%s242 + $0x5e4] sm:$0xff]
        %v459 = vld [vmem:[%s242 + $0x5ec] sm:$0xff]
        %v460 = vld [vmem:[%s242 + $0x5f4] sm:$0xff]
        %v461 = vld [vmem:[%s242 + $0x5fc] sm:$0xff]
        %v462 = vld [vmem:[%s242 + $0x604] sm:$0xff]
        %v463 = vld [vmem:[%s242 + $0x60c] sm:$0xff]
        %v464 = vld [vmem:[%s242 + $0x614] sm:$0xf]
        %v465 = vld [vmem:[%s242 + $0x618] sm:$0xff]
        %v466 = vld [vmem:[%s242 + $0x620] sm:$0xff]
        %v467 = vld [vmem:[%s242 + $0x628] sm:$0xff]
        %v468 = vld [vmem:[%s242 + $0x630] sm:$0xff]
        %v469 = vld [vmem:[%s242 + $0x638] sm:$0xff]
        %v470 = vld [vmem:[%s242 + $0x640] sm:$0xff]
        %v471 = vld [vmem:[%s242 + $0x648] sm:$0xf]
        %v472 = vld [vmem:[%s242 + $0x64c] sm:$0xff]
        %v473 = vld [vmem:[%s242 + $0x654] sm:$0xff]
        %v474 = vld [vmem:[%s242 + $0x65c] sm:$0xff]
        %v475 = vld [vmem:[%s242 + $0x664] sm:$0xff]
        %v476 = vld [vmem:[%s242 + $0x66c] sm:$0xff]
        %v477 = vld [vmem:[%s242 + $0x674] sm:$0xff]
        %v478 = vld [vmem:[%s242 + $0x67c] sm:$0xf]
        %v479 = vld [vmem:[%s242 + $0x680] sm:$0xff]
        %v480 = vld [vmem:[%s242 + $0x688] sm:$0xff]
        %v481 = vld [vmem:[%s242 + $0x690] sm:$0xff]
        %v482 = vld [vmem:[%s242 + $0x698] sm:$0xff]
        %v483 = vld [vmem:[%s242 + $0x6a0] sm:$0xff]
        %v484 = vld [vmem:[%s242 + $0x6a8] sm:$0xff]
        %v485 = vld [vmem:[%s242 + $0x6b0] sm:$0xf]
        %v486 = vld [vmem:[%s242 + $0x6b4] sm:$0xff]
        %v487 = vld [vmem:[%s242 + $0x6bc] sm:$0xff]
        %v488 = vld [vmem:[%s242 + $0x6c4] sm:$0xff]
        %v489 = vld [vmem:[%s242 + $0x6cc] sm:$0xff]
        %v490 = vld [vmem:[%s242 + $0x6d4] sm:$0xff]
        %v491 = vld [vmem:[%s242 + $0x6dc] sm:$0xff]
        %v492 = vld [vmem:[%s242 + $0x6e4] sm:$0xf]
        %v493 = vld [vmem:[%s242 + $0x6e8] sm:$0xff]
        %v494 = vld [vmem:[%s242 + $0x6f0] sm:$0xff]
        %v495 = vld [vmem:[%s242 + $0x6f8] sm:$0xff]
        %v496 = vld [vmem:[%s242 + $0x700] sm:$0xff]
        %v497 = vld [vmem:[%s242 + $0x708] sm:$0xff]
        %v498 = vld [vmem:[%s242 + $0x710] sm:$0xff]
        %v499 = vld [vmem:[%s242 + $0x718] sm:$0xf]
        %v500 = vld [vmem:[%s242 + $0x71c] sm:$0xff]
        %v501 = vld [vmem:[%s242 + $0x724] sm:$0xff]
        %v502 = vld [vmem:[%s242 + $0x72c] sm:$0xff]
        %v503 = vld [vmem:[%s242 + $0x734] sm:$0xff]
        %v504 = vld [vmem:[%s242 + $0x73c] sm:$0xff]
        %v505 = vld [vmem:[%s242 + $0x744] sm:$0xff]
        %v506 = vld [vmem:[%s242 + $0x74c] sm:$0xf]
        %v507 = vld [vmem:[%s242 + $0x750] sm:$0xff]
        %v508 = vld [vmem:[%s242 + $0x758] sm:$0xff]
        %v509 = vld [vmem:[%s242 + $0x760] sm:$0xff]
        %v510 = vld [vmem:[%s242 + $0x768] sm:$0xff]
        %v511 = vld [vmem:[%s242 + $0x770] sm:$0xff]
        %v512 = vld [vmem:[%s242 + $0x778] sm:$0xff]
        %v513 = vld [vmem:[%s242 + $0x780] sm:$0xf]
        %v514 = vld [vmem:[%s242 + $0x784] sm:$0xff]
        %v515 = vld [vmem:[%s242 + $0x78c] sm:$0xff]
        %v516 = vld [vmem:[%s242 + $0x794] sm:$0xff]
        %v517 = vld [vmem:[%s242 + $0x79c] sm:$0xff]
        %v518 = vld [vmem:[%s242 + $0x7a4] sm:$0xff]
        %v519 = vld [vmem:[%s242 + $0x7ac] sm:$0xff]
        %v520 = vld [vmem:[%s242 + $0x7b4] sm:$0xf]
        %v521 = vld [vmem:[%s242 + $0x7b8] sm:$0xff]
        %v522 = vld [vmem:[%s242 + $0x7c0] sm:$0xff]
        %v523 = vld [vmem:[%s242 + $0x7c8] sm:$0xff]
        %v524 = vld [vmem:[%s242 + $0x7d0] sm:$0xff]
        %v525 = vld [vmem:[%s242 + $0x7d8] sm:$0xff]
        %v526 = vld [vmem:[%s242 + $0x7e0] sm:$0xff]
        %v527 = vld [vmem:[%s242 + $0x7e8] sm:$0xf]
        %v528 = vld [vmem:[%s242 + $0x7ec] sm:$0xff]
        %v529 = vld [vmem:[%s242 + $0x7f4] sm:$0xff]
        %v530 = vld [vmem:[%s242 + $0x7fc] sm:$0xff]
        %v531 = vld [vmem:[%s242 + $0x804] sm:$0xff]
        %v532 = vld [vmem:[%s242 + $0x80c] sm:$0xff]
        %v533 = vld [vmem:[%s242 + $0x814] sm:$0xff]
        %v534 = vld [vmem:[%s242 + $0x81c] sm:$0xf]
        %v535 = vld [vmem:[%s1] sm:$0xf]
        %v536 = vld [vmem:[%s1 + $0x4] sm:$0xf]
        %v537 = vld [vmem:[%s1 + $0x8] sm:$0xf]
        %v538 = vld [vmem:[%s1 + $0xc] sm:$0xf]
        %v539 = vld [vmem:[%s1 + $0x10] sm:$0xf]
        %v540 = vld [vmem:[%s1 + $0x14] sm:$0xf]
        %v541 = vld [vmem:[%s1 + $0x18] sm:$0xf]
        %v542 = vld [vmem:[%s1 + $0x1c] sm:$0xf]
        %v543 = vld [vmem:[%s1 + $0x20] sm:$0xf]
        %v544 = vld [vmem:[%s1 + $0x24] sm:$0xf]
        %v545 = vld [vmem:[%s1 + $0x28] sm:$0xf]
        %v546 = vld [vmem:[%s1 + $0x2c] sm:$0xf]
        %v547 = vld [vmem:[%s1 + $0x30] sm:$0xf]
        %v548 = vld [vmem:[%s1 + $0x34] sm:$0xf]
        %v549 = vld [vmem:[%s1 + $0x38] sm:$0xf]
        %v550 = vld [vmem:[%s1 + $0x3c] sm:$0xf]
        %v551 = vld [vmem:[%s1 + $0x40] sm:$0xf]
        %v552 = vld [vmem:[%s1 + $0x44] sm:$0xf]
        %v553 = vld [vmem:[%s1 + $0x48] sm:$0xf]
        %v554 = vld [vmem:[%s1 + $0x4c] sm:$0xf]
        %v555 = vld [vmem:[%s1 + $0x50] sm:$0xf]
        %v556 = vld [vmem:[%s1 + $0x54] sm:$0xf]
        %v557 = vld [vmem:[%s1 + $0x58] sm:$0xf]
        %v558 = vld [vmem:[%s1 + $0x5c] sm:$0xf]
        %v559 = vld [vmem:[%s1 + $0x60] sm:$0xf]
        %v560 = vld [vmem:[%s1 + $0x64] sm:$0xf]
        %v561 = vld [vmem:[%s1 + $0x68] sm:$0xf]
        %v562 = vld [vmem:[%s1 + $0x6c] sm:$0xf]
        %v563 = vld [vmem:[%s1 + $0x70] sm:$0xf]
        %v564 = vld [vmem:[%s1 + $0x74] sm:$0xf]
        %v565 = vld [vmem:[%s1 + $0x78] sm:$0xf]
        %v566 = vld [vmem:[%s1 + $0x7c] sm:$0xf]
        %v567 = vld [vmem:[%s1 + $0x80] sm:$0xf]
        %v568 = vld [vmem:[%s1 + $0x84] sm:$0xf]
        %v569 = vld [vmem:[%s1 + $0x88] sm:$0xf]
        %v570 = vld [vmem:[%s1 + $0x8c] sm:$0xf]
        %v571 = vld [vmem:[%s1 + $0x90] sm:$0xf]
        %v572 = vld [vmem:[%s1 + $0x94] sm:$0xf]
        %v573 = vld [vmem:[%s1 + $0x98] sm:$0xf]
        %v574 = vld [vmem:[%s1 + $0x9c] sm:$0xf]
        %v575 = vld [vmem:[%s1 + $0xa0] sm:$0xf]
        %v576 = vld [vmem:[%s1 + $0xa4] sm:$0xf]
        %v577 = vld [vmem:[%s1 + $0xa8] sm:$0xf]
        %v578 = vld [vmem:[%s1 + $0xac] sm:$0xf]
        %v579 = vld [vmem:[%s1 + $0xb0] sm:$0xf]
        %v580 = vld [vmem:[%s1 + $0xb4] sm:$0xf]
        %v581 = vld [vmem:[%s1 + $0xb8] sm:$0xf]
        %v582 = vld [vmem:[%s1 + $0xbc] sm:$0xf]
        %v583 = vld [vmem:[%s1 + $0xc0] sm:$0xf]
        %v584 = vld [vmem:[%s1 + $0xc4] sm:$0xf]
        %v585 = vld [vmem:[%s1 + $0xc8] sm:$0xf]
        %v586 = vld [vmem:[%s1 + $0xcc] sm:$0xf]
        %v587 = vld [vmem:[%s1 + $0xd0] sm:$0xf]
        %v588 = vld [vmem:[%s1 + $0xd4] sm:$0xf]
        %v589 = vld [vmem:[%s1 + $0xd8] sm:$0xf]
        %v590 = vld [vmem:[%s1 + $0xdc] sm:$0xf]
        %v591 = vld [vmem:[%s1 + $0xe0] sm:$0xf]
        %v592 = vld [vmem:[%s1 + $0xe4] sm:$0xf]
        %v593 = vld [vmem:[%s1 + $0xe8] sm:$0xf]
        %v594 = vld [vmem:[%s1 + $0xec] sm:$0xf]
        %v595 = vld [vmem:[%s1 + $0xf0] sm:$0xf]
        %v596 = vld [vmem:[%s1 + $0xf4] sm:$0xf]
        %v597 = vld [vmem:[%s1 + $0xf8] sm:$0xf]
        %v598 = vld [vmem:[%s1 + $0xfc] sm:$0xf]
        %v599 = vld [vmem:[%s1 + $0x100] sm:$0xf]
        %v600 = vld [vmem:[%s1 + $0x104] sm:$0xf]
        %v601 = vld [vmem:[%s1 + $0x108] sm:$0xf]
        %v602 = vld [vmem:[%s1 + $0x10c] sm:$0xf]
        %v603 = vld [vmem:[%s1 + $0x110] sm:$0xf]
        %v604 = vld [vmem:[%s1 + $0x114] sm:$0xf]
        %v605 = vld [vmem:[%s1 + $0x118] sm:$0xf]
        %v606 = vld [vmem:[%s1 + $0x11c] sm:$0xf]
        %v607 = vld [vmem:[%s1 + $0x120] sm:$0xf]
        %v608 = vld [vmem:[%s1 + $0x124] sm:$0xf]
        %v609 = vld [vmem:[%s1 + $0x128] sm:$0xf]
        %v610 = vld [vmem:[%s1 + $0x12c] sm:$0xf]
        %v611 = vld [vmem:[%s1 + $0x130] sm:$0xf]
        %v612 = vld [vmem:[%s1 + $0x134] sm:$0xf]
        %v613 = vld [vmem:[%s1 + $0x138] sm:$0xf]
        %v614 = vld [vmem:[%s1 + $0x13c] sm:$0xf]
        %v615 = vld [vmem:[%s1 + $0x140] sm:$0xf]
        %v616 = vld [vmem:[%s1 + $0x144] sm:$0xf]
        %v617 = vld [vmem:[%s1 + $0x148] sm:$0xf]
        %v618 = vld [vmem:[%s1 + $0x14c] sm:$0xf]
        %v619 = vld [vmem:[%s1 + $0x150] sm:$0xf]
        %v620 = vld [vmem:[%s1 + $0x154] sm:$0xf]
        %v621 = vld [vmem:[%s1 + $0x158] sm:$0xf]
        %v622 = vld [vmem:[%s1 + $0x15c] sm:$0xf]
        %v623 = vld [vmem:[%s1 + $0x160] sm:$0xf]
        %v624 = vld [vmem:[%s1 + $0x164] sm:$0xf]
        %v625 = vld [vmem:[%s1 + $0x168] sm:$0xf]
        %v626 = vld [vmem:[%s1 + $0x16c] sm:$0xf]
        %v627 = vld [vmem:[%s1 + $0x170] sm:$0xf]
        %v628 = vld [vmem:[%s1 + $0x174] sm:$0xf]
        %v629 = vld [vmem:[%s1 + $0x178] sm:$0xf]
        %v630 = vld [vmem:[%s1 + $0x17c] sm:$0xf]
        %v631 = vld [vmem:[%s1 + $0x180] sm:$0xf]
        %v632 = vld [vmem:[%s1 + $0x184] sm:$0xf]
        %v633 = vld [vmem:[%s1 + $0x188] sm:$0xf]
        %v634 = vld [vmem:[%s1 + $0x18c] sm:$0xf]
        %v635 = vld [vmem:[%s1 + $0x190] sm:$0xf]
        %v636 = vld [vmem:[%s1 + $0x194] sm:$0xf]
        %v637 = vld [vmem:[%s1 + $0x198] sm:$0xf]
        %v638 = vld [vmem:[%s1 + $0x19c] sm:$0xf]
        %v639 = vld [vmem:[%s1 + $0x1a0] sm:$0xf]
        %v640 = vld [vmem:[%s1 + $0x1a4] sm:$0xf]
        %v641 = vld [vmem:[%s1 + $0x1a8] sm:$0xf]
        %v642 = vld [vmem:[%s1 + $0x1ac] sm:$0xf]
        %v643 = vld [vmem:[%s1 + $0x1b0] sm:$0xf]
        %v644 = vld [vmem:[%s1 + $0x1b4] sm:$0xf]
        %v645 = vld [vmem:[%s1 + $0x1b8] sm:$0xf]
        %v646 = vld [vmem:[%s1 + $0x1bc] sm:$0xf]
        %v647 = vld [vmem:[%s1 + $0x1c0] sm:$0xf]
        %v648 = vld [vmem:[%s1 + $0x1c4] sm:$0xf]
        %v649 = vld [vmem:[%s1 + $0x1c8] sm:$0xf]
        %v650 = vld [vmem:[%s1 + $0x1cc] sm:$0xf]
        %v651 = vld [vmem:[%s1 + $0x1d0] sm:$0xf]
        %v652 = vld [vmem:[%s1 + $0x1d4] sm:$0xf]
        %v653 = vld [vmem:[%s1 + $0x1d8] sm:$0xf]
        %v654 = vld [vmem:[%s1 + $0x1dc] sm:$0xf]
        %v655 = vld [vmem:[%s1 + $0x1e0] sm:$0xf]
        %v656 = vld [vmem:[%s1 + $0x1e4] sm:$0xf]
        %v657 = vld [vmem:[%s1 + $0x1e8] sm:$0xf]
        %v658 = vld [vmem:[%s1 + $0x1ec] sm:$0xf]
        %v659 = vld [vmem:[%s1 + $0x1f0] sm:$0xf]
        %v660 = vld [vmem:[%s1 + $0x1f4] sm:$0xf]
        %v661 = vld [vmem:[%s1 + $0x1f8] sm:$0xf]
        %v662 = vld [vmem:[%s1 + $0x1fc] sm:$0xf]
        %v663 = vld [vmem:[%s1 + $0x200] sm:$0xf]
        %v664 = vld [vmem:[%s1 + $0x204] sm:$0xf]
        %v665 = vld [vmem:[%s1 + $0x208] sm:$0xf]
        %v666 = vld [vmem:[%s1 + $0x20c] sm:$0xf]
        %v667 = vld [vmem:[%s1 + $0x210] sm:$0xf]
        %v668 = vld [vmem:[%s1 + $0x214] sm:$0xf]
        %v669 = vld [vmem:[%s1 + $0x218] sm:$0xf]
        %v670 = vld [vmem:[%s1 + $0x21c] sm:$0xf]
        %v671 = vld [vmem:[%s1 + $0x220] sm:$0xf]
        %v672 = vld [vmem:[%s1 + $0x224] sm:$0xf]
        %v673 = vld [vmem:[%s1 + $0x228] sm:$0xf]
        %v674 = vld [vmem:[%s1 + $0x22c] sm:$0xf]
        %v675 = vld [vmem:[%s1 + $0x230] sm:$0xf]
        %v676 = vld [vmem:[%s1 + $0x234] sm:$0xf]
        %v677 = vld [vmem:[%s1 + $0x238] sm:$0xf]
        %v678 = vld [vmem:[%s1 + $0x23c] sm:$0xf]
        %v679 = vld [vmem:[%s1 + $0x240] sm:$0xf]
        %v680 = vld [vmem:[%s1 + $0x244] sm:$0xf]
        %v681 = vld [vmem:[%s1 + $0x248] sm:$0xf]
        %v682 = vld [vmem:[%s1 + $0x24c] sm:$0xf]
        %v683 = vld [vmem:[%s1 + $0x250] sm:$0xf]
        %v684 = vld [vmem:[%s1 + $0x254] sm:$0xf]
        %v685 = vld [vmem:[%s1 + $0x258] sm:$0xf]
        %v686 = vld [vmem:[%s1 + $0x25c] sm:$0xf]
        %v687 = vld [vmem:[%s1 + $0x260] sm:$0xf]
        %v688 = vld [vmem:[%s1 + $0x264] sm:$0xf]
        %v689 = vld [vmem:[%s1 + $0x268] sm:$0xf]
        %v690 = vld [vmem:[%s1 + $0x26c] sm:$0xf]
        %v691 = vld [vmem:[%s1 + $0x270] sm:$0xf]
        %v692 = vld [vmem:[%s1 + $0x274] sm:$0xf]
        %v693 = vld [vmem:[%s1 + $0x278] sm:$0xf]
        %v694 = vld [vmem:[%s1 + $0x27c] sm:$0xf]
        %v695 = vld [vmem:[%s1 + $0x280] sm:$0xf]
        %v696 = vld [vmem:[%s1 + $0x284] sm:$0xf]
        %v697 = vld [vmem:[%s1 + $0x288] sm:$0xf]
        %v698 = vld [vmem:[%s1 + $0x28c] sm:$0xf]
        %v699 = vld [vmem:[%s1 + $0x290] sm:$0xf]
        %v700 = vld [vmem:[%s1 + $0x294] sm:$0xf]
        %v701 = vld [vmem:[%s1 + $0x298] sm:$0xf]
        %v702 = vld [vmem:[%s1 + $0x29c] sm:$0xf]
        %v703 = vld [vmem:[%s1 + $0x2a0] sm:$0xf]
        %v704 = vld [vmem:[%s1 + $0x2a4] sm:$0xf]
        %v705 = vld [vmem:[%s1 + $0x2a8] sm:$0xf]
        %v706 = vld [vmem:[%s1 + $0x2ac] sm:$0xf]
        %v707 = vld [vmem:[%s1 + $0x2b0] sm:$0xf]
        %v708 = vld [vmem:[%s1 + $0x2b4] sm:$0xf]
        %v709 = vld [vmem:[%s1 + $0x2b8] sm:$0xf]
        %v710 = vld [vmem:[%s1 + $0x2bc] sm:$0xf]
        %v711 = vld [vmem:[%s1 + $0x2c0] sm:$0xf]
        %v712 = vld [vmem:[%s1 + $0x2c4] sm:$0xf]
        %v713 = vld [vmem:[%s1 + $0x2c8] sm:$0xf]
        %v714 = vld [vmem:[%s1 + $0x2cc] sm:$0xf]
        %v715 = vld [vmem:[%s1 + $0x2d0] sm:$0xf]
        %v716 = vld [vmem:[%s1 + $0x2d4] sm:$0xf]
        %v717 = vld [vmem:[%s1 + $0x2d8] sm:$0xf]
        %v718 = vld [vmem:[%s1 + $0x2dc] sm:$0xf]
        %v719 = vld [vmem:[%s1 + $0x2e0] sm:$0xf]
        %v720 = vld [vmem:[%s1 + $0x2e4] sm:$0xf]
        %v721 = vld [vmem:[%s1 + $0x2e8] sm:$0xf]
        %v722 = vld [vmem:[%s1 + $0x2ec] sm:$0xf]
        %v723 = vld [vmem:[%s1 + $0x2f0] sm:$0xf]
        %v724 = vld [vmem:[%s1 + $0x2f4] sm:$0xf]
        %v725 = vld [vmem:[%s1 + $0x2f8] sm:$0xf]
        %v726 = vld [vmem:[%s1 + $0x2fc] sm:$0xf]
        %v727 = vld [vmem:[%s1 + $0x300] sm:$0xf]
        %v728 = vld [vmem:[%s1 + $0x304] sm:$0xf]
        %v729 = vld [vmem:[%s1 + $0x308] sm:$0xf]
        %v730 = vld [vmem:[%s1 + $0x30c] sm:$0xf]
        %v731 = vld [vmem:[%s1 + $0x310] sm:$0xf]
        %v732 = vld [vmem:[%s1 + $0x314] sm:$0xf]
        %v733 = vld [vmem:[%s1 + $0x318] sm:$0xf]
        %v734 = vld [vmem:[%s1 + $0x31c] sm:$0xf]
        %v735 = vld [vmem:[%s2] sm:$0x1]
        %v737 = vlaneseq
        %v738 = vshrl.u32 %v737, 7
        %v739 = vsub.s32 0, %v738
        %v740 = vrot.slane %v735, %v739
        %v1022 = vunpack.c.l.b16 %v255
        %v1023 = vunpack.c.h.b16 %v255
        %v1024 = vunpack.c.l.b16 %v256
        %v1025 = vunpack.c.h.b16 %v256
        %v1026 = vunpack.c.l.b16 %v257
        %v1027 = vunpack.c.h.b16 %v257
        %v1028 = vunpack.c.l.b16 %v258
        %v1029 = vunpack.c.h.b16 %v258
        %v1030 = vunpack.c.l.b16 %v259
        %v1031 = vunpack.c.h.b16 %v259
        %v1032 = vunpack.c.l.b16 %v260
        %v1033 = vunpack.c.h.b16 %v260
        %v1034 = vunpack.c.l.b16 %v261
        %v1035 = vunpack.c.l.b16 %v262
        %v1036 = vunpack.c.h.b16 %v262
        %v1037 = vunpack.c.l.b16 %v263
        %v1038 = vunpack.c.h.b16 %v263
        %v1039 = vunpack.c.l.b16 %v264
        %v1040 = vunpack.c.h.b16 %v264
        %v1041 = vunpack.c.l.b16 %v265
        %v1042 = vunpack.c.h.b16 %v265
        %v1043 = vunpack.c.l.b16 %v266
        %v1044 = vunpack.c.h.b16 %v266
        %v1045 = vunpack.c.l.b16 %v267
        %v1046 = vunpack.c.h.b16 %v267
        %v1047 = vunpack.c.l.b16 %v268
        %v1048 = vunpack.c.l.b16 %v269
        %v1049 = vunpack.c.h.b16 %v269
        %v1050 = vunpack.c.l.b16 %v270
        %v1051 = vunpack.c.h.b16 %v270
        %v1052 = vunpack.c.l.b16 %v271
        %v1053 = vunpack.c.h.b16 %v271
        %v1054 = vunpack.c.l.b16 %v272
        %v1055 = vunpack.c.h.b16 %v272
        %v1056 = vunpack.c.l.b16 %v273
        %v1057 = vunpack.c.h.b16 %v273
        %v1058 = vunpack.c.l.b16 %v274
        %v1059 = vunpack.c.h.b16 %v274
        %v1060 = vunpack.c.l.b16 %v275
        %v1061 = vunpack.c.l.b16 %v276
        %v1062 = vunpack.c.h.b16 %v276
        %v1063 = vunpack.c.l.b16 %v277
        %v1064 = vunpack.c.h.b16 %v277
        %v1065 = vunpack.c.l.b16 %v278
        %v1066 = vunpack.c.h.b16 %v278
        %v1067 = vunpack.c.l.b16 %v279
        %v1068 = vunpack.c.h.b16 %v279
        %v1069 = vunpack.c.l.b16 %v280
        %v1070 = vunpack.c.h.b16 %v280
        %v1071 = vunpack.c.l.b16 %v281
        %v1072 = vunpack.c.h.b16 %v281
        %v1073 = vunpack.c.l.b16 %v282
        %v1074 = vunpack.c.l.b16 %v283
        %v1075 = vunpack.c.h.b16 %v283
        %v1076 = vunpack.c.l.b16 %v284
        %v1077 = vunpack.c.h.b16 %v284
        %v1078 = vunpack.c.l.b16 %v285
        %v1079 = vunpack.c.h.b16 %v285
        %v1080 = vunpack.c.l.b16 %v286
        %v1081 = vunpack.c.h.b16 %v286
        %v1082 = vunpack.c.l.b16 %v287
        %v1083 = vunpack.c.h.b16 %v287
        %v1084 = vunpack.c.l.b16 %v288
        %v1085 = vunpack.c.h.b16 %v288
        %v1086 = vunpack.c.l.b16 %v289
        %v1087 = vunpack.c.l.b16 %v290
        %v1088 = vunpack.c.h.b16 %v290
        %v1089 = vunpack.c.l.b16 %v291
        %v1090 = vunpack.c.h.b16 %v291
        %v1091 = vunpack.c.l.b16 %v292
        %v1092 = vunpack.c.h.b16 %v292
        %v1093 = vunpack.c.l.b16 %v293
        %v1094 = vunpack.c.h.b16 %v293
        %v1095 = vunpack.c.l.b16 %v294
        %v1096 = vunpack.c.h.b16 %v294
        %v1097 = vunpack.c.l.b16 %v295
        %v1098 = vunpack.c.h.b16 %v295
        %v1099 = vunpack.c.l.b16 %v296
        %v1100 = vunpack.c.l.b16 %v297
        %v1101 = vunpack.c.h.b16 %v297
        %v1102 = vunpack.c.l.b16 %v298
        %v1103 = vunpack.c.h.b16 %v298
        %v1104 = vunpack.c.l.b16 %v299
        %v1105 = vunpack.c.h.b16 %v299
        %v1106 = vunpack.c.l.b16 %v300
        %v1107 = vunpack.c.h.b16 %v300
        %v1108 = vunpack.c.l.b16 %v301
        %v1109 = vunpack.c.h.b16 %v301
        %v1110 = vunpack.c.l.b16 %v302
        %v1111 = vunpack.c.h.b16 %v302
        %v1112 = vunpack.c.l.b16 %v303
        %v1113 = vunpack.c.l.b16 %v304
        %v1114 = vunpack.c.h.b16 %v304
        %v1115 = vunpack.c.l.b16 %v305
        %v1116 = vunpack.c.h.b16 %v305
        %v1117 = vunpack.c.l.b16 %v306
        %v1118 = vunpack.c.h.b16 %v306
        %v1119 = vunpack.c.l.b16 %v307
        %v1120 = vunpack.c.h.b16 %v307
        %v1121 = vunpack.c.l.b16 %v308
        %v1122 = vunpack.c.h.b16 %v308
        %v1123 = vunpack.c.l.b16 %v309
        %v1124 = vunpack.c.h.b16 %v309
        %v1125 = vunpack.c.l.b16 %v310
        %v1126 = vunpack.c.l.b16 %v311
        %v1127 = vunpack.c.h.b16 %v311
        %v1128 = vunpack.c.l.b16 %v312
        %v1129 = vunpack.c.h.b16 %v312
        %v1130 = vunpack.c.l.b16 %v313
        %v1131 = vunpack.c.h.b16 %v313
        %v1132 = vunpack.c.l.b16 %v314
        %v1133 = vunpack.c.h.b16 %v314
        %v1134 = vunpack.c.l.b16 %v315
        %v1135 = vunpack.c.h.b16 %v315
        %v1136 = vunpack.c.l.b16 %v316
        %v1137 = vunpack.c.h.b16 %v316
        %v1138 = vunpack.c.l.b16 %v317
        %v1139 = vunpack.c.l.b16 %v318
        %v1140 = vunpack.c.h.b16 %v318
        %v1141 = vunpack.c.l.b16 %v319
        %v1142 = vunpack.c.h.b16 %v319
        %v1143 = vunpack.c.l.b16 %v320
        %v1144 = vunpack.c.h.b16 %v320
        %v1145 = vunpack.c.l.b16 %v321
        %v1146 = vunpack.c.h.b16 %v321
        %v1147 = vunpack.c.l.b16 %v322
        %v1148 = vunpack.c.h.b16 %v322
        %v1149 = vunpack.c.l.b16 %v323
        %v1150 = vunpack.c.h.b16 %v323
        %v1151 = vunpack.c.l.b16 %v324
        %v1152 = vunpack.c.l.b16 %v325
        %v1153 = vunpack.c.h.b16 %v325
        %v1154 = vunpack.c.l.b16 %v326
        %v1155 = vunpack.c.h.b16 %v326
        %v1156 = vunpack.c.l.b16 %v327
        %v1157 = vunpack.c.h.b16 %v327
        %v1158 = vunpack.c.l.b16 %v328
        %v1159 = vunpack.c.h.b16 %v328
        %v1160 = vunpack.c.l.b16 %v329
        %v1161 = vunpack.c.h.b16 %v329
        %v1162 = vunpack.c.l.b16 %v330
        %v1163 = vunpack.c.h.b16 %v330
        %v1164 = vunpack.c.l.b16 %v331
        %v1165 = vunpack.c.l.b16 %v332
        %v1166 = vunpack.c.h.b16 %v332
        %v1167 = vunpack.c.l.b16 %v333
        %v1168 = vunpack.c.h.b16 %v333
        %v1169 = vunpack.c.l.b16 %v334
        %v1170 = vunpack.c.h.b16 %v334
        %v1171 = vunpack.c.l.b16 %v335
        %v1172 = vunpack.c.h.b16 %v335
        %v1173 = vunpack.c.l.b16 %v336
        %v1174 = vunpack.c.h.b16 %v336
        %v1175 = vunpack.c.l.b16 %v337
        %v1176 = vunpack.c.h.b16 %v337
        %v1177 = vunpack.c.l.b16 %v338
        %v1178 = vunpack.c.l.b16 %v339
        %v1179 = vunpack.c.h.b16 %v339
        %v1180 = vunpack.c.l.b16 %v340
        %v1181 = vunpack.c.h.b16 %v340
        %v1182 = vunpack.c.l.b16 %v341
        %v1183 = vunpack.c.h.b16 %v341
        %v1184 = vunpack.c.l.b16 %v342
        %v1185 = vunpack.c.h.b16 %v342
        %v1186 = vunpack.c.l.b16 %v343
        %v1187 = vunpack.c.h.b16 %v343
        %v1188 = vunpack.c.l.b16 %v344
        %v1189 = vunpack.c.h.b16 %v344
        %v1190 = vunpack.c.l.b16 %v345
        %v1191 = vunpack.c.l.b16 %v346
        %v1192 = vunpack.c.h.b16 %v346
        %v1193 = vunpack.c.l.b16 %v347
        %v1194 = vunpack.c.h.b16 %v347
        %v1195 = vunpack.c.l.b16 %v348
        %v1196 = vunpack.c.h.b16 %v348
        %v1197 = vunpack.c.l.b16 %v349
        %v1198 = vunpack.c.h.b16 %v349
        %v1199 = vunpack.c.l.b16 %v350
        %v1200 = vunpack.c.h.b16 %v350
        %v1201 = vunpack.c.l.b16 %v351
        %v1202 = vunpack.c.h.b16 %v351
        %v1203 = vunpack.c.l.b16 %v352
        %v1204 = vunpack.c.l.b16 %v353
        %v1205 = vunpack.c.h.b16 %v353
        %v1206 = vunpack.c.l.b16 %v354
        %v1207 = vunpack.c.h.b16 %v354
        %v1208 = vunpack.c.l.b16 %v355
        %v1209 = vunpack.c.h.b16 %v355
        %v1210 = vunpack.c.l.b16 %v356
        %v1211 = vunpack.c.h.b16 %v356
        %v1212 = vunpack.c.l.b16 %v357
        %v1213 = vunpack.c.h.b16 %v357
        %v1214 = vunpack.c.l.b16 %v358
        %v1215 = vunpack.c.h.b16 %v358
        %v1216 = vunpack.c.l.b16 %v359
        %v1217 = vunpack.c.l.b16 %v360
        %v1218 = vunpack.c.h.b16 %v360
        %v1219 = vunpack.c.l.b16 %v361
        %v1220 = vunpack.c.h.b16 %v361
        %v1221 = vunpack.c.l.b16 %v362
        %v1222 = vunpack.c.h.b16 %v362
        %v1223 = vunpack.c.l.b16 %v363
        %v1224 = vunpack.c.h.b16 %v363
        %v1225 = vunpack.c.l.b16 %v364
        %v1226 = vunpack.c.h.b16 %v364
        %v1227 = vunpack.c.l.b16 %v365
        %v1228 = vunpack.c.h.b16 %v365
        %v1229 = vunpack.c.l.b16 %v366
        %v1230 = vunpack.c.l.b16 %v367
        %v1231 = vunpack.c.h.b16 %v367
        %v1232 = vunpack.c.l.b16 %v368
        %v1233 = vunpack.c.h.b16 %v368
        %v1234 = vunpack.c.l.b16 %v369
        %v1235 = vunpack.c.h.b16 %v369
        %v1236 = vunpack.c.l.b16 %v370
        %v1237 = vunpack.c.h.b16 %v370
        %v1238 = vunpack.c.l.b16 %v371
        %v1239 = vunpack.c.h.b16 %v371
        %v1240 = vunpack.c.l.b16 %v372
        %v1241 = vunpack.c.h.b16 %v372
        %v1242 = vunpack.c.l.b16 %v373
        %v1243 = vunpack.c.l.b16 %v374
        %v1244 = vunpack.c.h.b16 %v374
        %v1245 = vunpack.c.l.b16 %v375
        %v1246 = vunpack.c.h.b16 %v375
        %v1247 = vunpack.c.l.b16 %v376
        %v1248 = vunpack.c.h.b16 %v376
        %v1249 = vunpack.c.l.b16 %v377
        %v1250 = vunpack.c.h.b16 %v377
        %v1251 = vunpack.c.l.b16 %v378
        %v1252 = vunpack.c.h.b16 %v378
        %v1253 = vunpack.c.l.b16 %v379
        %v1254 = vunpack.c.h.b16 %v379
        %v1255 = vunpack.c.l.b16 %v380
        %v1256 = vunpack.c.l.b16 %v381
        %v1257 = vunpack.c.h.b16 %v381
        %v1258 = vunpack.c.l.b16 %v382
        %v1259 = vunpack.c.h.b16 %v382
        %v1260 = vunpack.c.l.b16 %v383
        %v1261 = vunpack.c.h.b16 %v383
        %v1262 = vunpack.c.l.b16 %v384
        %v1263 = vunpack.c.h.b16 %v384
        %v1264 = vunpack.c.l.b16 %v385
        %v1265 = vunpack.c.h.b16 %v385
        %v1266 = vunpack.c.l.b16 %v386
        %v1267 = vunpack.c.h.b16 %v386
        %v1268 = vunpack.c.l.b16 %v387
        %v1269 = vunpack.c.l.b16 %v388
        %v1270 = vunpack.c.h.b16 %v388
        %v1271 = vunpack.c.l.b16 %v389
        %v1272 = vunpack.c.h.b16 %v389
        %v1273 = vunpack.c.l.b16 %v390
        %v1274 = vunpack.c.h.b16 %v390
        %v1275 = vunpack.c.l.b16 %v391
        %v1276 = vunpack.c.h.b16 %v391
        %v1277 = vunpack.c.l.b16 %v392
        %v1278 = vunpack.c.h.b16 %v392
        %v1279 = vunpack.c.l.b16 %v393
        %v1280 = vunpack.c.h.b16 %v393
        %v1281 = vunpack.c.l.b16 %v394
        %v1282 = vunpack.c.l.b16 %v395
        %v1283 = vunpack.c.h.b16 %v395
        %v1284 = vunpack.c.l.b16 %v396
        %v1285 = vunpack.c.h.b16 %v396
        %v1286 = vunpack.c.l.b16 %v397
        %v1287 = vunpack.c.h.b16 %v397
        %v1288 = vunpack.c.l.b16 %v398
        %v1289 = vunpack.c.h.b16 %v398
        %v1290 = vunpack.c.l.b16 %v399
        %v1291 = vunpack.c.h.b16 %v399
        %v1292 = vunpack.c.l.b16 %v400
        %v1293 = vunpack.c.h.b16 %v400
        %v1294 = vunpack.c.l.b16 %v401
        %v1295 = vunpack.c.l.b16 %v402
        %v1296 = vunpack.c.h.b16 %v402
        %v1297 = vunpack.c.l.b16 %v403
        %v1298 = vunpack.c.h.b16 %v403
        %v1299 = vunpack.c.l.b16 %v404
        %v1300 = vunpack.c.h.b16 %v404
        %v1301 = vunpack.c.l.b16 %v405
        %v1302 = vunpack.c.h.b16 %v405
        %v1303 = vunpack.c.l.b16 %v406
        %v1304 = vunpack.c.h.b16 %v406
        %v1305 = vunpack.c.l.b16 %v407
        %v1306 = vunpack.c.h.b16 %v407
        %v1307 = vunpack.c.l.b16 %v408
        %v1308 = vunpack.c.l.b16 %v409
        %v1309 = vunpack.c.h.b16 %v409
        %v1310 = vunpack.c.l.b16 %v410
        %v1311 = vunpack.c.h.b16 %v410
        %v1312 = vunpack.c.l.b16 %v411
        %v1313 = vunpack.c.h.b16 %v411
        %v1314 = vunpack.c.l.b16 %v412
        %v1315 = vunpack.c.h.b16 %v412
        %v1316 = vunpack.c.l.b16 %v413
        %v1317 = vunpack.c.h.b16 %v413
        %v1318 = vunpack.c.l.b16 %v414
        %v1319 = vunpack.c.h.b16 %v414
        %v1320 = vunpack.c.l.b16 %v415
        %v1321 = vunpack.c.l.b16 %v416
        %v1322 = vunpack.c.h.b16 %v416
        %v1323 = vunpack.c.l.b16 %v417
        %v1324 = vunpack.c.h.b16 %v417
        %v1325 = vunpack.c.l.b16 %v418
        %v1326 = vunpack.c.h.b16 %v418
        %v1327 = vunpack.c.l.b16 %v419
        %v1328 = vunpack.c.h.b16 %v419
        %v1329 = vunpack.c.l.b16 %v420
        %v1330 = vunpack.c.h.b16 %v420
        %v1331 = vunpack.c.l.b16 %v421
        %v1332 = vunpack.c.h.b16 %v421
        %v1333 = vunpack.c.l.b16 %v422
        %v1334 = vunpack.c.l.b16 %v423
        %v1335 = vunpack.c.h.b16 %v423
        %v1336 = vunpack.c.l.b16 %v424
        %v1337 = vunpack.c.h.b16 %v424
        %v1338 = vunpack.c.l.b16 %v425
        %v1339 = vunpack.c.h.b16 %v425
        %v1340 = vunpack.c.l.b16 %v426
        %v1341 = vunpack.c.h.b16 %v426
        %v1342 = vunpack.c.l.b16 %v427
        %v1343 = vunpack.c.h.b16 %v427
        %v1344 = vunpack.c.l.b16 %v428
        %v1345 = vunpack.c.h.b16 %v428
        %v1346 = vunpack.c.l.b16 %v429
        %v1347 = vunpack.c.l.b16 %v430
        %v1348 = vunpack.c.h.b16 %v430
        %v1349 = vunpack.c.l.b16 %v431
        %v1350 = vunpack.c.h.b16 %v431
        %v1351 = vunpack.c.l.b16 %v432
        %v1352 = vunpack.c.h.b16 %v432
        %v1353 = vunpack.c.l.b16 %v433
        %v1354 = vunpack.c.h.b16 %v433
        %v1355 = vunpack.c.l.b16 %v434
        %v1356 = vunpack.c.h.b16 %v434
        %v1357 = vunpack.c.l.b16 %v435
        %v1358 = vunpack.c.h.b16 %v435
        %v1359 = vunpack.c.l.b16 %v436
        %v1360 = vunpack.c.l.b16 %v437
        %v1361 = vunpack.c.h.b16 %v437
        %v1362 = vunpack.c.l.b16 %v438
        %v1363 = vunpack.c.h.b16 %v438
        %v1364 = vunpack.c.l.b16 %v439
        %v1365 = vunpack.c.h.b16 %v439
        %v1366 = vunpack.c.l.b16 %v440
        %v1367 = vunpack.c.h.b16 %v440
        %v1368 = vunpack.c.l.b16 %v441
        %v1369 = vunpack.c.h.b16 %v441
        %v1370 = vunpack.c.l.b16 %v442
        %v1371 = vunpack.c.h.b16 %v442
        %v1372 = vunpack.c.l.b16 %v443
        %v1373 = vunpack.c.l.b16 %v444
        %v1374 = vunpack.c.h.b16 %v444
        %v1375 = vunpack.c.l.b16 %v445
        %v1376 = vunpack.c.h.b16 %v445
        %v1377 = vunpack.c.l.b16 %v446
        %v1378 = vunpack.c.h.b16 %v446
        %v1379 = vunpack.c.l.b16 %v447
        %v1380 = vunpack.c.h.b16 %v447
        %v1381 = vunpack.c.l.b16 %v448
        %v1382 = vunpack.c.h.b16 %v448
        %v1383 = vunpack.c.l.b16 %v449
        %v1384 = vunpack.c.h.b16 %v449
        %v1385 = vunpack.c.l.b16 %v450
        %v1386 = vunpack.c.l.b16 %v451
        %v1387 = vunpack.c.h.b16 %v451
        %v1388 = vunpack.c.l.b16 %v452
        %v1389 = vunpack.c.h.b16 %v452
        %v1390 = vunpack.c.l.b16 %v453
        %v1391 = vunpack.c.h.b16 %v453
        %v1392 = vunpack.c.l.b16 %v454
        %v1393 = vunpack.c.h.b16 %v454
        %v1394 = vunpack.c.l.b16 %v455
        %v1395 = vunpack.c.h.b16 %v455
        %v1396 = vunpack.c.l.b16 %v456
        %v1397 = vunpack.c.h.b16 %v456
        %v1398 = vunpack.c.l.b16 %v457
        %v1399 = vunpack.c.l.b16 %v458
        %v1400 = vunpack.c.h.b16 %v458
        %v1401 = vunpack.c.l.b16 %v459
        %v1402 = vunpack.c.h.b16 %v459
        %v1403 = vunpack.c.l.b16 %v460
        %v1404 = vunpack.c.h.b16 %v460
        %v1405 = vunpack.c.l.b16 %v461
        %v1406 = vunpack.c.h.b16 %v461
        %v1407 = vunpack.c.l.b16 %v462
        %v1408 = vunpack.c.h.b16 %v462
        %v1409 = vunpack.c.l.b16 %v463
        %v1410 = vunpack.c.h.b16 %v463
        %v1411 = vunpack.c.l.b16 %v464
        %v1412 = vunpack.c.l.b16 %v465
        %v1413 = vunpack.c.h.b16 %v465
        %v1414 = vunpack.c.l.b16 %v466
        %v1415 = vunpack.c.h.b16 %v466
        %v1416 = vunpack.c.l.b16 %v467
        %v1417 = vunpack.c.h.b16 %v467
        %v1418 = vunpack.c.l.b16 %v468
        %v1419 = vunpack.c.h.b16 %v468
        %v1420 = vunpack.c.l.b16 %v469
        %v1421 = vunpack.c.h.b16 %v469
        %v1422 = vunpack.c.l.b16 %v470
        %v1423 = vunpack.c.h.b16 %v470
        %v1424 = vunpack.c.l.b16 %v471
        %v1425 = vunpack.c.l.b16 %v472
        %v1426 = vunpack.c.h.b16 %v472
        %v1427 = vunpack.c.l.b16 %v473
        %v1428 = vunpack.c.h.b16 %v473
        %v1429 = vunpack.c.l.b16 %v474
        %v1430 = vunpack.c.h.b16 %v474
        %v1431 = vunpack.c.l.b16 %v475
        %v1432 = vunpack.c.h.b16 %v475
        %v1433 = vunpack.c.l.b16 %v476
        %v1434 = vunpack.c.h.b16 %v476
        %v1435 = vunpack.c.l.b16 %v477
        %v1436 = vunpack.c.h.b16 %v477
        %v1437 = vunpack.c.l.b16 %v478
        %v1438 = vunpack.c.l.b16 %v479
        %v1439 = vunpack.c.h.b16 %v479
        %v1440 = vunpack.c.l.b16 %v480
        %v1441 = vunpack.c.h.b16 %v480
        %v1442 = vunpack.c.l.b16 %v481
        %v1443 = vunpack.c.h.b16 %v481
        %v1444 = vunpack.c.l.b16 %v482
        %v1445 = vunpack.c.h.b16 %v482
        %v1446 = vunpack.c.l.b16 %v483
        %v1447 = vunpack.c.h.b16 %v483
        %v1448 = vunpack.c.l.b16 %v484
        %v1449 = vunpack.c.h.b16 %v484
        %v1450 = vunpack.c.l.b16 %v485
        %v1451 = vunpack.c.l.b16 %v486
        %v1452 = vunpack.c.h.b16 %v486
        %v1453 = vunpack.c.l.b16 %v487
        %v1454 = vunpack.c.h.b16 %v487
        %v1455 = vunpack.c.l.b16 %v488
        %v1456 = vunpack.c.h.b16 %v488
        %v1457 = vunpack.c.l.b16 %v489
        %v1458 = vunpack.c.h.b16 %v489
        %v1459 = vunpack.c.l.b16 %v490
        %v1460 = vunpack.c.h.b16 %v490
        %v1461 = vunpack.c.l.b16 %v491
        %v1462 = vunpack.c.h.b16 %v491
        %v1463 = vunpack.c.l.b16 %v492
        %v1464 = vunpack.c.l.b16 %v493
        %v1465 = vunpack.c.h.b16 %v493
        %v1466 = vunpack.c.l.b16 %v494
        %v1467 = vunpack.c.h.b16 %v494
        %v1468 = vunpack.c.l.b16 %v495
        %v1469 = vunpack.c.h.b16 %v495
        %v1470 = vunpack.c.l.b16 %v496
        %v1471 = vunpack.c.h.b16 %v496
        %v1472 = vunpack.c.l.b16 %v497
        %v1473 = vunpack.c.h.b16 %v497
        %v1474 = vunpack.c.l.b16 %v498
        %v1475 = vunpack.c.h.b16 %v498
        %v1476 = vunpack.c.l.b16 %v499
        %v1477 = vunpack.c.l.b16 %v500
        %v1478 = vunpack.c.h.b16 %v500
        %v1479 = vunpack.c.l.b16 %v501
        %v1480 = vunpack.c.h.b16 %v501
        %v1481 = vunpack.c.l.b16 %v502
        %v1482 = vunpack.c.h.b16 %v502
        %v1483 = vunpack.c.l.b16 %v503
        %v1484 = vunpack.c.h.b16 %v503
        %v1485 = vunpack.c.l.b16 %v504
        %v1486 = vunpack.c.h.b16 %v504
        %v1487 = vunpack.c.l.b16 %v505
        %v1488 = vunpack.c.h.b16 %v505
        %v1489 = vunpack.c.l.b16 %v506
        %v1490 = vunpack.c.l.b16 %v507
        %v1491 = vunpack.c.h.b16 %v507
        %v1492 = vunpack.c.l.b16 %v508
        %v1493 = vunpack.c.h.b16 %v508
        %v1494 = vunpack.c.l.b16 %v509
        %v1495 = vunpack.c.h.b16 %v509
        %v1496 = vunpack.c.l.b16 %v510
        %v1497 = vunpack.c.h.b16 %v510
        %v1498 = vunpack.c.l.b16 %v511
        %v1499 = vunpack.c.h.b16 %v511
        %v1500 = vunpack.c.l.b16 %v512
        %v1501 = vunpack.c.h.b16 %v512
        %v1502 = vunpack.c.l.b16 %v513
        %v1503 = vunpack.c.l.b16 %v514
        %v1504 = vunpack.c.h.b16 %v514
        %v1505 = vunpack.c.l.b16 %v515
        %v1506 = vunpack.c.h.b16 %v515
        %v1507 = vunpack.c.l.b16 %v516
        %v1508 = vunpack.c.h.b16 %v516
        %v1509 = vunpack.c.l.b16 %v517
        %v1510 = vunpack.c.h.b16 %v517
        %v1511 = vunpack.c.l.b16 %v518
        %v1512 = vunpack.c.h.b16 %v518
        %v1513 = vunpack.c.l.b16 %v519
        %v1514 = vunpack.c.h.b16 %v519
        %v1515 = vunpack.c.l.b16 %v520
        %v1516 = vunpack.c.l.b16 %v521
        %v1517 = vunpack.c.h.b16 %v521
        %v1518 = vunpack.c.l.b16 %v522
        %v1519 = vunpack.c.h.b16 %v522
        %v1520 = vunpack.c.l.b16 %v523
        %v1521 = vunpack.c.h.b16 %v523
        %v1522 = vunpack.c.l.b16 %v524
        %v1523 = vunpack.c.h.b16 %v524
        %v1524 = vunpack.c.l.b16 %v525
        %v1525 = vunpack.c.h.b16 %v525
        %v1526 = vunpack.c.l.b16 %v526
        %v1527 = vunpack.c.h.b16 %v526
        %v1528 = vunpack.c.l.b16 %v527
        %v1529 = vunpack.c.l.b16 %v528
        %v1530 = vunpack.c.h.b16 %v528
        %v1531 = vunpack.c.l.b16 %v529
        %v1532 = vunpack.c.h.b16 %v529
        %v1533 = vunpack.c.l.b16 %v530
        %v1534 = vunpack.c.h.b16 %v530
        %v1535 = vunpack.c.l.b16 %v531
        %v1536 = vunpack.c.h.b16 %v531
        %v1537 = vunpack.c.l.b16 %v532
        %v1538 = vunpack.c.h.b16 %v532
        %v1539 = vunpack.c.l.b16 %v533
        %v1540 = vunpack.c.h.b16 %v533
        %v1541 = vunpack.c.l.b16 %v534
        %v1542 = vpack.c.b16 %v1035, %v1022
        %v1543 = vpack.c.b16 %v1036, %v1023
        %v1544 = vpack.c.b16 %v1037, %v1024
        %v1545 = vpack.c.b16 %v1038, %v1025
        %v1546 = vpack.c.b16 %v1039, %v1026
        %v1547 = vpack.c.b16 %v1040, %v1027
        %v1548 = vpack.c.b16 %v1041, %v1028
        %v1549 = vpack.c.b16 %v1042, %v1029
        %v1550 = vpack.c.b16 %v1043, %v1030
        %v1551 = vpack.c.b16 %v1044, %v1031
        %v1552 = vpack.c.b16 %v1045, %v1032
        %v1553 = vpack.c.b16 %v1046, %v1033
        %v1554 = vpack.c.b16 %v1047, %v1034
        %v1555 = vpack.c.b16 %v1061, %v1048
        %v1556 = vpack.c.b16 %v1062, %v1049
        %v1557 = vpack.c.b16 %v1063, %v1050
        %v1558 = vpack.c.b16 %v1064, %v1051
        %v1559 = vpack.c.b16 %v1065, %v1052
        %v1560 = vpack.c.b16 %v1066, %v1053
        %v1561 = vpack.c.b16 %v1067, %v1054
        %v1562 = vpack.c.b16 %v1068, %v1055
        %v1563 = vpack.c.b16 %v1069, %v1056
        %v1564 = vpack.c.b16 %v1070, %v1057
        %v1565 = vpack.c.b16 %v1071, %v1058
        %v1566 = vpack.c.b16 %v1072, %v1059
        %v1567 = vpack.c.b16 %v1073, %v1060
        %v1568 = vpack.c.b16 %v1087, %v1074
        %v1569 = vpack.c.b16 %v1088, %v1075
        %v1570 = vpack.c.b16 %v1089, %v1076
        %v1571 = vpack.c.b16 %v1090, %v1077
        %v1572 = vpack.c.b16 %v1091, %v1078
        %v1573 = vpack.c.b16 %v1092, %v1079
        %v1574 = vpack.c.b16 %v1093, %v1080
        %v1575 = vpack.c.b16 %v1094, %v1081
        %v1576 = vpack.c.b16 %v1095, %v1082
        %v1577 = vpack.c.b16 %v1096, %v1083
        %v1578 = vpack.c.b16 %v1097, %v1084
        %v1579 = vpack.c.b16 %v1098, %v1085
        %v1580 = vpack.c.b16 %v1099, %v1086
        %v1581 = vpack.c.b16 %v1113, %v1100
        %v1582 = vpack.c.b16 %v1114, %v1101
        %v1583 = vpack.c.b16 %v1115, %v1102
        %v1584 = vpack.c.b16 %v1116, %v1103
        %v1585 = vpack.c.b16 %v1117, %v1104
        %v1586 = vpack.c.b16 %v1118, %v1105
        %v1587 = vpack.c.b16 %v1119, %v1106
        %v1588 = vpack.c.b16 %v1120, %v1107
        %v1589 = vpack.c.b16 %v1121, %v1108
        %v1590 = vpack.c.b16 %v1122, %v1109
        %v1591 = vpack.c.b16 %v1123, %v1110
        %v1592 = vpack.c.b16 %v1124, %v1111
        %v1593 = vpack.c.b16 %v1125, %v1112
        %v1594 = vpack.c.b16 %v1139, %v1126
        %v1595 = vpack.c.b16 %v1140, %v1127
        %v1596 = vpack.c.b16 %v1141, %v1128
        %v1597 = vpack.c.b16 %v1142, %v1129
        %v1598 = vpack.c.b16 %v1143, %v1130
        %v1599 = vpack.c.b16 %v1144, %v1131
        %v1600 = vpack.c.b16 %v1145, %v1132
        %v1601 = vpack.c.b16 %v1146, %v1133
        %v1602 = vpack.c.b16 %v1147, %v1134
        %v1603 = vpack.c.b16 %v1148, %v1135
        %v1604 = vpack.c.b16 %v1149, %v1136
        %v1605 = vpack.c.b16 %v1150, %v1137
        %v1606 = vpack.c.b16 %v1151, %v1138
        %v1607 = vpack.c.b16 %v1165, %v1152
        %v1608 = vpack.c.b16 %v1166, %v1153
        %v1609 = vpack.c.b16 %v1167, %v1154
        %v1610 = vpack.c.b16 %v1168, %v1155
        %v1611 = vpack.c.b16 %v1169, %v1156
        %v1612 = vpack.c.b16 %v1170, %v1157
        %v1613 = vpack.c.b16 %v1171, %v1158
        %v1614 = vpack.c.b16 %v1172, %v1159
        %v1615 = vpack.c.b16 %v1173, %v1160
        %v1616 = vpack.c.b16 %v1174, %v1161
        %v1617 = vpack.c.b16 %v1175, %v1162
        %v1618 = vpack.c.b16 %v1176, %v1163
        %v1619 = vpack.c.b16 %v1177, %v1164
        %v1620 = vpack.c.b16 %v1191, %v1178
        %v1621 = vpack.c.b16 %v1192, %v1179
        %v1622 = vpack.c.b16 %v1193, %v1180
        %v1623 = vpack.c.b16 %v1194, %v1181
        %v1624 = vpack.c.b16 %v1195, %v1182
        %v1625 = vpack.c.b16 %v1196, %v1183
        %v1626 = vpack.c.b16 %v1197, %v1184
        %v1627 = vpack.c.b16 %v1198, %v1185
        %v1628 = vpack.c.b16 %v1199, %v1186
        %v1629 = vpack.c.b16 %v1200, %v1187
        %v1630 = vpack.c.b16 %v1201, %v1188
        %v1631 = vpack.c.b16 %v1202, %v1189
        %v1632 = vpack.c.b16 %v1203, %v1190
        %v1633 = vpack.c.b16 %v1217, %v1204
        %v1634 = vpack.c.b16 %v1218, %v1205
        %v1635 = vpack.c.b16 %v1219, %v1206
        %v1636 = vpack.c.b16 %v1220, %v1207
        %v1637 = vpack.c.b16 %v1221, %v1208
        %v1638 = vpack.c.b16 %v1222, %v1209
        %v1639 = vpack.c.b16 %v1223, %v1210
        %v1640 = vpack.c.b16 %v1224, %v1211
        %v1641 = vpack.c.b16 %v1225, %v1212
        %v1642 = vpack.c.b16 %v1226, %v1213
        %v1643 = vpack.c.b16 %v1227, %v1214
        %v1644 = vpack.c.b16 %v1228, %v1215
        %v1645 = vpack.c.b16 %v1229, %v1216
        %v1646 = vpack.c.b16 %v1243, %v1230
        %v1647 = vpack.c.b16 %v1244, %v1231
        %v1648 = vpack.c.b16 %v1245, %v1232
        %v1649 = vpack.c.b16 %v1246, %v1233
        %v1650 = vpack.c.b16 %v1247, %v1234
        %v1651 = vpack.c.b16 %v1248, %v1235
        %v1652 = vpack.c.b16 %v1249, %v1236
        %v1653 = vpack.c.b16 %v1250, %v1237
        %v1654 = vpack.c.b16 %v1251, %v1238
        %v1655 = vpack.c.b16 %v1252, %v1239
        %v1656 = vpack.c.b16 %v1253, %v1240
        %v1657 = vpack.c.b16 %v1254, %v1241
        %v1658 = vpack.c.b16 %v1255, %v1242
        %v1659 = vpack.c.b16 %v1269, %v1256
        %v1660 = vpack.c.b16 %v1270, %v1257
        %v1661 = vpack.c.b16 %v1271, %v1258
        %v1662 = vpack.c.b16 %v1272, %v1259
        %v1663 = vpack.c.b16 %v1273, %v1260
        %v1664 = vpack.c.b16 %v1274, %v1261
        %v1665 = vpack.c.b16 %v1275, %v1262
        %v1666 = vpack.c.b16 %v1276, %v1263
        %v1667 = vpack.c.b16 %v1277, %v1264
        %v1668 = vpack.c.b16 %v1278, %v1265
        %v1669 = vpack.c.b16 %v1279, %v1266
        %v1670 = vpack.c.b16 %v1280, %v1267
        %v1671 = vpack.c.b16 %v1281, %v1268
        %v1672 = vpack.c.b16 %v1295, %v1282
        %v1673 = vpack.c.b16 %v1296, %v1283
        %v1674 = vpack.c.b16 %v1297, %v1284
        %v1675 = vpack.c.b16 %v1298, %v1285
        %v1676 = vpack.c.b16 %v1299, %v1286
        %v1677 = vpack.c.b16 %v1300, %v1287
        %v1678 = vpack.c.b16 %v1301, %v1288
        %v1679 = vpack.c.b16 %v1302, %v1289
        %v1680 = vpack.c.b16 %v1303, %v1290
        %v1681 = vpack.c.b16 %v1304, %v1291
        %v1682 = vpack.c.b16 %v1305, %v1292
        %v1683 = vpack.c.b16 %v1306, %v1293
        %v1684 = vpack.c.b16 %v1307, %v1294
        %v1685 = vpack.c.b16 %v1321, %v1308
        %v1686 = vpack.c.b16 %v1322, %v1309
        %v1687 = vpack.c.b16 %v1323, %v1310
        %v1688 = vpack.c.b16 %v1324, %v1311
        %v1689 = vpack.c.b16 %v1325, %v1312
        %v1690 = vpack.c.b16 %v1326, %v1313
        %v1691 = vpack.c.b16 %v1327, %v1314
        %v1692 = vpack.c.b16 %v1328, %v1315
        %v1693 = vpack.c.b16 %v1329, %v1316
        %v1694 = vpack.c.b16 %v1330, %v1317
        %v1695 = vpack.c.b16 %v1331, %v1318
        %v1696 = vpack.c.b16 %v1332, %v1319
        %v1697 = vpack.c.b16 %v1333, %v1320
        %v1698 = vpack.c.b16 %v1347, %v1334
        %v1699 = vpack.c.b16 %v1348, %v1335
        %v1700 = vpack.c.b16 %v1349, %v1336
        %v1701 = vpack.c.b16 %v1350, %v1337
        %v1702 = vpack.c.b16 %v1351, %v1338
        %v1703 = vpack.c.b16 %v1352, %v1339
        %v1704 = vpack.c.b16 %v1353, %v1340
        %v1705 = vpack.c.b16 %v1354, %v1341
        %v1706 = vpack.c.b16 %v1355, %v1342
        %v1707 = vpack.c.b16 %v1356, %v1343
        %v1708 = vpack.c.b16 %v1357, %v1344
        %v1709 = vpack.c.b16 %v1358, %v1345
        %v1710 = vpack.c.b16 %v1359, %v1346
        %v1711 = vpack.c.b16 %v1373, %v1360
        %v1712 = vpack.c.b16 %v1374, %v1361
        %v1713 = vpack.c.b16 %v1375, %v1362
        %v1714 = vpack.c.b16 %v1376, %v1363
        %v1715 = vpack.c.b16 %v1377, %v1364
        %v1716 = vpack.c.b16 %v1378, %v1365
        %v1717 = vpack.c.b16 %v1379, %v1366
        %v1718 = vpack.c.b16 %v1380, %v1367
        %v1719 = vpack.c.b16 %v1381, %v1368
        %v1720 = vpack.c.b16 %v1382, %v1369
        %v1721 = vpack.c.b16 %v1383, %v1370
        %v1722 = vpack.c.b16 %v1384, %v1371
        %v1723 = vpack.c.b16 %v1385, %v1372
        %v1724 = vpack.c.b16 %v1399, %v1386
        %v1725 = vpack.c.b16 %v1400, %v1387
        %v1726 = vpack.c.b16 %v1401, %v1388
        %v1727 = vpack.c.b16 %v1402, %v1389
        %v1728 = vpack.c.b16 %v1403, %v1390
        %v1729 = vpack.c.b16 %v1404, %v1391
        %v1730 = vpack.c.b16 %v1405, %v1392
        %v1731 = vpack.c.b16 %v1406, %v1393
        %v1732 = vpack.c.b16 %v1407, %v1394
        %v1733 = vpack.c.b16 %v1408, %v1395
        %v1734 = vpack.c.b16 %v1409, %v1396
        %v1735 = vpack.c.b16 %v1410, %v1397
        %v1736 = vpack.c.b16 %v1411, %v1398
        %v1737 = vpack.c.b16 %v1425, %v1412
        %v1738 = vpack.c.b16 %v1426, %v1413
        %v1739 = vpack.c.b16 %v1427, %v1414
        %v1740 = vpack.c.b16 %v1428, %v1415
        %v1741 = vpack.c.b16 %v1429, %v1416
        %v1742 = vpack.c.b16 %v1430, %v1417
        %v1743 = vpack.c.b16 %v1431, %v1418
        %v1744 = vpack.c.b16 %v1432, %v1419
        %v1745 = vpack.c.b16 %v1433, %v1420
        %v1746 = vpack.c.b16 %v1434, %v1421
        %v1747 = vpack.c.b16 %v1435, %v1422
        %v1748 = vpack.c.b16 %v1436, %v1423
        %v1749 = vpack.c.b16 %v1437, %v1424
        %v1750 = vpack.c.b16 %v1451, %v1438
        %v1751 = vpack.c.b16 %v1452, %v1439
        %v1752 = vpack.c.b16 %v1453, %v1440
        %v1753 = vpack.c.b16 %v1454, %v1441
        %v1754 = vpack.c.b16 %v1455, %v1442
        %v1755 = vpack.c.b16 %v1456, %v1443
        %v1756 = vpack.c.b16 %v1457, %v1444
        %v1757 = vpack.c.b16 %v1458, %v1445
        %v1758 = vpack.c.b16 %v1459, %v1446
        %v1759 = vpack.c.b16 %v1460, %v1447
        %v1760 = vpack.c.b16 %v1461, %v1448
        %v1761 = vpack.c.b16 %v1462, %v1449
        %v1762 = vpack.c.b16 %v1463, %v1450
        %v1763 = vpack.c.b16 %v1477, %v1464
        %v1764 = vpack.c.b16 %v1478, %v1465
        %v1765 = vpack.c.b16 %v1479, %v1466
        %v1766 = vpack.c.b16 %v1480, %v1467
        %v1767 = vpack.c.b16 %v1481, %v1468
        %v1768 = vpack.c.b16 %v1482, %v1469
        %v1769 = vpack.c.b16 %v1483, %v1470
        %v1770 = vpack.c.b16 %v1484, %v1471
        %v1771 = vpack.c.b16 %v1485, %v1472
        %v1772 = vpack.c.b16 %v1486, %v1473
        %v1773 = vpack.c.b16 %v1487, %v1474
        %v1774 = vpack.c.b16 %v1488, %v1475
        %v1775 = vpack.c.b16 %v1489, %v1476
        %v1776 = vpack.c.b16 %v1503, %v1490
        %v1777 = vpack.c.b16 %v1504, %v1491
        %v1778 = vpack.c.b16 %v1505, %v1492
        %v1779 = vpack.c.b16 %v1506, %v1493
        %v1780 = vpack.c.b16 %v1507, %v1494
        %v1781 = vpack.c.b16 %v1508, %v1495
        %v1782 = vpack.c.b16 %v1509, %v1496
        %v1783 = vpack.c.b16 %v1510, %v1497
        %v1784 = vpack.c.b16 %v1511, %v1498
        %v1785 = vpack.c.b16 %v1512, %v1499
        %v1786 = vpack.c.b16 %v1513, %v1500
        %v1787 = vpack.c.b16 %v1514, %v1501
        %v1788 = vpack.c.b16 %v1515, %v1502
        %v1789 = vpack.c.b16 %v1529, %v1516
        %v1790 = vpack.c.b16 %v1530, %v1517
        %v1791 = vpack.c.b16 %v1531, %v1518
        %v1792 = vpack.c.b16 %v1532, %v1519
        %v1793 = vpack.c.b16 %v1533, %v1520
        %v1794 = vpack.c.b16 %v1534, %v1521
        %v1795 = vpack.c.b16 %v1535, %v1522
        %v1796 = vpack.c.b16 %v1536, %v1523
        %v1797 = vpack.c.b16 %v1537, %v1524
        %v1798 = vpack.c.b16 %v1538, %v1525
        %v1799 = vpack.c.b16 %v1539, %v1526
        %v1800 = vpack.c.b16 %v1540, %v1527
        %v1801 = vpack.c.b16 %v1541, %v1528
        %v2242 = vunpack.c.l.b16 %v535
        %v2243 = vunpack.c.l.b16 %v536
        %v2244 = vunpack.c.l.b16 %v537
        %v2245 = vunpack.c.l.b16 %v538
        %v2246 = vunpack.c.l.b16 %v539
        %v2247 = vunpack.c.l.b16 %v540
        %v2248 = vunpack.c.l.b16 %v541
        %v2249 = vunpack.c.l.b16 %v542
        %v2250 = vunpack.c.l.b16 %v543
        %v2251 = vunpack.c.l.b16 %v544
        %v2252 = vunpack.c.l.b16 %v545
        %v2253 = vunpack.c.l.b16 %v546
        %v2254 = vunpack.c.l.b16 %v547
        %v2255 = vunpack.c.l.b16 %v548
        %v2256 = vunpack.c.l.b16 %v549
        %v2257 = vunpack.c.l.b16 %v550
        %v2258 = vunpack.c.l.b16 %v551
        %v2259 = vunpack.c.l.b16 %v552
        %v2260 = vunpack.c.l.b16 %v553
        %v2261 = vunpack.c.l.b16 %v554
        %v2262 = vunpack.c.l.b16 %v555
        %v2263 = vunpack.c.l.b16 %v556
        %v2264 = vunpack.c.l.b16 %v557
        %v2265 = vunpack.c.l.b16 %v558
        %v2266 = vunpack.c.l.b16 %v559
        %v2267 = vunpack.c.l.b16 %v560
        %v2268 = vunpack.c.l.b16 %v561
        %v2269 = vunpack.c.l.b16 %v562
        %v2270 = vunpack.c.l.b16 %v563
        %v2271 = vunpack.c.l.b16 %v564
        %v2272 = vunpack.c.l.b16 %v565
        %v2273 = vunpack.c.l.b16 %v566
        %v2274 = vunpack.c.l.b16 %v567
        %v2275 = vunpack.c.l.b16 %v568
        %v2276 = vunpack.c.l.b16 %v569
        %v2277 = vunpack.c.l.b16 %v570
        %v2278 = vunpack.c.l.b16 %v571
        %v2279 = vunpack.c.l.b16 %v572
        %v2280 = vunpack.c.l.b16 %v573
        %v2281 = vunpack.c.l.b16 %v574
        %v2282 = vunpack.c.l.b16 %v575
        %v2283 = vunpack.c.l.b16 %v576
        %v2284 = vunpack.c.l.b16 %v577
        %v2285 = vunpack.c.l.b16 %v578
        %v2286 = vunpack.c.l.b16 %v579
        %v2287 = vunpack.c.l.b16 %v580
        %v2288 = vunpack.c.l.b16 %v581
        %v2289 = vunpack.c.l.b16 %v582
        %v2290 = vunpack.c.l.b16 %v583
        %v2291 = vunpack.c.l.b16 %v584
        %v2292 = vunpack.c.l.b16 %v585
        %v2293 = vunpack.c.l.b16 %v586
        %v2294 = vunpack.c.l.b16 %v587
        %v2295 = vunpack.c.l.b16 %v588
        %v2296 = vunpack.c.l.b16 %v589
        %v2297 = vunpack.c.l.b16 %v590
        %v2298 = vunpack.c.l.b16 %v591
        %v2299 = vunpack.c.l.b16 %v592
        %v2300 = vunpack.c.l.b16 %v593
        %v2301 = vunpack.c.l.b16 %v594
        %v2302 = vunpack.c.l.b16 %v595
        %v2303 = vunpack.c.l.b16 %v596
        %v2304 = vunpack.c.l.b16 %v597
        %v2305 = vunpack.c.l.b16 %v598
        %v2306 = vunpack.c.l.b16 %v599
        %v2307 = vunpack.c.l.b16 %v600
        %v2308 = vunpack.c.l.b16 %v601
        %v2309 = vunpack.c.l.b16 %v602
        %v2310 = vunpack.c.l.b16 %v603
        %v2311 = vunpack.c.l.b16 %v604
        %v2312 = vunpack.c.l.b16 %v605
        %v2313 = vunpack.c.l.b16 %v606
        %v2314 = vunpack.c.l.b16 %v607
        %v2315 = vunpack.c.l.b16 %v608
        %v2316 = vunpack.c.l.b16 %v609
        %v2317 = vunpack.c.l.b16 %v610
        %v2318 = vunpack.c.l.b16 %v611
        %v2319 = vunpack.c.l.b16 %v612
        %v2320 = vunpack.c.l.b16 %v613
        %v2321 = vunpack.c.l.b16 %v614
        %v2322 = vunpack.c.l.b16 %v615
        %v2323 = vunpack.c.l.b16 %v616
        %v2324 = vunpack.c.l.b16 %v617
        %v2325 = vunpack.c.l.b16 %v618
        %v2326 = vunpack.c.l.b16 %v619
        %v2327 = vunpack.c.l.b16 %v620
        %v2328 = vunpack.c.l.b16 %v621
        %v2329 = vunpack.c.l.b16 %v622
        %v2330 = vunpack.c.l.b16 %v623
        %v2331 = vunpack.c.l.b16 %v624
        %v2332 = vunpack.c.l.b16 %v625
        %v2333 = vunpack.c.l.b16 %v626
        %v2334 = vunpack.c.l.b16 %v627
        %v2335 = vunpack.c.l.b16 %v628
        %v2336 = vunpack.c.l.b16 %v629
        %v2337 = vunpack.c.l.b16 %v630
        %v2338 = vunpack.c.l.b16 %v631
        %v2339 = vunpack.c.l.b16 %v632
        %v2340 = vunpack.c.l.b16 %v633
        %v2341 = vunpack.c.l.b16 %v634
        %v2342 = vunpack.c.l.b16 %v635
        %v2343 = vunpack.c.l.b16 %v636
        %v2344 = vunpack.c.l.b16 %v637
        %v2345 = vunpack.c.l.b16 %v638
        %v2346 = vunpack.c.l.b16 %v639
        %v2347 = vunpack.c.l.b16 %v640
        %v2348 = vunpack.c.l.b16 %v641
        %v2349 = vunpack.c.l.b16 %v642
        %v2350 = vunpack.c.l.b16 %v643
        %v2351 = vunpack.c.l.b16 %v644
        %v2352 = vunpack.c.l.b16 %v645
        %v2353 = vunpack.c.l.b16 %v646
        %v2354 = vunpack.c.l.b16 %v647
        %v2355 = vunpack.c.l.b16 %v648
        %v2356 = vunpack.c.l.b16 %v649
        %v2357 = vunpack.c.l.b16 %v650
        %v2358 = vunpack.c.l.b16 %v651
        %v2359 = vunpack.c.l.b16 %v652
        %v2360 = vunpack.c.l.b16 %v653
        %v2361 = vunpack.c.l.b16 %v654
        %v2362 = vunpack.c.l.b16 %v655
        %v2363 = vunpack.c.l.b16 %v656
        %v2364 = vunpack.c.l.b16 %v657
        %v2365 = vunpack.c.l.b16 %v658
        %v2366 = vunpack.c.l.b16 %v659
        %v2367 = vunpack.c.l.b16 %v660
        %v2368 = vunpack.c.l.b16 %v661
        %v2369 = vunpack.c.l.b16 %v662
        %v2370 = vunpack.c.l.b16 %v663
        %v2371 = vunpack.c.l.b16 %v664
        %v2372 = vunpack.c.l.b16 %v665
        %v2373 = vunpack.c.l.b16 %v666
        %v2374 = vunpack.c.l.b16 %v667
        %v2375 = vunpack.c.l.b16 %v668
        %v2376 = vunpack.c.l.b16 %v669
        %v2377 = vunpack.c.l.b16 %v670
        %v2378 = vunpack.c.l.b16 %v671
        %v2379 = vunpack.c.l.b16 %v672
        %v2380 = vunpack.c.l.b16 %v673
        %v2381 = vunpack.c.l.b16 %v674
        %v2382 = vunpack.c.l.b16 %v675
        %v2383 = vunpack.c.l.b16 %v676
        %v2384 = vunpack.c.l.b16 %v677
        %v2385 = vunpack.c.l.b16 %v678
        %v2386 = vunpack.c.l.b16 %v679
        %v2387 = vunpack.c.l.b16 %v680
        %v2388 = vunpack.c.l.b16 %v681
        %v2389 = vunpack.c.l.b16 %v682
        %v2390 = vunpack.c.l.b16 %v683
        %v2391 = vunpack.c.l.b16 %v684
        %v2392 = vunpack.c.l.b16 %v685
        %v2393 = vunpack.c.l.b16 %v686
        %v2394 = vunpack.c.l.b16 %v687
        %v2395 = vunpack.c.l.b16 %v688
        %v2396 = vunpack.c.l.b16 %v689
        %v2397 = vunpack.c.l.b16 %v690
        %v2398 = vunpack.c.l.b16 %v691
        %v2399 = vunpack.c.l.b16 %v692
        %v2400 = vunpack.c.l.b16 %v693
        %v2401 = vunpack.c.l.b16 %v694
        %v2402 = vunpack.c.l.b16 %v695
        %v2403 = vunpack.c.l.b16 %v696
        %v2404 = vunpack.c.l.b16 %v697
        %v2405 = vunpack.c.l.b16 %v698
        %v2406 = vunpack.c.l.b16 %v699
        %v2407 = vunpack.c.l.b16 %v700
        %v2408 = vunpack.c.l.b16 %v701
        %v2409 = vunpack.c.l.b16 %v702
        %v2410 = vunpack.c.l.b16 %v703
        %v2411 = vunpack.c.l.b16 %v704
        %v2412 = vunpack.c.l.b16 %v705
        %v2413 = vunpack.c.l.b16 %v706
        %v2414 = vunpack.c.l.b16 %v707
        %v2415 = vunpack.c.l.b16 %v708
        %v2416 = vunpack.c.l.b16 %v709
        %v2417 = vunpack.c.l.b16 %v710
        %v2418 = vunpack.c.l.b16 %v711
        %v2419 = vunpack.c.l.b16 %v712
        %v2420 = vunpack.c.l.b16 %v713
        %v2421 = vunpack.c.l.b16 %v714
        %v2422 = vunpack.c.l.b16 %v715
        %v2423 = vunpack.c.l.b16 %v716
        %v2424 = vunpack.c.l.b16 %v717
        %v2425 = vunpack.c.l.b16 %v718
        %v2426 = vunpack.c.l.b16 %v719
        %v2427 = vunpack.c.l.b16 %v720
        %v2428 = vunpack.c.l.b16 %v721
        %v2429 = vunpack.c.l.b16 %v722
        %v2430 = vunpack.c.l.b16 %v723
        %v2431 = vunpack.c.l.b16 %v724
        %v2432 = vunpack.c.l.b16 %v725
        %v2433 = vunpack.c.l.b16 %v726
        %v2434 = vunpack.c.l.b16 %v727
        %v2435 = vunpack.c.l.b16 %v728
        %v2436 = vunpack.c.l.b16 %v729
        %v2437 = vunpack.c.l.b16 %v730
        %v2438 = vunpack.c.l.b16 %v731
        %v2439 = vunpack.c.l.b16 %v732
        %v2440 = vunpack.c.l.b16 %v733
        %v2441 = vunpack.c.l.b16 %v734
        %v2442 = vpack.c.b16 %v2243, %v2242
        %v2443 = vpack.c.b16 %v2245, %v2244
        %v2444 = vpack.c.b16 %v2247, %v2246
        %v2445 = vpack.c.b16 %v2249, %v2248
        %v2446 = vpack.c.b16 %v2251, %v2250
        %v2447 = vpack.c.b16 %v2253, %v2252
        %v2448 = vpack.c.b16 %v2255, %v2254
        %v2449 = vpack.c.b16 %v2257, %v2256
        %v2450 = vpack.c.b16 %v2259, %v2258
        %v2451 = vpack.c.b16 %v2261, %v2260
        %v2452 = vpack.c.b16 %v2263, %v2262
        %v2453 = vpack.c.b16 %v2265, %v2264
        %v2454 = vpack.c.b16 %v2267, %v2266
        %v2455 = vpack.c.b16 %v2269, %v2268
        %v2456 = vpack.c.b16 %v2271, %v2270
        %v2457 = vpack.c.b16 %v2273, %v2272
        %v2458 = vpack.c.b16 %v2275, %v2274
        %v2459 = vpack.c.b16 %v2277, %v2276
        %v2460 = vpack.c.b16 %v2279, %v2278
        %v2461 = vpack.c.b16 %v2281, %v2280
        %v2462 = vpack.c.b16 %v2283, %v2282
        %v2463 = vpack.c.b16 %v2285, %v2284
        %v2464 = vpack.c.b16 %v2287, %v2286
        %v2465 = vpack.c.b16 %v2289, %v2288
        %v2466 = vpack.c.b16 %v2291, %v2290
        %v2467 = vpack.c.b16 %v2293, %v2292
        %v2468 = vpack.c.b16 %v2295, %v2294
        %v2469 = vpack.c.b16 %v2297, %v2296
        %v2470 = vpack.c.b16 %v2299, %v2298
        %v2471 = vpack.c.b16 %v2301, %v2300
        %v2472 = vpack.c.b16 %v2303, %v2302
        %v2473 = vpack.c.b16 %v2305, %v2304
        %v2474 = vpack.c.b16 %v2307, %v2306
        %v2475 = vpack.c.b16 %v2309, %v2308
        %v2476 = vpack.c.b16 %v2311, %v2310
        %v2477 = vpack.c.b16 %v2313, %v2312
        %v2478 = vpack.c.b16 %v2315, %v2314
        %v2479 = vpack.c.b16 %v2317, %v2316
        %v2480 = vpack.c.b16 %v2319, %v2318
        %v2481 = vpack.c.b16 %v2321, %v2320
        %v2482 = vpack.c.b16 %v2323, %v2322
        %v2483 = vpack.c.b16 %v2325, %v2324
        %v2484 = vpack.c.b16 %v2327, %v2326
        %v2485 = vpack.c.b16 %v2329, %v2328
        %v2486 = vpack.c.b16 %v2331, %v2330
        %v2487 = vpack.c.b16 %v2333, %v2332
        %v2488 = vpack.c.b16 %v2335, %v2334
        %v2489 = vpack.c.b16 %v2337, %v2336
        %v2490 = vpack.c.b16 %v2339, %v2338
        %v2491 = vpack.c.b16 %v2341, %v2340
        %v2492 = vpack.c.b16 %v2343, %v2342
        %v2493 = vpack.c.b16 %v2345, %v2344
        %v2494 = vpack.c.b16 %v2347, %v2346
        %v2495 = vpack.c.b16 %v2349, %v2348
        %v2496 = vpack.c.b16 %v2351, %v2350
        %v2497 = vpack.c.b16 %v2353, %v2352
        %v2498 = vpack.c.b16 %v2355, %v2354
        %v2499 = vpack.c.b16 %v2357, %v2356
        %v2500 = vpack.c.b16 %v2359, %v2358
        %v2501 = vpack.c.b16 %v2361, %v2360
        %v2502 = vpack.c.b16 %v2363, %v2362
        %v2503 = vpack.c.b16 %v2365, %v2364
        %v2504 = vpack.c.b16 %v2367, %v2366
        %v2505 = vpack.c.b16 %v2369, %v2368
        %v2506 = vpack.c.b16 %v2371, %v2370
        %v2507 = vpack.c.b16 %v2373, %v2372
        %v2508 = vpack.c.b16 %v2375, %v2374
        %v2509 = vpack.c.b16 %v2377, %v2376
        %v2510 = vpack.c.b16 %v2379, %v2378
        %v2511 = vpack.c.b16 %v2381, %v2380
        %v2512 = vpack.c.b16 %v2383, %v2382
        %v2513 = vpack.c.b16 %v2385, %v2384
        %v2514 = vpack.c.b16 %v2387, %v2386
        %v2515 = vpack.c.b16 %v2389, %v2388
        %v2516 = vpack.c.b16 %v2391, %v2390
        %v2517 = vpack.c.b16 %v2393, %v2392
        %v2518 = vpack.c.b16 %v2395, %v2394
        %v2519 = vpack.c.b16 %v2397, %v2396
        %v2520 = vpack.c.b16 %v2399, %v2398
        %v2521 = vpack.c.b16 %v2401, %v2400
        %v2522 = vpack.c.b16 %v2403, %v2402
        %v2523 = vpack.c.b16 %v2405, %v2404
        %v2524 = vpack.c.b16 %v2407, %v2406
        %v2525 = vpack.c.b16 %v2409, %v2408
        %v2526 = vpack.c.b16 %v2411, %v2410
        %v2527 = vpack.c.b16 %v2413, %v2412
        %v2528 = vpack.c.b16 %v2415, %v2414
        %v2529 = vpack.c.b16 %v2417, %v2416
        %v2530 = vpack.c.b16 %v2419, %v2418
        %v2531 = vpack.c.b16 %v2421, %v2420
        %v2532 = vpack.c.b16 %v2423, %v2422
        %v2533 = vpack.c.b16 %v2425, %v2424
        %v2534 = vpack.c.b16 %v2427, %v2426
        %v2535 = vpack.c.b16 %v2429, %v2428
        %v2536 = vpack.c.b16 %v2431, %v2430
        %v2537 = vpack.c.b16 %v2433, %v2432
        %v2538 = vpack.c.b16 %v2435, %v2434
        %v2539 = vpack.c.b16 %v2437, %v2436
        %v2540 = vpack.c.b16 %v2439, %v2438
        %v2541 = vpack.c.b16 %v2441, %v2440
        %vm2642 = vcmask 523264
        %v2644 = vsel %vm2642, %v1554, 0
        %v2647 = vsel %vm2642, %v1567, 0
        %v2650 = vsel %vm2642, %v1580, 0
        %v2653 = vsel %vm2642, %v1593, 0
        %v2656 = vsel %vm2642, %v1606, 0
        %v2659 = vsel %vm2642, %v1619, 0
        %v2662 = vsel %vm2642, %v1632, 0
        %v2665 = vsel %vm2642, %v1645, 0
        %v2668 = vsel %vm2642, %v1658, 0
        %v2671 = vsel %vm2642, %v1671, 0
        %v2674 = vsel %vm2642, %v1684, 0
        %v2677 = vsel %vm2642, %v1697, 0
        %v2680 = vsel %vm2642, %v1710, 0
        %v2683 = vsel %vm2642, %v1723, 0
        %v2686 = vsel %vm2642, %v1736, 0
        %v2689 = vsel %vm2642, %v1749, 0
        %v2692 = vsel %vm2642, %v1762, 0
        %v2695 = vsel %vm2642, %v1775, 0
        %v2698 = vsel %vm2642, %v1788, 0
        %v2701 = vsel %vm2642, %v1801, 0
        %2703 = vmatprep.subr.bf16.mxu0 0
        %2704 = vmatpush1.bf16.msra.mxu0 %v2442
        %2705 = vmatprep.subr.bf16.mxu0 0
        %2706 = vmatpush1.bf16.msra.mxu0 %v2443
        %2707 = vmatprep.subr.bf16.mxu0 0
        %2708 = vmatpush1.bf16.msra.mxu0 %v2444
        %2709 = vmatprep.subr.bf16.mxu0 0
        %2710 = vmatpush1.bf16.msra.mxu0 %v2445
        %2711 = vmatprep.subr.bf16.mxu0 0
        %2712 = vmatpush1.bf16.msra.mxu0 %v2446
        %2713 = vmatprep.subr.bf16.mxu0 0
        %2714 = vmatpush1.bf16.msra.mxu0 %v2447
        %2715 = vmatprep.subr.bf16.mxu0 0
        %2716 = vmatpush1.bf16.msra.mxu0 %v2448
        %2717 = vmatprep.subr.bf16.mxu0 0
        %2718 = vmatpush1.bf16.msra.mxu0 %v2449
        %2719 = vmatprep.subr.bf16.mxu0 0
        %2720 = vmatpush1.bf16.msra.mxu0 %v2450
        %2721 = vmatprep.subr.bf16.mxu0 0
        %2722 = vmatpush1.bf16.msra.mxu0 %v2451
        %2723 = vmatprep.subr.bf16.mxu0 0
        %2724 = vmatpush1.bf16.msra.mxu0 %v2452
        %2725 = vmatprep.subr.bf16.mxu0 0
        %2726 = vmatpush1.bf16.msra.mxu0 %v2453
        %2727 = vmatprep.subr.bf16.mxu0 0
        %2728 = vmatpush1.bf16.msra.mxu0 %v2454
        %2729 = vmatprep.subr.bf16.mxu0 0
        %2730 = vmatpush1.bf16.msra.mxu0 %v2455
        %2731 = vmatprep.subr.bf16.mxu0 0
        %2732 = vmatpush1.bf16.msra.mxu0 %v2456
        %2733 = vmatprep.subr.bf16.mxu0 0
        %2734 = vmatpush1.bf16.msra.mxu0 %v2457
        %2735 = vmatprep.mubr.bf16.mxu0 %v1543
        %2736 = vmatmul.mubr.bf16.gmra.mrb[0].mxu0 %v1542
        %v2737 = vpop.f32.mrb[0].mxu0
        %v2738 = vadd.f32 %v740, %v2737
        %v2739 = vpop.f32.mrb[0].mxu0
        %v2740 = vpop.f32.mrb[0].mxu0
        %v2741 = vadd.f32 %v740, %v2740
        %v2742 = vpop.f32.mrb[0].mxu0
        %2743 = vmatprep.mubr.bf16.mxu0 %v1556
        %2744 = vmatmul.mubr.bf16.gmra.mrb[0].mxu0 %v1555
        %v2745 = vpop.f32.mrb[0].mxu0
        %v2746 = vadd.f32 %v740, %v2745
        %v2747 = vpop.f32.mrb[0].mxu0
        %v2748 = vpop.f32.mrb[0].mxu0
        %v2749 = vadd.f32 %v740, %v2748
        %v2750 = vpop.f32.mrb[0].mxu0
        %2751 = vmatprep.mubr.bf16.mxu0 %v1569
        %2752 = vmatmul.mubr.bf16.gmra.mrb[0].mxu0 %v1568
        %v2753 = vpop.f32.mrb[0].mxu0
        %v2754 = vadd.f32 %v740, %v2753
        %v2755 = vpop.f32.mrb[0].mxu0
        %v2756 = vpop.f32.mrb[0].mxu0
        %v2757 = vadd.f32 %v740, %v2756
        %v2758 = vpop.f32.mrb[0].mxu0
        %2759 = vmatprep.mubr.bf16.mxu0 %v1582
        %2760 = vmatmul.mubr.bf16.gmra.mrb[0].mxu0 %v1581
        %v2761 = vpop.f32.mrb[0].mxu0
        %v2762 = vadd.f32 %v740, %v2761
        %v2763 = vpop.f32.mrb[0].mxu0
        %v2764 = vpop.f32.mrb[0].mxu0
        %v2765 = vadd.f32 %v740, %v2764
        %v2766 = vpop.f32.mrb[0].mxu0
        %2767 = vmatprep.mubr.bf16.mxu0 %v1595
        %2768 = vmatmul.mubr.bf16.gmra.mrb[0].mxu0 %v1594
        %v2769 = vpop.f32.mrb[0].mxu0
        %v2770 = vadd.f32 %v740, %v2769
        %v2771 = vpop.f32.mrb[0].mxu0
        %v2772 = vpop.f32.mrb[0].mxu0
        %v2773 = vadd.f32 %v740, %v2772
        %v2774 = vpop.f32.mrb[0].mxu0
        %2775 = vmatprep.mubr.bf16.mxu0 %v1608
        %2776 = vmatmul.mubr.bf16.gmra.mrb[0].mxu0 %v1607
        %v2777 = vpop.f32.mrb[0].mxu0
        %v2778 = vadd.f32 %v740, %v2777
        %v2779 = vpop.f32.mrb[0].mxu0
        %v2780 = vpop.f32.mrb[0].mxu0
        %v2781 = vadd.f32 %v740, %v2780
        %v2782 = vpop.f32.mrb[0].mxu0
        %2783 = vmatprep.mubr.bf16.mxu0 %v1621
        %2784 = vmatmul.mubr.bf16.gmra.mrb[0].mxu0 %v1620
        %v2785 = vpop.f32.mrb[0].mxu0
        %v2786 = vadd.f32 %v740, %v2785
        %v2787 = vpop.f32.mrb[0].mxu0
        %v2788 = vpop.f32.mrb[0].mxu0
        %v2789 = vadd.f32 %v740, %v2788
        %v2790 = vpop.f32.mrb[0].mxu0
        %2791 = vmatprep.mubr.bf16.mxu0 %v1634
        %2792 = vmatmul.mubr.bf16.gmra.mrb[0].mxu0 %v1633
        %v2793 = vpop.f32.mrb[0].mxu0
        %v2794 = vadd.f32 %v740, %v2793
        %v2795 = vpop.f32.mrb[0].mxu0
        %v2796 = vpop.f32.mrb[0].mxu0
        %v2797 = vadd.f32 %v740, %v2796
        %v2798 = vpop.f32.mrb[0].mxu0
        %2799 = vmatprep.mubr.bf16.mxu0 %v1647
        %2800 = vmatmul.mubr.bf16.gmra.mrb[0].mxu0 %v1646
        %v2801 = vpop.f32.mrb[0].mxu0
        %v2802 = vadd.f32 %v740, %v2801
        %v2803 = vpop.f32.mrb[0].mxu0
        %v2804 = vpop.f32.mrb[0].mxu0
        %v2805 = vadd.f32 %v740, %v2804
        %v2806 = vpop.f32.mrb[0].mxu0
        %2807 = vmatprep.mubr.bf16.mxu0 %v1660
        %2808 = vmatmul.mubr.bf16.gmra.mrb[0].mxu0 %v1659
        %v2809 = vpop.f32.mrb[0].mxu0
        %v2810 = vadd.f32 %v740, %v2809
        %v2811 = vpop.f32.mrb[0].mxu0
        %v2812 = vpop.f32.mrb[0].mxu0
        %v2813 = vadd.f32 %v740, %v2812
        %v2814 = vpop.f32.mrb[0].mxu0
        %2815 = vmatprep.mubr.bf16.mxu0 %v1673
        %2816 = vmatmul.mubr.bf16.gmra.mrb[0].mxu0 %v1672
        %v2817 = vpop.f32.mrb[0].mxu0
        %v2818 = vadd.f32 %v740, %v2817
        %v2819 = vpop.f32.mrb[0].mxu0
        %v2820 = vpop.f32.mrb[0].mxu0
        %v2821 = vadd.f32 %v740, %v2820
        %v2822 = vpop.f32.mrb[0].mxu0
        %2823 = vmatprep.mubr.bf16.mxu0 %v1686
        %2824 = vmatmul.mubr.bf16.gmra.mrb[0].mxu0 %v1685
        %v2825 = vpop.f32.mrb[0].mxu0
        %v2826 = vadd.f32 %v740, %v2825
        %v2827 = vpop.f32.mrb[0].mxu0
        %v2828 = vpop.f32.mrb[0].mxu0
        %v2829 = vadd.f32 %v740, %v2828
        %v2830 = vpop.f32.mrb[0].mxu0
        %2831 = vmatprep.mubr.bf16.mxu0 %v1699
        %2832 = vmatmul.mubr.bf16.gmra.mrb[0].mxu0 %v1698
        %v2833 = vpop.f32.mrb[0].mxu0
        %v2834 = vadd.f32 %v740, %v2833
        %v2835 = vpop.f32.mrb[0].mxu0
        %v2836 = vpop.f32.mrb[0].mxu0
        %v2837 = vadd.f32 %v740, %v2836
        %v2838 = vpop.f32.mrb[0].mxu0
        %2839 = vmatprep.mubr.bf16.mxu0 %v1712
        %2840 = vmatmul.mubr.bf16.gmra.mrb[0].mxu0 %v1711
        %v2841 = vpop.f32.mrb[0].mxu0
        %v2842 = vadd.f32 %v740, %v2841
        %v2843 = vpop.f32.mrb[0].mxu0
        %v2844 = vpop.f32.mrb[0].mxu0
        %v2845 = vadd.f32 %v740, %v2844
        %v2846 = vpop.f32.mrb[0].mxu0
        %2847 = vmatprep.mubr.bf16.mxu0 %v1725
        %2848 = vmatmul.mubr.bf16.gmra.mrb[0].mxu0 %v1724
        %v2849 = vpop.f32.mrb[0].mxu0
        %v2850 = vadd.f32 %v740, %v2849
        %v2851 = vpop.f32.mrb[0].mxu0
        %v2852 = vpop.f32.mrb[0].mxu0
        %v2853 = vadd.f32 %v740, %v2852
        %v2854 = vpop.f32.mrb[0].mxu0
        %2855 = vmatprep.mubr.bf16.mxu0 %v1738
        %2856 = vmatmul.mubr.bf16.gmra.mrb[0].mxu0 %v1737
        %v2857 = vpop.f32.mrb[0].mxu0
        %v2858 = vadd.f32 %v740, %v2857
        %v2859 = vpop.f32.mrb[0].mxu0
        %v2860 = vpop.f32.mrb[0].mxu0
        %v2861 = vadd.f32 %v740, %v2860
        %v2862 = vpop.f32.mrb[0].mxu0
        %2863 = vmatprep.mubr.bf16.mxu0 %v1751
        %2864 = vmatmul.mubr.bf16.gmra.mrb[0].mxu0 %v1750
        %v2865 = vpop.f32.mrb[0].mxu0
        %v2866 = vadd.f32 %v740, %v2865
        %v2867 = vpop.f32.mrb[0].mxu0
        %v2868 = vpop.f32.mrb[0].mxu0
        %v2869 = vadd.f32 %v740, %v2868
        %v2870 = vpop.f32.mrb[0].mxu0
        %2871 = vmatprep.mubr.bf16.mxu0 %v1764
        %2872 = vmatmul.mubr.bf16.gmra.mrb[0].mxu0 %v1763
        %v2873 = vpop.f32.mrb[0].mxu0
        %v2874 = vadd.f32 %v740, %v2873
        %v2875 = vpop.f32.mrb[0].mxu0
        %v2876 = vpop.f32.mrb[0].mxu0
        %v2877 = vadd.f32 %v740, %v2876
        %v2878 = vpop.f32.mrb[0].mxu0
        %2879 = vmatprep.mubr.bf16.mxu0 %v1777
        %2880 = vmatmul.mubr.bf16.gmra.mrb[0].mxu0 %v1776
        %v2881 = vpop.f32.mrb[0].mxu0
        %v2882 = vadd.f32 %v740, %v2881
        %v2883 = vpop.f32.mrb[0].mxu0
        %v2884 = vpop.f32.mrb[0].mxu0
        %v2885 = vadd.f32 %v740, %v2884
        %v2886 = vpop.f32.mrb[0].mxu0
        %2887 = vmatprep.mubr.bf16.mxu0 %v1790
        %2888 = vmatmul.mubr.bf16.gmra.mrb[0].mxu0 %v1789
        %v2889 = vpop.f32.mrb[0].mxu0
        %v2890 = vadd.f32 %v740, %v2889
        %v2891 = vpop.f32.mrb[0].mxu0
        %v2892 = vpop.f32.mrb[0].mxu0
        %v2893 = vadd.f32 %v740, %v2892
        %v2894 = vpop.f32.mrb[0].mxu0
        %2895 = vdwg.mxu0
        %2896 = vmatprep.subr.bf16.mxu0 0
        %2897 = vmatpush1.bf16.msra.mxu0 %v2458
        %2898 = vmatprep.subr.bf16.mxu0 0
        %2899 = vmatpush1.bf16.msra.mxu0 %v2459
        %2900 = vmatprep.subr.bf16.mxu0 0
        %2901 = vmatpush1.bf16.msra.mxu0 %v2460
        %2902 = vmatprep.subr.bf16.mxu0 0
        %2903 = vmatpush1.bf16.msra.mxu0 %v2461
        %2904 = vmatprep.subr.bf16.mxu0 0
        %2905 = vmatpush1.bf16.msra.mxu0 %v2462
        %2906 = vmatprep.subr.bf16.mxu0 0
        %2907 = vmatpush1.bf16.msra.mxu0 %v2463
        %2908 = vmatprep.subr.bf16.mxu0 0
        %2909 = vmatpush1.bf16.msra.mxu0 %v2464
        %2910 = vmatprep.subr.bf16.mxu0 0
        %2911 = vmatpush1.bf16.msra.mxu0 %v2465
        %2912 = vmatprep.subr.bf16.mxu0 0
        %2913 = vmatpush1.bf16.msra.mxu0 %v2466
        %2914 = vmatprep.subr.bf16.mxu0 0
        %2915 = vmatpush1.bf16.msra.mxu0 %v2467
        %2916 = vmatprep.subr.bf16.mxu0 0
        %2917 = vmatpush1.bf16.msra.mxu0 %v2468
        %2918 = vmatprep.subr.bf16.mxu0 0
        %2919 = vmatpush1.bf16.msra.mxu0 %v2469
        %2920 = vmatprep.subr.bf16.mxu0 0
        %2921 = vmatpush1.bf16.msra.mxu0 %v2470
        %2922 = vmatprep.subr.bf16.mxu0 0
        %2923 = vmatpush1.bf16.msra.mxu0 %v2471
        %2924 = vmatprep.subr.bf16.mxu0 0
        %2925 = vmatpush1.bf16.msra.mxu0 %v2472
        %2926 = vmatprep.subr.bf16.mxu0 0
        %2927 = vmatpush1.bf16.msra.mxu0 %v2473
        %2928 = vmatprep.mubr.bf16.mxu0 %v1545
        %2929 = vmatmul.mubr.bf16.gmra.mrb[0].mxu0 %v1544
        %v2930 = vpop.f32.mrb[0].mxu0
        %v2931 = vadd.f32 %v2738, %v2930
        %v2932 = vpop.f32.mrb[0].mxu0
        %v2933 = vpop.f32.mrb[0].mxu0
        %v2934 = vadd.f32 %v2741, %v2933
        %v2935 = vpop.f32.mrb[0].mxu0
        %2936 = vmatprep.mubr.bf16.mxu0 %v1558
        %2937 = vmatmul.mubr.bf16.gmra.mrb[0].mxu0 %v1557
        %v2938 = vpop.f32.mrb[0].mxu0
        %v2939 = vadd.f32 %v2746, %v2938
        %v2940 = vpop.f32.mrb[0].mxu0
        %v2941 = vpop.f32.mrb[0].mxu0
        %v2942 = vadd.f32 %v2749, %v2941
        %v2943 = vpop.f32.mrb[0].mxu0
        %2944 = vmatprep.mubr.bf16.mxu0 %v1571
        %2945 = vmatmul.mubr.bf16.gmra.mrb[0].mxu0 %v1570
        %v2946 = vpop.f32.mrb[0].mxu0
        %v2947 = vadd.f32 %v2754, %v2946
        %v2948 = vpop.f32.mrb[0].mxu0
        %v2949 = vpop.f32.mrb[0].mxu0
        %v2950 = vadd.f32 %v2757, %v2949
        %v2951 = vpop.f32.mrb[0].mxu0
        %2952 = vmatprep.mubr.bf16.mxu0 %v1584
        %2953 = vmatmul.mubr.bf16.gmra.mrb[0].mxu0 %v1583
        %v2954 = vpop.f32.mrb[0].mxu0
        %v2955 = vadd.f32 %v2762, %v2954
        %v2956 = vpop.f32.mrb[0].mxu0
        %v2957 = vpop.f32.mrb[0].mxu0
        %v2958 = vadd.f32 %v2765, %v2957
        %v2959 = vpop.f32.mrb[0].mxu0
        %2960 = vmatprep.mubr.bf16.mxu0 %v1597
        %2961 = vmatmul.mubr.bf16.gmra.mrb[0].mxu0 %v1596
        %v2962 = vpop.f32.mrb[0].mxu0
        %v2963 = vadd.f32 %v2770, %v2962
        %v2964 = vpop.f32.mrb[0].mxu0
        %v2965 = vpop.f32.mrb[0].mxu0
        %v2966 = vadd.f32 %v2773, %v2965
        %v2967 = vpop.f32.mrb[0].mxu0
        %2968 = vmatprep.mubr.bf16.mxu0 %v1610
        %2969 = vmatmul.mubr.bf16.gmra.mrb[0].mxu0 %v1609
        %v2970 = vpop.f32.mrb[0].mxu0
        %v2971 = vadd.f32 %v2778, %v2970
        %v2972 = vpop.f32.mrb[0].mxu0
        %v2973 = vpop.f32.mrb[0].mxu0
        %v2974 = vadd.f32 %v2781, %v2973
        %v2975 = vpop.f32.mrb[0].mxu0
        %2976 = vmatprep.mubr.bf16.mxu0 %v1623
        %2977 = vmatmul.mubr.bf16.gmra.mrb[0].mxu0 %v1622
        %v2978 = vpop.f32.mrb[0].mxu0
        %v2979 = vadd.f32 %v2786, %v2978
        %v2980 = vpop.f32.mrb[0].mxu0
        %v2981 = vpop.f32.mrb[0].mxu0
        %v2982 = vadd.f32 %v2789, %v2981
        %v2983 = vpop.f32.mrb[0].mxu0
        %2984 = vmatprep.mubr.bf16.mxu0 %v1636
        %2985 = vmatmul.mubr.bf16.gmra.mrb[0].mxu0 %v1635
        %v2986 = vpop.f32.mrb[0].mxu0
        %v2987 = vadd.f32 %v2794, %v2986
        %v2988 = vpop.f32.mrb[0].mxu0
        %v2989 = vpop.f32.mrb[0].mxu0
        %v2990 = vadd.f32 %v2797, %v2989
        %v2991 = vpop.f32.mrb[0].mxu0
        %2992 = vmatprep.mubr.bf16.mxu0 %v1649
        %2993 = vmatmul.mubr.bf16.gmra.mrb[0].mxu0 %v1648
        %v2994 = vpop.f32.mrb[0].mxu0
        %v2995 = vadd.f32 %v2802, %v2994
        %v2996 = vpop.f32.mrb[0].mxu0
        %v2997 = vpop.f32.mrb[0].mxu0
        %v2998 = vadd.f32 %v2805, %v2997
        %v2999 = vpop.f32.mrb[0].mxu0
        %3000 = vmatprep.mubr.bf16.mxu0 %v1662
        %3001 = vmatmul.mubr.bf16.gmra.mrb[0].mxu0 %v1661
        %v3002 = vpop.f32.mrb[0].mxu0
        %v3003 = vadd.f32 %v2810, %v3002
        %v3004 = vpop.f32.mrb[0].mxu0
        %v3005 = vpop.f32.mrb[0].mxu0
        %v3006 = vadd.f32 %v2813, %v3005
        %v3007 = vpop.f32.mrb[0].mxu0
        %3008 = vmatprep.mubr.bf16.mxu0 %v1675
        %3009 = vmatmul.mubr.bf16.gmra.mrb[0].mxu0 %v1674
        %v3010 = vpop.f32.mrb[0].mxu0
        %v3011 = vadd.f32 %v2818, %v3010
        %v3012 = vpop.f32.mrb[0].mxu0
        %v3013 = vpop.f32.mrb[0].mxu0
        %v3014 = vadd.f32 %v2821, %v3013
        %v3015 = vpop.f32.mrb[0].mxu0
        %3016 = vmatprep.mubr.bf16.mxu0 %v1688
        %3017 = vmatmul.mubr.bf16.gmra.mrb[0].mxu0 %v1687
        %v3018 = vpop.f32.mrb[0].mxu0
        %v3019 = vadd.f32 %v2826, %v3018
        %v3020 = vpop.f32.mrb[0].mxu0
        %v3021 = vpop.f32.mrb[0].mxu0
        %v3022 = vadd.f32 %v2829, %v3021
        %v3023 = vpop.f32.mrb[0].mxu0
        %3024 = vmatprep.mubr.bf16.mxu0 %v1701
        %3025 = vmatmul.mubr.bf16.gmra.mrb[0].mxu0 %v1700
        %v3026 = vpop.f32.mrb[0].mxu0
        %v3027 = vadd.f32 %v2834, %v3026
        %v3028 = vpop.f32.mrb[0].mxu0
        %v3029 = vpop.f32.mrb[0].mxu0
        %v3030 = vadd.f32 %v2837, %v3029
        %v3031 = vpop.f32.mrb[0].mxu0
        %3032 = vmatprep.mubr.bf16.mxu0 %v1714
        %3033 = vmatmul.mubr.bf16.gmra.mrb[0].mxu0 %v1713
        %v3034 = vpop.f32.mrb[0].mxu0
        %v3035 = vadd.f32 %v2842, %v3034
        %v3036 = vpop.f32.mrb[0].mxu0
        %v3037 = vpop.f32.mrb[0].mxu0
        %v3038 = vadd.f32 %v2845, %v3037
        %v3039 = vpop.f32.mrb[0].mxu0
        %3040 = vmatprep.mubr.bf16.mxu0 %v1727
        %3041 = vmatmul.mubr.bf16.gmra.mrb[0].mxu0 %v1726
        %v3042 = vpop.f32.mrb[0].mxu0
        %v3043 = vadd.f32 %v2850, %v3042
        %v3044 = vpop.f32.mrb[0].mxu0
        %v3045 = vpop.f32.mrb[0].mxu0
        %v3046 = vadd.f32 %v2853, %v3045
        %v3047 = vpop.f32.mrb[0].mxu0
        %3048 = vmatprep.mubr.bf16.mxu0 %v1740
        %3049 = vmatmul.mubr.bf16.gmra.mrb[0].mxu0 %v1739
        %v3050 = vpop.f32.mrb[0].mxu0
        %v3051 = vadd.f32 %v2858, %v3050
        %v3052 = vpop.f32.mrb[0].mxu0
        %v3053 = vpop.f32.mrb[0].mxu0
        %v3054 = vadd.f32 %v2861, %v3053
        %v3055 = vpop.f32.mrb[0].mxu0
        %3056 = vmatprep.mubr.bf16.mxu0 %v1753
        %3057 = vmatmul.mubr.bf16.gmra.mrb[0].mxu0 %v1752
        %v3058 = vpop.f32.mrb[0].mxu0
        %v3059 = vadd.f32 %v2866, %v3058
        %v3060 = vpop.f32.mrb[0].mxu0
        %v3061 = vpop.f32.mrb[0].mxu0
        %v3062 = vadd.f32 %v2869, %v3061
        %v3063 = vpop.f32.mrb[0].mxu0
        %3064 = vmatprep.mubr.bf16.mxu0 %v1766
        %3065 = vmatmul.mubr.bf16.gmra.mrb[0].mxu0 %v1765
        %v3066 = vpop.f32.mrb[0].mxu0
        %v3067 = vadd.f32 %v2874, %v3066
        %v3068 = vpop.f32.mrb[0].mxu0
        %v3069 = vpop.f32.mrb[0].mxu0
        %v3070 = vadd.f32 %v2877, %v3069
        %v3071 = vpop.f32.mrb[0].mxu0
        %3072 = vmatprep.mubr.bf16.mxu0 %v1779
        %3073 = vmatmul.mubr.bf16.gmra.mrb[0].mxu0 %v1778
        %v3074 = vpop.f32.mrb[0].mxu0
        %v3075 = vadd.f32 %v2882, %v3074
        %v3076 = vpop.f32.mrb[0].mxu0
        %v3077 = vpop.f32.mrb[0].mxu0
        %v3078 = vadd.f32 %v2885, %v3077
        %v3079 = vpop.f32.mrb[0].mxu0
        %3080 = vmatprep.mubr.bf16.mxu0 %v1792
        %3081 = vmatmul.mubr.bf16.gmra.mrb[0].mxu0 %v1791
        %v3082 = vpop.f32.mrb[0].mxu0
        %v3083 = vadd.f32 %v2890, %v3082
        %v3084 = vpop.f32.mrb[0].mxu0
        %v3085 = vpop.f32.mrb[0].mxu0
        %v3086 = vadd.f32 %v2893, %v3085
        %v3087 = vpop.f32.mrb[0].mxu0
        %3088 = vdwg.mxu0
        %3089 = vmatprep.subr.bf16.mxu0 0
        %3090 = vmatpush1.bf16.msra.mxu0 %v2474
        %3091 = vmatprep.subr.bf16.mxu0 0
        %3092 = vmatpush1.bf16.msra.mxu0 %v2475
        %3093 = vmatprep.subr.bf16.mxu0 0
        %3094 = vmatpush1.bf16.msra.mxu0 %v2476
        %3095 = vmatprep.subr.bf16.mxu0 0
        %3096 = vmatpush1.bf16.msra.mxu0 %v2477
        %3097 = vmatprep.subr.bf16.mxu0 0
        %3098 = vmatpush1.bf16.msra.mxu0 %v2478
        %3099 = vmatprep.subr.bf16.mxu0 0
        %3100 = vmatpush1.bf16.msra.mxu0 %v2479
        %3101 = vmatprep.subr.bf16.mxu0 0
        %3102 = vmatpush1.bf16.msra.mxu0 %v2480
        %3103 = vmatprep.subr.bf16.mxu0 0
        %3104 = vmatpush1.bf16.msra.mxu0 %v2481
        %3105 = vmatprep.subr.bf16.mxu0 0
        %3106 = vmatpush1.bf16.msra.mxu0 %v2482
        %3107 = vmatprep.subr.bf16.mxu0 0
        %3108 = vmatpush1.bf16.msra.mxu0 %v2483
        %3109 = vmatprep.subr.bf16.mxu0 0
        %3110 = vmatpush1.bf16.msra.mxu0 %v2484
        %3111 = vmatprep.subr.bf16.mxu0 0
        %3112 = vmatpush1.bf16.msra.mxu0 %v2485
        %3113 = vmatprep.subr.bf16.mxu0 0
        %3114 = vmatpush1.bf16.msra.mxu0 %v2486
        %3115 = vmatprep.subr.bf16.mxu0 0
        %3116 = vmatpush1.bf16.msra.mxu0 %v2487
        %3117 = vmatprep.subr.bf16.mxu0 0
        %3118 = vmatpush1.bf16.msra.mxu0 %v2488
        %3119 = vmatprep.subr.bf16.mxu0 0
        %3120 = vmatpush1.bf16.msra.mxu0 %v2489
        %3121 = vmatprep.mubr.bf16.mxu0 %v1547
        %3122 = vmatmul.mubr.bf16.gmra.mrb[0].mxu0 %v1546
        %v3123 = vpop.f32.mrb[0].mxu0
        %v3124 = vadd.f32 %v2931, %v3123
        %v3125 = vpop.f32.mrb[0].mxu0
        %v3126 = vpop.f32.mrb[0].mxu0
        %v3127 = vadd.f32 %v2934, %v3126
        %v3128 = vpop.f32.mrb[0].mxu0
        %3129 = vmatprep.mubr.bf16.mxu0 %v1560
        %3130 = vmatmul.mubr.bf16.gmra.mrb[0].mxu0 %v1559
        %v3131 = vpop.f32.mrb[0].mxu0
        %v3132 = vadd.f32 %v2939, %v3131
        %v3133 = vpop.f32.mrb[0].mxu0
        %v3134 = vpop.f32.mrb[0].mxu0
        %v3135 = vadd.f32 %v2942, %v3134
        %v3136 = vpop.f32.mrb[0].mxu0
        %3137 = vmatprep.mubr.bf16.mxu0 %v1573
        %3138 = vmatmul.mubr.bf16.gmra.mrb[0].mxu0 %v1572
        %v3139 = vpop.f32.mrb[0].mxu0
        %v3140 = vadd.f32 %v2947, %v3139
        %v3141 = vpop.f32.mrb[0].mxu0
        %v3142 = vpop.f32.mrb[0].mxu0
        %v3143 = vadd.f32 %v2950, %v3142
        %v3144 = vpop.f32.mrb[0].mxu0
        %3145 = vmatprep.mubr.bf16.mxu0 %v1586
        %3146 = vmatmul.mubr.bf16.gmra.mrb[0].mxu0 %v1585
        %v3147 = vpop.f32.mrb[0].mxu0
        %v3148 = vadd.f32 %v2955, %v3147
        %v3149 = vpop.f32.mrb[0].mxu0
        %v3150 = vpop.f32.mrb[0].mxu0
        %v3151 = vadd.f32 %v2958, %v3150
        %v3152 = vpop.f32.mrb[0].mxu0
        %3153 = vmatprep.mubr.bf16.mxu0 %v1599
        %3154 = vmatmul.mubr.bf16.gmra.mrb[0].mxu0 %v1598
        %v3155 = vpop.f32.mrb[0].mxu0
        %v3156 = vadd.f32 %v2963, %v3155
        %v3157 = vpop.f32.mrb[0].mxu0
        %v3158 = vpop.f32.mrb[0].mxu0
        %v3159 = vadd.f32 %v2966, %v3158
        %v3160 = vpop.f32.mrb[0].mxu0
        %3161 = vmatprep.mubr.bf16.mxu0 %v1612
        %3162 = vmatmul.mubr.bf16.gmra.mrb[0].mxu0 %v1611
        %v3163 = vpop.f32.mrb[0].mxu0
        %v3164 = vadd.f32 %v2971, %v3163
        %v3165 = vpop.f32.mrb[0].mxu0
        %v3166 = vpop.f32.mrb[0].mxu0
        %v3167 = vadd.f32 %v2974, %v3166
        %v3168 = vpop.f32.mrb[0].mxu0
        %3169 = vmatprep.mubr.bf16.mxu0 %v1625
        %3170 = vmatmul.mubr.bf16.gmra.mrb[0].mxu0 %v1624
        %v3171 = vpop.f32.mrb[0].mxu0
        %v3172 = vadd.f32 %v2979, %v3171
        %v3173 = vpop.f32.mrb[0].mxu0
        %v3174 = vpop.f32.mrb[0].mxu0
        %v3175 = vadd.f32 %v2982, %v3174
        %v3176 = vpop.f32.mrb[0].mxu0
        %3177 = vmatprep.mubr.bf16.mxu0 %v1638
        %3178 = vmatmul.mubr.bf16.gmra.mrb[0].mxu0 %v1637
        %v3179 = vpop.f32.mrb[0].mxu0
        %v3180 = vadd.f32 %v2987, %v3179
        %v3181 = vpop.f32.mrb[0].mxu0
        %v3182 = vpop.f32.mrb[0].mxu0
        %v3183 = vadd.f32 %v2990, %v3182
        %v3184 = vpop.f32.mrb[0].mxu0
        %3185 = vmatprep.mubr.bf16.mxu0 %v1651
        %3186 = vmatmul.mubr.bf16.gmra.mrb[0].mxu0 %v1650
        %v3187 = vpop.f32.mrb[0].mxu0
        %v3188 = vadd.f32 %v2995, %v3187
        %v3189 = vpop.f32.mrb[0].mxu0
        %v3190 = vpop.f32.mrb[0].mxu0
        %v3191 = vadd.f32 %v2998, %v3190
        %v3192 = vpop.f32.mrb[0].mxu0
        %3193 = vmatprep.mubr.bf16.mxu0 %v1664
        %3194 = vmatmul.mubr.bf16.gmra.mrb[0].mxu0 %v1663
        %v3195 = vpop.f32.mrb[0].mxu0
        %v3196 = vadd.f32 %v3003, %v3195
        %v3197 = vpop.f32.mrb[0].mxu0
        %v3198 = vpop.f32.mrb[0].mxu0
        %v3199 = vadd.f32 %v3006, %v3198
        %v3200 = vpop.f32.mrb[0].mxu0
        %3201 = vmatprep.mubr.bf16.mxu0 %v1677
        %3202 = vmatmul.mubr.bf16.gmra.mrb[0].mxu0 %v1676
        %v3203 = vpop.f32.mrb[0].mxu0
        %v3204 = vadd.f32 %v3011, %v3203
        %v3205 = vpop.f32.mrb[0].mxu0
        %v3206 = vpop.f32.mrb[0].mxu0
        %v3207 = vadd.f32 %v3014, %v3206
        %v3208 = vpop.f32.mrb[0].mxu0
        %3209 = vmatprep.mubr.bf16.mxu0 %v1690
        %3210 = vmatmul.mubr.bf16.gmra.mrb[0].mxu0 %v1689
        %v3211 = vpop.f32.mrb[0].mxu0
        %v3212 = vadd.f32 %v3019, %v3211
        %v3213 = vpop.f32.mrb[0].mxu0
        %v3214 = vpop.f32.mrb[0].mxu0
        %v3215 = vadd.f32 %v3022, %v3214
        %v3216 = vpop.f32.mrb[0].mxu0
        %3217 = vmatprep.mubr.bf16.mxu0 %v1703
        %3218 = vmatmul.mubr.bf16.gmra.mrb[0].mxu0 %v1702
        %v3219 = vpop.f32.mrb[0].mxu0
        %v3220 = vadd.f32 %v3027, %v3219
        %v3221 = vpop.f32.mrb[0].mxu0
        %v3222 = vpop.f32.mrb[0].mxu0
        %v3223 = vadd.f32 %v3030, %v3222
        %v3224 = vpop.f32.mrb[0].mxu0
        %3225 = vmatprep.mubr.bf16.mxu0 %v1716
        %3226 = vmatmul.mubr.bf16.gmra.mrb[0].mxu0 %v1715
        %v3227 = vpop.f32.mrb[0].mxu0
        %v3228 = vadd.f32 %v3035, %v3227
        %v3229 = vpop.f32.mrb[0].mxu0
        %v3230 = vpop.f32.mrb[0].mxu0
        %v3231 = vadd.f32 %v3038, %v3230
        %v3232 = vpop.f32.mrb[0].mxu0
        %3233 = vmatprep.mubr.bf16.mxu0 %v1729
        %3234 = vmatmul.mubr.bf16.gmra.mrb[0].mxu0 %v1728
        %v3235 = vpop.f32.mrb[0].mxu0
        %v3236 = vadd.f32 %v3043, %v3235
        %v3237 = vpop.f32.mrb[0].mxu0
        %v3238 = vpop.f32.mrb[0].mxu0
        %v3239 = vadd.f32 %v3046, %v3238
        %v3240 = vpop.f32.mrb[0].mxu0
        %3241 = vmatprep.mubr.bf16.mxu0 %v1742
        %3242 = vmatmul.mubr.bf16.gmra.mrb[0].mxu0 %v1741
        %v3243 = vpop.f32.mrb[0].mxu0
        %v3244 = vadd.f32 %v3051, %v3243
        %v3245 = vpop.f32.mrb[0].mxu0
        %v3246 = vpop.f32.mrb[0].mxu0
        %v3247 = vadd.f32 %v3054, %v3246
        %v3248 = vpop.f32.mrb[0].mxu0
        %3249 = vmatprep.mubr.bf16.mxu0 %v1755
        %3250 = vmatmul.mubr.bf16.gmra.mrb[0].mxu0 %v1754
        %v3251 = vpop.f32.mrb[0].mxu0
        %v3252 = vadd.f32 %v3059, %v3251
        %v3253 = vpop.f32.mrb[0].mxu0
        %v3254 = vpop.f32.mrb[0].mxu0
        %v3255 = vadd.f32 %v3062, %v3254
        %v3256 = vpop.f32.mrb[0].mxu0
        %3257 = vmatprep.mubr.bf16.mxu0 %v1768
        %3258 = vmatmul.mubr.bf16.gmra.mrb[0].mxu0 %v1767
        %v3259 = vpop.f32.mrb[0].mxu0
        %v3260 = vadd.f32 %v3067, %v3259
        %v3261 = vpop.f32.mrb[0].mxu0
        %v3262 = vpop.f32.mrb[0].mxu0
        %v3263 = vadd.f32 %v3070, %v3262
        %v3264 = vpop.f32.mrb[0].mxu0
        %3265 = vmatprep.mubr.bf16.mxu0 %v1781
        %3266 = vmatmul.mubr.bf16.gmra.mrb[0].mxu0 %v1780
        %v3267 = vpop.f32.mrb[0].mxu0
        %v3268 = vadd.f32 %v3075, %v3267
        %v3269 = vpop.f32.mrb[0].mxu0
        %v3270 = vpop.f32.mrb[0].mxu0
        %v3271 = vadd.f32 %v3078, %v3270
        %v3272 = vpop.f32.mrb[0].mxu0
        %3273 = vmatprep.mubr.bf16.mxu0 %v1794
        %3274 = vmatmul.mubr.bf16.gmra.mrb[0].mxu0 %v1793
        %v3275 = vpop.f32.mrb[0].mxu0
        %v3276 = vadd.f32 %v3083, %v3275
        %v3277 = vpop.f32.mrb[0].mxu0
        %v3278 = vpop.f32.mrb[0].mxu0
        %v3279 = vadd.f32 %v3086, %v3278
        %v3280 = vpop.f32.mrb[0].mxu0
        %3281 = vdwg.mxu0
        %3282 = vmatprep.subr.bf16.mxu0 0
        %3283 = vmatpush1.bf16.msra.mxu0 %v2490
        %3284 = vmatprep.subr.bf16.mxu0 0
        %3285 = vmatpush1.bf16.msra.mxu0 %v2491
        %3286 = vmatprep.subr.bf16.mxu0 0
        %3287 = vmatpush1.bf16.msra.mxu0 %v2492
        %3288 = vmatprep.subr.bf16.mxu0 0
        %3289 = vmatpush1.bf16.msra.mxu0 %v2493
        %3290 = vmatprep.subr.bf16.mxu0 0
        %3291 = vmatpush1.bf16.msra.mxu0 %v2494
        %3292 = vmatprep.subr.bf16.mxu0 0
        %3293 = vmatpush1.bf16.msra.mxu0 %v2495
        %3294 = vmatprep.subr.bf16.mxu0 0
        %3295 = vmatpush1.bf16.msra.mxu0 %v2496
        %3296 = vmatprep.subr.bf16.mxu0 0
        %3297 = vmatpush1.bf16.msra.mxu0 %v2497
        %3298 = vmatprep.subr.bf16.mxu0 0
        %3299 = vmatpush1.bf16.msra.mxu0 %v2498
        %3300 = vmatprep.subr.bf16.mxu0 0
        %3301 = vmatpush1.bf16.msra.mxu0 %v2499
        %3302 = vmatprep.subr.bf16.mxu0 0
        %3303 = vmatpush1.bf16.msra.mxu0 %v2500
        %3304 = vmatprep.subr.bf16.mxu0 0
        %3305 = vmatpush1.bf16.msra.mxu0 %v2501
        %3306 = vmatprep.subr.bf16.mxu0 0
        %3307 = vmatpush1.bf16.msra.mxu0 %v2502
        %3308 = vmatprep.subr.bf16.mxu0 0
        %3309 = vmatpush1.bf16.msra.mxu0 %v2503
        %3310 = vmatprep.subr.bf16.mxu0 0
        %3311 = vmatpush1.bf16.msra.mxu0 %v2504
        %3312 = vmatprep.subr.bf16.mxu0 0
        %3313 = vmatpush1.bf16.msra.mxu0 %v2505
        %3314 = vmatprep.mubr.bf16.mxu0 %v1549
        %3315 = vmatmul.mubr.bf16.gmra.mrb[0].mxu0 %v1548
        %v3316 = vpop.f32.mrb[0].mxu0
        %v3317 = vadd.f32 %v3124, %v3316
        %v3318 = vpop.f32.mrb[0].mxu0
        %v3319 = vpop.f32.mrb[0].mxu0
        %v3320 = vadd.f32 %v3127, %v3319
        %v3321 = vpop.f32.mrb[0].mxu0
        %3322 = vmatprep.mubr.bf16.mxu0 %v1562
        %3323 = vmatmul.mubr.bf16.gmra.mrb[0].mxu0 %v1561
        %v3324 = vpop.f32.mrb[0].mxu0
        %v3325 = vadd.f32 %v3132, %v3324
        %v3326 = vpop.f32.mrb[0].mxu0
        %v3327 = vpop.f32.mrb[0].mxu0
        %v3328 = vadd.f32 %v3135, %v3327
        %v3329 = vpop.f32.mrb[0].mxu0
        %3330 = vmatprep.mubr.bf16.mxu0 %v1575
        %3331 = vmatmul.mubr.bf16.gmra.mrb[0].mxu0 %v1574
        %v3332 = vpop.f32.mrb[0].mxu0
        %v3333 = vadd.f32 %v3140, %v3332
        %v3334 = vpop.f32.mrb[0].mxu0
        %v3335 = vpop.f32.mrb[0].mxu0
        %v3336 = vadd.f32 %v3143, %v3335
        %v3337 = vpop.f32.mrb[0].mxu0
        %3338 = vmatprep.mubr.bf16.mxu0 %v1588
        %3339 = vmatmul.mubr.bf16.gmra.mrb[0].mxu0 %v1587
        %v3340 = vpop.f32.mrb[0].mxu0
        %v3341 = vadd.f32 %v3148, %v3340
        %v3342 = vpop.f32.mrb[0].mxu0
        %v3343 = vpop.f32.mrb[0].mxu0
        %v3344 = vadd.f32 %v3151, %v3343
        %v3345 = vpop.f32.mrb[0].mxu0
        %3346 = vmatprep.mubr.bf16.mxu0 %v1601
        %3347 = vmatmul.mubr.bf16.gmra.mrb[0].mxu0 %v1600
        %v3348 = vpop.f32.mrb[0].mxu0
        %v3349 = vadd.f32 %v3156, %v3348
        %v3350 = vpop.f32.mrb[0].mxu0
        %v3351 = vpop.f32.mrb[0].mxu0
        %v3352 = vadd.f32 %v3159, %v3351
        %v3353 = vpop.f32.mrb[0].mxu0
        %3354 = vmatprep.mubr.bf16.mxu0 %v1614
        %3355 = vmatmul.mubr.bf16.gmra.mrb[0].mxu0 %v1613
        %v3356 = vpop.f32.mrb[0].mxu0
        %v3357 = vadd.f32 %v3164, %v3356
        %v3358 = vpop.f32.mrb[0].mxu0
        %v3359 = vpop.f32.mrb[0].mxu0
        %v3360 = vadd.f32 %v3167, %v3359
        %v3361 = vpop.f32.mrb[0].mxu0
        %3362 = vmatprep.mubr.bf16.mxu0 %v1627
        %3363 = vmatmul.mubr.bf16.gmra.mrb[0].mxu0 %v1626
        %v3364 = vpop.f32.mrb[0].mxu0
        %v3365 = vadd.f32 %v3172, %v3364
        %v3366 = vpop.f32.mrb[0].mxu0
        %v3367 = vpop.f32.mrb[0].mxu0
        %v3368 = vadd.f32 %v3175, %v3367
        %v3369 = vpop.f32.mrb[0].mxu0
        %3370 = vmatprep.mubr.bf16.mxu0 %v1640
        %3371 = vmatmul.mubr.bf16.gmra.mrb[0].mxu0 %v1639
        %v3372 = vpop.f32.mrb[0].mxu0
        %v3373 = vadd.f32 %v3180, %v3372
        %v3374 = vpop.f32.mrb[0].mxu0
        %v3375 = vpop.f32.mrb[0].mxu0
        %v3376 = vadd.f32 %v3183, %v3375
        %v3377 = vpop.f32.mrb[0].mxu0
        %3378 = vmatprep.mubr.bf16.mxu0 %v1653
        %3379 = vmatmul.mubr.bf16.gmra.mrb[0].mxu0 %v1652
        %v3380 = vpop.f32.mrb[0].mxu0
        %v3381 = vadd.f32 %v3188, %v3380
        %v3382 = vpop.f32.mrb[0].mxu0
        %v3383 = vpop.f32.mrb[0].mxu0
        %v3384 = vadd.f32 %v3191, %v3383
        %v3385 = vpop.f32.mrb[0].mxu0
        %3386 = vmatprep.mubr.bf16.mxu0 %v1666
        %3387 = vmatmul.mubr.bf16.gmra.mrb[0].mxu0 %v1665
        %v3388 = vpop.f32.mrb[0].mxu0
        %v3389 = vadd.f32 %v3196, %v3388
        %v3390 = vpop.f32.mrb[0].mxu0
        %v3391 = vpop.f32.mrb[0].mxu0
        %v3392 = vadd.f32 %v3199, %v3391
        %v3393 = vpop.f32.mrb[0].mxu0
        %3394 = vmatprep.mubr.bf16.mxu0 %v1679
        %3395 = vmatmul.mubr.bf16.gmra.mrb[0].mxu0 %v1678
        %v3396 = vpop.f32.mrb[0].mxu0
        %v3397 = vadd.f32 %v3204, %v3396
        %v3398 = vpop.f32.mrb[0].mxu0
        %v3399 = vpop.f32.mrb[0].mxu0
        %v3400 = vadd.f32 %v3207, %v3399
        %v3401 = vpop.f32.mrb[0].mxu0
        %3402 = vmatprep.mubr.bf16.mxu0 %v1692
        %3403 = vmatmul.mubr.bf16.gmra.mrb[0].mxu0 %v1691
        %v3404 = vpop.f32.mrb[0].mxu0
        %v3405 = vadd.f32 %v3212, %v3404
        %v3406 = vpop.f32.mrb[0].mxu0
        %v3407 = vpop.f32.mrb[0].mxu0
        %v3408 = vadd.f32 %v3215, %v3407
        %v3409 = vpop.f32.mrb[0].mxu0
        %3410 = vmatprep.mubr.bf16.mxu0 %v1705
        %3411 = vmatmul.mubr.bf16.gmra.mrb[0].mxu0 %v1704
        %v3412 = vpop.f32.mrb[0].mxu0
        %v3413 = vadd.f32 %v3220, %v3412
        %v3414 = vpop.f32.mrb[0].mxu0
        %v3415 = vpop.f32.mrb[0].mxu0
        %v3416 = vadd.f32 %v3223, %v3415
        %v3417 = vpop.f32.mrb[0].mxu0
        %3418 = vmatprep.mubr.bf16.mxu0 %v1718
        %3419 = vmatmul.mubr.bf16.gmra.mrb[0].mxu0 %v1717
        %v3420 = vpop.f32.mrb[0].mxu0
        %v3421 = vadd.f32 %v3228, %v3420
        %v3422 = vpop.f32.mrb[0].mxu0
        %v3423 = vpop.f32.mrb[0].mxu0
        %v3424 = vadd.f32 %v3231, %v3423
        %v3425 = vpop.f32.mrb[0].mxu0
        %3426 = vmatprep.mubr.bf16.mxu0 %v1731
        %3427 = vmatmul.mubr.bf16.gmra.mrb[0].mxu0 %v1730
        %v3428 = vpop.f32.mrb[0].mxu0
        %v3429 = vadd.f32 %v3236, %v3428
        %v3430 = vpop.f32.mrb[0].mxu0
        %v3431 = vpop.f32.mrb[0].mxu0
        %v3432 = vadd.f32 %v3239, %v3431
        %v3433 = vpop.f32.mrb[0].mxu0
        %3434 = vmatprep.mubr.bf16.mxu0 %v1744
        %3435 = vmatmul.mubr.bf16.gmra.mrb[0].mxu0 %v1743
        %v3436 = vpop.f32.mrb[0].mxu0
        %v3437 = vadd.f32 %v3244, %v3436
        %v3438 = vpop.f32.mrb[0].mxu0
        %v3439 = vpop.f32.mrb[0].mxu0
        %v3440 = vadd.f32 %v3247, %v3439
        %v3441 = vpop.f32.mrb[0].mxu0
        %3442 = vmatprep.mubr.bf16.mxu0 %v1757
        %3443 = vmatmul.mubr.bf16.gmra.mrb[0].mxu0 %v1756
        %v3444 = vpop.f32.mrb[0].mxu0
        %v3445 = vadd.f32 %v3252, %v3444
        %v3446 = vpop.f32.mrb[0].mxu0
        %v3447 = vpop.f32.mrb[0].mxu0
        %v3448 = vadd.f32 %v3255, %v3447
        %v3449 = vpop.f32.mrb[0].mxu0
        %3450 = vmatprep.mubr.bf16.mxu0 %v1770
        %3451 = vmatmul.mubr.bf16.gmra.mrb[0].mxu0 %v1769
        %v3452 = vpop.f32.mrb[0].mxu0
        %v3453 = vadd.f32 %v3260, %v3452
        %v3454 = vpop.f32.mrb[0].mxu0
        %v3455 = vpop.f32.mrb[0].mxu0
        %v3456 = vadd.f32 %v3263, %v3455
        %v3457 = vpop.f32.mrb[0].mxu0
        %3458 = vmatprep.mubr.bf16.mxu0 %v1783
        %3459 = vmatmul.mubr.bf16.gmra.mrb[0].mxu0 %v1782
        %v3460 = vpop.f32.mrb[0].mxu0
        %v3461 = vadd.f32 %v3268, %v3460
        %v3462 = vpop.f32.mrb[0].mxu0
        %v3463 = vpop.f32.mrb[0].mxu0
        %v3464 = vadd.f32 %v3271, %v3463
        %v3465 = vpop.f32.mrb[0].mxu0
        %3466 = vmatprep.mubr.bf16.mxu0 %v1796
        %3467 = vmatmul.mubr.bf16.gmra.mrb[0].mxu0 %v1795
        %v3468 = vpop.f32.mrb[0].mxu0
        %v3469 = vadd.f32 %v3276, %v3468
        %v3470 = vpop.f32.mrb[0].mxu0
        %v3471 = vpop.f32.mrb[0].mxu0
        %v3472 = vadd.f32 %v3279, %v3471
        %v3473 = vpop.f32.mrb[0].mxu0
        %3474 = vdwg.mxu0
        %3475 = vmatprep.subr.bf16.mxu0 0
        %3476 = vmatpush1.bf16.msra.mxu0 %v2506
        %3477 = vmatprep.subr.bf16.mxu0 0
        %3478 = vmatpush1.bf16.msra.mxu0 %v2507
        %3479 = vmatprep.subr.bf16.mxu0 0
        %3480 = vmatpush1.bf16.msra.mxu0 %v2508
        %3481 = vmatprep.subr.bf16.mxu0 0
        %3482 = vmatpush1.bf16.msra.mxu0 %v2509
        %3483 = vmatprep.subr.bf16.mxu0 0
        %3484 = vmatpush1.bf16.msra.mxu0 %v2510
        %3485 = vmatprep.subr.bf16.mxu0 0
        %3486 = vmatpush1.bf16.msra.mxu0 %v2511
        %3487 = vmatprep.subr.bf16.mxu0 0
        %3488 = vmatpush1.bf16.msra.mxu0 %v2512
        %3489 = vmatprep.subr.bf16.mxu0 0
        %3490 = vmatpush1.bf16.msra.mxu0 %v2513
        %3491 = vmatprep.subr.bf16.mxu0 0
        %3492 = vmatpush1.bf16.msra.mxu0 %v2514
        %3493 = vmatprep.subr.bf16.mxu0 0
        %3494 = vmatpush1.bf16.msra.mxu0 %v2515
        %3495 = vmatprep.subr.bf16.mxu0 0
        %3496 = vmatpush1.bf16.msra.mxu0 %v2516
        %3497 = vmatprep.subr.bf16.mxu0 0
        %3498 = vmatpush1.bf16.msra.mxu0 %v2517
        %3499 = vmatprep.subr.bf16.mxu0 0
        %3500 = vmatpush1.bf16.msra.mxu0 %v2518
        %3501 = vmatprep.subr.bf16.mxu0 0
        %3502 = vmatpush1.bf16.msra.mxu0 %v2519
        %3503 = vmatprep.subr.bf16.mxu0 0
        %3504 = vmatpush1.bf16.msra.mxu0 %v2520
        %3505 = vmatprep.subr.bf16.mxu0 0
        %3506 = vmatpush1.bf16.msra.mxu0 %v2521
        %3507 = vmatprep.mubr.bf16.mxu0 %v1551
        %3508 = vmatmul.mubr.bf16.gmra.mrb[0].mxu0 %v1550
        %v3509 = vpop.f32.mrb[0].mxu0
        %v3510 = vadd.f32 %v3317, %v3509
        %v3511 = vpop.f32.mrb[0].mxu0
        %v3512 = vpop.f32.mrb[0].mxu0
        %v3513 = vadd.f32 %v3320, %v3512
        %v3514 = vpop.f32.mrb[0].mxu0
        %3515 = vmatprep.mubr.bf16.mxu0 %v1564
        %3516 = vmatmul.mubr.bf16.gmra.mrb[0].mxu0 %v1563
        %v3517 = vpop.f32.mrb[0].mxu0
        %v3518 = vadd.f32 %v3325, %v3517
        %v3519 = vpop.f32.mrb[0].mxu0
        %v3520 = vpop.f32.mrb[0].mxu0
        %v3521 = vadd.f32 %v3328, %v3520
        %v3522 = vpop.f32.mrb[0].mxu0
        %3523 = vmatprep.mubr.bf16.mxu0 %v1577
        %3524 = vmatmul.mubr.bf16.gmra.mrb[0].mxu0 %v1576
        %v3525 = vpop.f32.mrb[0].mxu0
        %v3526 = vadd.f32 %v3333, %v3525
        %v3527 = vpop.f32.mrb[0].mxu0
        %v3528 = vpop.f32.mrb[0].mxu0
        %v3529 = vadd.f32 %v3336, %v3528
        %v3530 = vpop.f32.mrb[0].mxu0
        %3531 = vmatprep.mubr.bf16.mxu0 %v1590
        %3532 = vmatmul.mubr.bf16.gmra.mrb[0].mxu0 %v1589
        %v3533 = vpop.f32.mrb[0].mxu0
        %v3534 = vadd.f32 %v3341, %v3533
        %v3535 = vpop.f32.mrb[0].mxu0
        %v3536 = vpop.f32.mrb[0].mxu0
        %v3537 = vadd.f32 %v3344, %v3536
        %v3538 = vpop.f32.mrb[0].mxu0
        %3539 = vmatprep.mubr.bf16.mxu0 %v1603
        %3540 = vmatmul.mubr.bf16.gmra.mrb[0].mxu0 %v1602
        %v3541 = vpop.f32.mrb[0].mxu0
        %v3542 = vadd.f32 %v3349, %v3541
        %v3543 = vpop.f32.mrb[0].mxu0
        %v3544 = vpop.f32.mrb[0].mxu0
        %v3545 = vadd.f32 %v3352, %v3544
        %v3546 = vpop.f32.mrb[0].mxu0
        %3547 = vmatprep.mubr.bf16.mxu0 %v1616
        %3548 = vmatmul.mubr.bf16.gmra.mrb[0].mxu0 %v1615
        %v3549 = vpop.f32.mrb[0].mxu0
        %v3550 = vadd.f32 %v3357, %v3549
        %v3551 = vpop.f32.mrb[0].mxu0
        %v3552 = vpop.f32.mrb[0].mxu0
        %v3553 = vadd.f32 %v3360, %v3552
        %v3554 = vpop.f32.mrb[0].mxu0
        %3555 = vmatprep.mubr.bf16.mxu0 %v1629
        %3556 = vmatmul.mubr.bf16.gmra.mrb[0].mxu0 %v1628
        %v3557 = vpop.f32.mrb[0].mxu0
        %v3558 = vadd.f32 %v3365, %v3557
        %v3559 = vpop.f32.mrb[0].mxu0
        %v3560 = vpop.f32.mrb[0].mxu0
        %v3561 = vadd.f32 %v3368, %v3560
        %v3562 = vpop.f32.mrb[0].mxu0
        %3563 = vmatprep.mubr.bf16.mxu0 %v1642
        %3564 = vmatmul.mubr.bf16.gmra.mrb[0].mxu0 %v1641
        %v3565 = vpop.f32.mrb[0].mxu0
        %v3566 = vadd.f32 %v3373, %v3565
        %v3567 = vpop.f32.mrb[0].mxu0
        %v3568 = vpop.f32.mrb[0].mxu0
        %v3569 = vadd.f32 %v3376, %v3568
        %v3570 = vpop.f32.mrb[0].mxu0
        %3571 = vmatprep.mubr.bf16.mxu0 %v1655
        %3572 = vmatmul.mubr.bf16.gmra.mrb[0].mxu0 %v1654
        %v3573 = vpop.f32.mrb[0].mxu0
        %v3574 = vadd.f32 %v3381, %v3573
        %v3575 = vpop.f32.mrb[0].mxu0
        %v3576 = vpop.f32.mrb[0].mxu0
        %v3577 = vadd.f32 %v3384, %v3576
        %v3578 = vpop.f32.mrb[0].mxu0
        %3579 = vmatprep.mubr.bf16.mxu0 %v1668
        %3580 = vmatmul.mubr.bf16.gmra.mrb[0].mxu0 %v1667
        %v3581 = vpop.f32.mrb[0].mxu0
        %v3582 = vadd.f32 %v3389, %v3581
        %v3583 = vpop.f32.mrb[0].mxu0
        %v3584 = vpop.f32.mrb[0].mxu0
        %v3585 = vadd.f32 %v3392, %v3584
        %v3586 = vpop.f32.mrb[0].mxu0
        %3587 = vmatprep.mubr.bf16.mxu0 %v1681
        %3588 = vmatmul.mubr.bf16.gmra.mrb[0].mxu0 %v1680
        %v3589 = vpop.f32.mrb[0].mxu0
        %v3590 = vadd.f32 %v3397, %v3589
        %v3591 = vpop.f32.mrb[0].mxu0
        %v3592 = vpop.f32.mrb[0].mxu0
        %v3593 = vadd.f32 %v3400, %v3592
        %v3594 = vpop.f32.mrb[0].mxu0
        %3595 = vmatprep.mubr.bf16.mxu0 %v1694
        %3596 = vmatmul.mubr.bf16.gmra.mrb[0].mxu0 %v1693
        %v3597 = vpop.f32.mrb[0].mxu0
        %v3598 = vadd.f32 %v3405, %v3597
        %v3599 = vpop.f32.mrb[0].mxu0
        %v3600 = vpop.f32.mrb[0].mxu0
        %v3601 = vadd.f32 %v3408, %v3600
        %v3602 = vpop.f32.mrb[0].mxu0
        %3603 = vmatprep.mubr.bf16.mxu0 %v1707
        %3604 = vmatmul.mubr.bf16.gmra.mrb[0].mxu0 %v1706
        %v3605 = vpop.f32.mrb[0].mxu0
        %v3606 = vadd.f32 %v3413, %v3605
        %v3607 = vpop.f32.mrb[0].mxu0
        %v3608 = vpop.f32.mrb[0].mxu0
        %v3609 = vadd.f32 %v3416, %v3608
        %v3610 = vpop.f32.mrb[0].mxu0
        %3611 = vmatprep.mubr.bf16.mxu0 %v1720
        %3612 = vmatmul.mubr.bf16.gmra.mrb[0].mxu0 %v1719
        %v3613 = vpop.f32.mrb[0].mxu0
        %v3614 = vadd.f32 %v3421, %v3613
        %v3615 = vpop.f32.mrb[0].mxu0
        %v3616 = vpop.f32.mrb[0].mxu0
        %v3617 = vadd.f32 %v3424, %v3616
        %v3618 = vpop.f32.mrb[0].mxu0
        %3619 = vmatprep.mubr.bf16.mxu0 %v1733
        %3620 = vmatmul.mubr.bf16.gmra.mrb[0].mxu0 %v1732
        %v3621 = vpop.f32.mrb[0].mxu0
        %v3622 = vadd.f32 %v3429, %v3621
        %v3623 = vpop.f32.mrb[0].mxu0
        %v3624 = vpop.f32.mrb[0].mxu0
        %v3625 = vadd.f32 %v3432, %v3624
        %v3626 = vpop.f32.mrb[0].mxu0
        %3627 = vmatprep.mubr.bf16.mxu0 %v1746
        %3628 = vmatmul.mubr.bf16.gmra.mrb[0].mxu0 %v1745
        %v3629 = vpop.f32.mrb[0].mxu0
        %v3630 = vadd.f32 %v3437, %v3629
        %v3631 = vpop.f32.mrb[0].mxu0
        %v3632 = vpop.f32.mrb[0].mxu0
        %v3633 = vadd.f32 %v3440, %v3632
        %v3634 = vpop.f32.mrb[0].mxu0
        %3635 = vmatprep.mubr.bf16.mxu0 %v1759
        %3636 = vmatmul.mubr.bf16.gmra.mrb[0].mxu0 %v1758
        %v3637 = vpop.f32.mrb[0].mxu0
        %v3638 = vadd.f32 %v3445, %v3637
        %v3639 = vpop.f32.mrb[0].mxu0
        %v3640 = vpop.f32.mrb[0].mxu0
        %v3641 = vadd.f32 %v3448, %v3640
        %v3642 = vpop.f32.mrb[0].mxu0
        %3643 = vmatprep.mubr.bf16.mxu0 %v1772
        %3644 = vmatmul.mubr.bf16.gmra.mrb[0].mxu0 %v1771
        %v3645 = vpop.f32.mrb[0].mxu0
        %v3646 = vadd.f32 %v3453, %v3645
        %v3647 = vpop.f32.mrb[0].mxu0
        %v3648 = vpop.f32.mrb[0].mxu0
        %v3649 = vadd.f32 %v3456, %v3648
        %v3650 = vpop.f32.mrb[0].mxu0
        %3651 = vmatprep.mubr.bf16.mxu0 %v1785
        %3652 = vmatmul.mubr.bf16.gmra.mrb[0].mxu0 %v1784
        %v3653 = vpop.f32.mrb[0].mxu0
        %v3654 = vadd.f32 %v3461, %v3653
        %v3655 = vpop.f32.mrb[0].mxu0
        %v3656 = vpop.f32.mrb[0].mxu0
        %v3657 = vadd.f32 %v3464, %v3656
        %v3658 = vpop.f32.mrb[0].mxu0
        %3659 = vmatprep.mubr.bf16.mxu0 %v1798
        %3660 = vmatmul.mubr.bf16.gmra.mrb[0].mxu0 %v1797
        %v3661 = vpop.f32.mrb[0].mxu0
        %v3662 = vadd.f32 %v3469, %v3661
        %v3663 = vpop.f32.mrb[0].mxu0
        %v3664 = vpop.f32.mrb[0].mxu0
        %v3665 = vadd.f32 %v3472, %v3664
        %v3666 = vpop.f32.mrb[0].mxu0
        %3667 = vdwg.mxu0
        %3668 = vmatprep.subr.bf16.mxu0 0
        %3669 = vmatpush1.bf16.msra.mxu0 %v2522
        %3670 = vmatprep.subr.bf16.mxu0 0
        %3671 = vmatpush1.bf16.msra.mxu0 %v2523
        %3672 = vmatprep.subr.bf16.mxu0 0
        %3673 = vmatpush1.bf16.msra.mxu0 %v2524
        %3674 = vmatprep.subr.bf16.mxu0 0
        %3675 = vmatpush1.bf16.msra.mxu0 %v2525
        %3676 = vmatprep.subr.bf16.mxu0 0
        %3677 = vmatpush1.bf16.msra.mxu0 %v2526
        %3678 = vmatprep.subr.bf16.mxu0 0
        %3679 = vmatpush1.bf16.msra.mxu0 %v2527
        %3680 = vmatprep.subr.bf16.mxu0 0
        %3681 = vmatpush1.bf16.msra.mxu0 %v2528
        %3682 = vmatprep.subr.bf16.mxu0 0
        %3683 = vmatpush1.bf16.msra.mxu0 %v2529
        %3684 = vmatprep.subr.bf16.mxu0 0
        %3685 = vmatpush1.bf16.msra.mxu0 %v2530
        %3686 = vmatprep.subr.bf16.mxu0 0
        %3687 = vmatpush1.bf16.msra.mxu0 %v2531
        %3688 = vmatprep.subr.bf16.mxu0 0
        %3689 = vmatpush1.bf16.msra.mxu0 %v2532
        %3690 = vmatprep.subr.bf16.mxu0 0
        %3691 = vmatpush1.bf16.msra.mxu0 %v2533
        %3692 = vmatprep.subr.bf16.mxu0 0
        %3693 = vmatpush1.bf16.msra.mxu0 %v2534
        %3694 = vmatprep.subr.bf16.mxu0 0
        %3695 = vmatpush1.bf16.msra.mxu0 %v2535
        %3696 = vmatprep.subr.bf16.mxu0 0
        %3697 = vmatpush1.bf16.msra.mxu0 %v2536
        %3698 = vmatprep.subr.bf16.mxu0 0
        %3699 = vmatpush1.bf16.msra.mxu0 %v2537
        %3700 = vmatprep.mubr.bf16.mxu0 %v1553
        %3701 = vmatmul.mubr.bf16.gmra.mrb[0].mxu0 %v1552
        %v3702 = vpop.f32.mrb[0].mxu0
        %v3703 = vadd.f32 %v3510, %v3702
        %v3704 = vpop.f32.mrb[0].mxu0
        %v3705 = vpop.f32.mrb[0].mxu0
        %v3706 = vadd.f32 %v3513, %v3705
        %v3707 = vpop.f32.mrb[0].mxu0
        %3708 = vmatprep.mubr.bf16.mxu0 %v1566
        %3709 = vmatmul.mubr.bf16.gmra.mrb[0].mxu0 %v1565
        %v3710 = vpop.f32.mrb[0].mxu0
        %v3711 = vadd.f32 %v3518, %v3710
        %v3712 = vpop.f32.mrb[0].mxu0
        %v3713 = vpop.f32.mrb[0].mxu0
        %v3714 = vadd.f32 %v3521, %v3713
        %v3715 = vpop.f32.mrb[0].mxu0
        %3716 = vmatprep.mubr.bf16.mxu0 %v1579
        %3717 = vmatmul.mubr.bf16.gmra.mrb[0].mxu0 %v1578
        %v3718 = vpop.f32.mrb[0].mxu0
        %v3719 = vadd.f32 %v3526, %v3718
        %v3720 = vpop.f32.mrb[0].mxu0
        %v3721 = vpop.f32.mrb[0].mxu0
        %v3722 = vadd.f32 %v3529, %v3721
        %v3723 = vpop.f32.mrb[0].mxu0
        %3724 = vmatprep.mubr.bf16.mxu0 %v1592
        %3725 = vmatmul.mubr.bf16.gmra.mrb[0].mxu0 %v1591
        %v3726 = vpop.f32.mrb[0].mxu0
        %v3727 = vadd.f32 %v3534, %v3726
        %v3728 = vpop.f32.mrb[0].mxu0
        %v3729 = vpop.f32.mrb[0].mxu0
        %v3730 = vadd.f32 %v3537, %v3729
        %v3731 = vpop.f32.mrb[0].mxu0
        %3732 = vmatprep.mubr.bf16.mxu0 %v1605
        %3733 = vmatmul.mubr.bf16.gmra.mrb[0].mxu0 %v1604
        %v3734 = vpop.f32.mrb[0].mxu0
        %v3735 = vadd.f32 %v3542, %v3734
        %v3736 = vpop.f32.mrb[0].mxu0
        %v3737 = vpop.f32.mrb[0].mxu0
        %v3738 = vadd.f32 %v3545, %v3737
        %v3739 = vpop.f32.mrb[0].mxu0
        %3740 = vmatprep.mubr.bf16.mxu0 %v1618
        %3741 = vmatmul.mubr.bf16.gmra.mrb[0].mxu0 %v1617
        %v3742 = vpop.f32.mrb[0].mxu0
        %v3743 = vadd.f32 %v3550, %v3742
        %v3744 = vpop.f32.mrb[0].mxu0
        %v3745 = vpop.f32.mrb[0].mxu0
        %v3746 = vadd.f32 %v3553, %v3745
        %v3747 = vpop.f32.mrb[0].mxu0
        %3748 = vmatprep.mubr.bf16.mxu0 %v1631
        %3749 = vmatmul.mubr.bf16.gmra.mrb[0].mxu0 %v1630
        %v3750 = vpop.f32.mrb[0].mxu0
        %v3751 = vadd.f32 %v3558, %v3750
        %v3752 = vpop.f32.mrb[0].mxu0
        %v3753 = vpop.f32.mrb[0].mxu0
        %v3754 = vadd.f32 %v3561, %v3753
        %v3755 = vpop.f32.mrb[0].mxu0
        %3756 = vmatprep.mubr.bf16.mxu0 %v1644
        %3757 = vmatmul.mubr.bf16.gmra.mrb[0].mxu0 %v1643
        %v3758 = vpop.f32.mrb[0].mxu0
        %v3759 = vadd.f32 %v3566, %v3758
        %v3760 = vpop.f32.mrb[0].mxu0
        %v3761 = vpop.f32.mrb[0].mxu0
        %v3762 = vadd.f32 %v3569, %v3761
        %v3763 = vpop.f32.mrb[0].mxu0
        %3764 = vmatprep.mubr.bf16.mxu0 %v1657
        %3765 = vmatmul.mubr.bf16.gmra.mrb[0].mxu0 %v1656
        %v3766 = vpop.f32.mrb[0].mxu0
        %v3767 = vadd.f32 %v3574, %v3766
        %v3768 = vpop.f32.mrb[0].mxu0
        %v3769 = vpop.f32.mrb[0].mxu0
        %v3770 = vadd.f32 %v3577, %v3769
        %v3771 = vpop.f32.mrb[0].mxu0
        %3772 = vmatprep.mubr.bf16.mxu0 %v1670
        %3773 = vmatmul.mubr.bf16.gmra.mrb[0].mxu0 %v1669
        %v3774 = vpop.f32.mrb[0].mxu0
        %v3775 = vadd.f32 %v3582, %v3774
        %v3776 = vpop.f32.mrb[0].mxu0
        %v3777 = vpop.f32.mrb[0].mxu0
        %v3778 = vadd.f32 %v3585, %v3777
        %v3779 = vpop.f32.mrb[0].mxu0
        %3780 = vmatprep.mubr.bf16.mxu0 %v1683
        %3781 = vmatmul.mubr.bf16.gmra.mrb[0].mxu0 %v1682
        %v3782 = vpop.f32.mrb[0].mxu0
        %v3783 = vadd.f32 %v3590, %v3782
        %v3784 = vpop.f32.mrb[0].mxu0
        %v3785 = vpop.f32.mrb[0].mxu0
        %v3786 = vadd.f32 %v3593, %v3785
        %v3787 = vpop.f32.mrb[0].mxu0
        %3788 = vmatprep.mubr.bf16.mxu0 %v1696
        %3789 = vmatmul.mubr.bf16.gmra.mrb[0].mxu0 %v1695
        %v3790 = vpop.f32.mrb[0].mxu0
        %v3791 = vadd.f32 %v3598, %v3790
        %v3792 = vpop.f32.mrb[0].mxu0
        %v3793 = vpop.f32.mrb[0].mxu0
        %v3794 = vadd.f32 %v3601, %v3793
        %v3795 = vpop.f32.mrb[0].mxu0
        %3796 = vmatprep.mubr.bf16.mxu0 %v1709
        %3797 = vmatmul.mubr.bf16.gmra.mrb[0].mxu0 %v1708
        %v3798 = vpop.f32.mrb[0].mxu0
        %v3799 = vadd.f32 %v3606, %v3798
        %v3800 = vpop.f32.mrb[0].mxu0
        %v3801 = vpop.f32.mrb[0].mxu0
        %v3802 = vadd.f32 %v3609, %v3801
        %v3803 = vpop.f32.mrb[0].mxu0
        %3804 = vmatprep.mubr.bf16.mxu0 %v1722
        %3805 = vmatmul.mubr.bf16.gmra.mrb[0].mxu0 %v1721
        %v3806 = vpop.f32.mrb[0].mxu0
        %v3807 = vadd.f32 %v3614, %v3806
        %v3808 = vpop.f32.mrb[0].mxu0
        %v3809 = vpop.f32.mrb[0].mxu0
        %v3810 = vadd.f32 %v3617, %v3809
        %v3811 = vpop.f32.mrb[0].mxu0
        %3812 = vmatprep.mubr.bf16.mxu0 %v1735
        %3813 = vmatmul.mubr.bf16.gmra.mrb[0].mxu0 %v1734
        %v3814 = vpop.f32.mrb[0].mxu0
        %v3815 = vadd.f32 %v3622, %v3814
        %v3816 = vpop.f32.mrb[0].mxu0
        %v3817 = vpop.f32.mrb[0].mxu0
        %v3818 = vadd.f32 %v3625, %v3817
        %v3819 = vpop.f32.mrb[0].mxu0
        %3820 = vmatprep.mubr.bf16.mxu0 %v1748
        %3821 = vmatmul.mubr.bf16.gmra.mrb[0].mxu0 %v1747
        %v3822 = vpop.f32.mrb[0].mxu0
        %v3823 = vadd.f32 %v3630, %v3822
        %v3824 = vpop.f32.mrb[0].mxu0
        %v3825 = vpop.f32.mrb[0].mxu0
        %v3826 = vadd.f32 %v3633, %v3825
        %v3827 = vpop.f32.mrb[0].mxu0
        %3828 = vmatprep.mubr.bf16.mxu0 %v1761
        %3829 = vmatmul.mubr.bf16.gmra.mrb[0].mxu0 %v1760
        %v3830 = vpop.f32.mrb[0].mxu0
        %v3831 = vadd.f32 %v3638, %v3830
        %v3832 = vpop.f32.mrb[0].mxu0
        %v3833 = vpop.f32.mrb[0].mxu0
        %v3834 = vadd.f32 %v3641, %v3833
        %v3835 = vpop.f32.mrb[0].mxu0
        %3836 = vmatprep.mubr.bf16.mxu0 %v1774
        %3837 = vmatmul.mubr.bf16.gmra.mrb[0].mxu0 %v1773
        %v3838 = vpop.f32.mrb[0].mxu0
        %v3839 = vadd.f32 %v3646, %v3838
        %v3840 = vpop.f32.mrb[0].mxu0
        %v3841 = vpop.f32.mrb[0].mxu0
        %v3842 = vadd.f32 %v3649, %v3841
        %v3843 = vpop.f32.mrb[0].mxu0
        %3844 = vmatprep.mubr.bf16.mxu0 %v1787
        %3845 = vmatmul.mubr.bf16.gmra.mrb[0].mxu0 %v1786
        %v3846 = vpop.f32.mrb[0].mxu0
        %v3847 = vadd.f32 %v3654, %v3846
        %v3848 = vpop.f32.mrb[0].mxu0
        %v3849 = vpop.f32.mrb[0].mxu0
        %v3850 = vadd.f32 %v3657, %v3849
        %v3851 = vpop.f32.mrb[0].mxu0
        %3852 = vmatprep.mubr.bf16.mxu0 %v1800
        %3853 = vmatmul.mubr.bf16.gmra.mrb[0].mxu0 %v1799
        %v3854 = vpop.f32.mrb[0].mxu0
        %v3855 = vadd.f32 %v3662, %v3854
        %v3856 = vpop.f32.mrb[0].mxu0
        %v3857 = vpop.f32.mrb[0].mxu0
        %v3858 = vadd.f32 %v3665, %v3857
        %v3859 = vpop.f32.mrb[0].mxu0
        %3860 = vdwg.mxu0
        %3861 = vmatprep.subr.bf16.mxu0 0
        %3862 = vmatpush1.bf16.msra.mxu0 %v2538
        %3863 = vmatprep.subr.bf16.mxu0 0
        %3864 = vmatpush1.bf16.msra.mxu0 %v2539
        %3865 = vmatprep.subr.bf16.mxu0 0
        %3866 = vmatpush1.bf16.msra.mxu0 %v2540
        %3867 = vmatprep.subr.bf16.mxu0 0
        %3868 = vmatpush1.bf16.msra.mxu0 %v2541
        %3869 = vmatprep.subr.bf16.mxu0 0
        %3870 = vmatpush1.bf16.msra.mxu0 0
        %3871 = vmatprep.subr.bf16.mxu0 0
        %3872 = vmatpush1.bf16.msra.mxu0 0
        %3873 = vmatprep.subr.bf16.mxu0 0
        %3874 = vmatpush1.bf16.msra.mxu0 0
        %3875 = vmatprep.subr.bf16.mxu0 0
        %3876 = vmatpush1.bf16.msra.mxu0 0
        %3877 = vmatprep.subr.bf16.mxu0 0
        %3878 = vmatpush1.bf16.msra.mxu0 0
        %3879 = vmatprep.subr.bf16.mxu0 0
        %3880 = vmatpush1.bf16.msra.mxu0 0
        %3881 = vmatprep.subr.bf16.mxu0 0
        %3882 = vmatpush1.bf16.msra.mxu0 0
        %3883 = vmatprep.subr.bf16.mxu0 0
        %3884 = vmatpush1.bf16.msra.mxu0 0
        %3885 = vmatprep.subr.bf16.mxu0 0
        %3886 = vmatpush1.bf16.msra.mxu0 0
        %3887 = vmatprep.subr.bf16.mxu0 0
        %3888 = vmatpush1.bf16.msra.mxu0 0
        %3889 = vmatprep.subr.bf16.mxu0 0
        %3890 = vmatpush1.bf16.msra.mxu0 0
        %3891 = vmatprep.subr.bf16.mxu0 0
        %3892 = vmatpush1.bf16.msra.mxu0 0
        %3893 = vmatprep.mubr.bf16.mxu0 0
        %3894 = vmatmul.mubr.bf16.gmra.mrb[0].mxu0 %v2644
        %v3895 = vpop.f32.mrb[0].mxu0
        %v3896 = vadd.f32 %v3703, %v3895
        %v3897 = vpop.f32.mrb[0].mxu0
        %v3898 = vpop.f32.mrb[0].mxu0
        %v3899 = vadd.f32 %v3706, %v3898
        %v3900 = vpop.f32.mrb[0].mxu0
        %3901 = vmatprep.mubr.bf16.mxu0 0
        %3902 = vmatmul.mubr.bf16.gmra.mrb[0].mxu0 %v2647
        %v3903 = vpop.f32.mrb[0].mxu0
        %v3904 = vadd.f32 %v3711, %v3903
        %v3905 = vpop.f32.mrb[0].mxu0
        %v3906 = vpop.f32.mrb[0].mxu0
        %v3907 = vadd.f32 %v3714, %v3906
        %v3908 = vpop.f32.mrb[0].mxu0
        %3909 = vmatprep.mubr.bf16.mxu0 0
        %3910 = vmatmul.mubr.bf16.gmra.mrb[0].mxu0 %v2650
        %v3911 = vpop.f32.mrb[0].mxu0
        %v3912 = vadd.f32 %v3719, %v3911
        %v3913 = vpop.f32.mrb[0].mxu0
        %v3914 = vpop.f32.mrb[0].mxu0
        %v3915 = vadd.f32 %v3722, %v3914
        %v3916 = vpop.f32.mrb[0].mxu0
        %3917 = vmatprep.mubr.bf16.mxu0 0
        %3918 = vmatmul.mubr.bf16.gmra.mrb[0].mxu0 %v2653
        %v3919 = vpop.f32.mrb[0].mxu0
        %v3920 = vadd.f32 %v3727, %v3919
        %v3921 = vpop.f32.mrb[0].mxu0
        %v3922 = vpop.f32.mrb[0].mxu0
        %v3923 = vadd.f32 %v3730, %v3922
        %v3924 = vpop.f32.mrb[0].mxu0
        %3925 = vmatprep.mubr.bf16.mxu0 0
        %3926 = vmatmul.mubr.bf16.gmra.mrb[0].mxu0 %v2656
        %v3927 = vpop.f32.mrb[0].mxu0
        %v3928 = vadd.f32 %v3735, %v3927
        %v3929 = vpop.f32.mrb[0].mxu0
        %v3930 = vpop.f32.mrb[0].mxu0
        %v3931 = vadd.f32 %v3738, %v3930
        %v3932 = vpop.f32.mrb[0].mxu0
        %3933 = vmatprep.mubr.bf16.mxu0 0
        %3934 = vmatmul.mubr.bf16.gmra.mrb[0].mxu0 %v2659
        %v3935 = vpop.f32.mrb[0].mxu0
        %v3936 = vadd.f32 %v3743, %v3935
        %v3937 = vpop.f32.mrb[0].mxu0
        %v3938 = vpop.f32.mrb[0].mxu0
        %v3939 = vadd.f32 %v3746, %v3938
        %v3940 = vpop.f32.mrb[0].mxu0
        %3941 = vmatprep.mubr.bf16.mxu0 0
        %3942 = vmatmul.mubr.bf16.gmra.mrb[0].mxu0 %v2662
        %v3943 = vpop.f32.mrb[0].mxu0
        %v3944 = vadd.f32 %v3751, %v3943
        %v3945 = vpop.f32.mrb[0].mxu0
        %v3946 = vpop.f32.mrb[0].mxu0
        %v3947 = vadd.f32 %v3754, %v3946
        %v3948 = vpop.f32.mrb[0].mxu0
        %3949 = vmatprep.mubr.bf16.mxu0 0
        %3950 = vmatmul.mubr.bf16.gmra.mrb[0].mxu0 %v2665
        %v3951 = vpop.f32.mrb[0].mxu0
        %v3952 = vadd.f32 %v3759, %v3951
        %v3953 = vpop.f32.mrb[0].mxu0
        %v3954 = vpop.f32.mrb[0].mxu0
        %v3955 = vadd.f32 %v3762, %v3954
        %v3956 = vpop.f32.mrb[0].mxu0
        %3957 = vmatprep.mubr.bf16.mxu0 0
        %3958 = vmatmul.mubr.bf16.gmra.mrb[0].mxu0 %v2668
        %v3959 = vpop.f32.mrb[0].mxu0
        %v3960 = vadd.f32 %v3767, %v3959
        %v3961 = vpop.f32.mrb[0].mxu0
        %v3962 = vpop.f32.mrb[0].mxu0
        %v3963 = vadd.f32 %v3770, %v3962
        %v3964 = vpop.f32.mrb[0].mxu0
        %3965 = vmatprep.mubr.bf16.mxu0 0
        %3966 = vmatmul.mubr.bf16.gmra.mrb[0].mxu0 %v2671
        %v3967 = vpop.f32.mrb[0].mxu0
        %v3968 = vadd.f32 %v3775, %v3967
        %v3969 = vpop.f32.mrb[0].mxu0
        %v3970 = vpop.f32.mrb[0].mxu0
        %v3971 = vadd.f32 %v3778, %v3970
        %v3972 = vpop.f32.mrb[0].mxu0
        %3973 = vmatprep.mubr.bf16.mxu0 0
        %3974 = vmatmul.mubr.bf16.gmra.mrb[0].mxu0 %v2674
        %v3975 = vpop.f32.mrb[0].mxu0
        %v3976 = vadd.f32 %v3783, %v3975
        %v3977 = vpop.f32.mrb[0].mxu0
        %v3978 = vpop.f32.mrb[0].mxu0
        %v3979 = vadd.f32 %v3786, %v3978
        %v3980 = vpop.f32.mrb[0].mxu0
        %3981 = vmatprep.mubr.bf16.mxu0 0
        %3982 = vmatmul.mubr.bf16.gmra.mrb[0].mxu0 %v2677
        %v3983 = vpop.f32.mrb[0].mxu0
        %v3984 = vadd.f32 %v3791, %v3983
        %v3985 = vpop.f32.mrb[0].mxu0
        %v3986 = vpop.f32.mrb[0].mxu0
        %v3987 = vadd.f32 %v3794, %v3986
        %v3988 = vpop.f32.mrb[0].mxu0
        %3989 = vmatprep.mubr.bf16.mxu0 0
        %3990 = vmatmul.mubr.bf16.gmra.mrb[0].mxu0 %v2680
        %v3991 = vpop.f32.mrb[0].mxu0
        %v3992 = vadd.f32 %v3799, %v3991
        %v3993 = vpop.f32.mrb[0].mxu0
        %v3994 = vpop.f32.mrb[0].mxu0
        %v3995 = vadd.f32 %v3802, %v3994
        %v3996 = vpop.f32.mrb[0].mxu0
        %3997 = vmatprep.mubr.bf16.mxu0 0
        %3998 = vmatmul.mubr.bf16.gmra.mrb[0].mxu0 %v2683
        %v3999 = vpop.f32.mrb[0].mxu0
        %v4000 = vadd.f32 %v3807, %v3999
        %v4001 = vpop.f32.mrb[0].mxu0
        %v4002 = vpop.f32.mrb[0].mxu0
        %v4003 = vadd.f32 %v3810, %v4002
        %v4004 = vpop.f32.mrb[0].mxu0
        %4005 = vmatprep.mubr.bf16.mxu0 0
        %4006 = vmatmul.mubr.bf16.gmra.mrb[0].mxu0 %v2686
        %v4007 = vpop.f32.mrb[0].mxu0
        %v4008 = vadd.f32 %v3815, %v4007
        %v4009 = vpop.f32.mrb[0].mxu0
        %v4010 = vpop.f32.mrb[0].mxu0
        %v4011 = vadd.f32 %v3818, %v4010
        %v4012 = vpop.f32.mrb[0].mxu0
        %4013 = vmatprep.mubr.bf16.mxu0 0
        %4014 = vmatmul.mubr.bf16.gmra.mrb[0].mxu0 %v2689
        %v4015 = vpop.f32.mrb[0].mxu0
        %v4016 = vadd.f32 %v3823, %v4015
        %v4017 = vpop.f32.mrb[0].mxu0
        %v4018 = vpop.f32.mrb[0].mxu0
        %v4019 = vadd.f32 %v3826, %v4018
        %v4020 = vpop.f32.mrb[0].mxu0
        %4021 = vmatprep.mubr.bf16.mxu0 0
        %4022 = vmatmul.mubr.bf16.gmra.mrb[0].mxu0 %v2692
        %v4023 = vpop.f32.mrb[0].mxu0
        %v4024 = vadd.f32 %v3831, %v4023
        %v4025 = vpop.f32.mrb[0].mxu0
        %v4026 = vpop.f32.mrb[0].mxu0
        %v4027 = vadd.f32 %v3834, %v4026
        %v4028 = vpop.f32.mrb[0].mxu0
        %4029 = vmatprep.mubr.bf16.mxu0 0
        %4030 = vmatmul.mubr.bf16.gmra.mrb[0].mxu0 %v2695
        %v4031 = vpop.f32.mrb[0].mxu0
        %v4032 = vadd.f32 %v3839, %v4031
        %v4033 = vpop.f32.mrb[0].mxu0
        %v4034 = vpop.f32.mrb[0].mxu0
        %v4035 = vadd.f32 %v3842, %v4034
        %v4036 = vpop.f32.mrb[0].mxu0
        %4037 = vmatprep.mubr.bf16.mxu0 0
        %4038 = vmatmul.mubr.bf16.gmra.mrb[0].mxu0 %v2698
        %v4039 = vpop.f32.mrb[0].mxu0
        %v4040 = vadd.f32 %v3847, %v4039
        %v4041 = vpop.f32.mrb[0].mxu0
        %v4042 = vpop.f32.mrb[0].mxu0
        %v4043 = vadd.f32 %v3850, %v4042
        %v4044 = vpop.f32.mrb[0].mxu0
        %4045 = vmatprep.mubr.bf16.mxu0 0
        %4046 = vmatmul.mubr.bf16.gmra.mrb[0].mxu0 %v2701
        %v4047 = vpop.f32.mrb[0].mxu0
        %v4048 = vadd.f32 %v3855, %v4047
        %v4049 = vpop.f32.mrb[0].mxu0
        %v4050 = vpop.f32.mrb[0].mxu0
        %v4051 = vadd.f32 %v3858, %v4050
        %v4052 = vpop.f32.mrb[0].mxu0
        %4053 = vdwg.mxu0
        %v4054 = vmul.f32 %v3896, %v3896
        %v4055 = vmul.f32 %v3899, %v3899
        %v4056 = vmul.f32 %v3904, %v3904
        %v4057 = vmul.f32 %v3907, %v3907
        %v4058 = vmul.f32 %v3912, %v3912
        %v4059 = vmul.f32 %v3915, %v3915
        %v4060 = vmul.f32 %v3920, %v3920
        %v4061 = vmul.f32 %v3923, %v3923
        %v4062 = vmul.f32 %v3928, %v3928
        %v4063 = vmul.f32 %v3931, %v3931
        %v4064 = vmul.f32 %v3936, %v3936
        %v4065 = vmul.f32 %v3939, %v3939
        %v4066 = vmul.f32 %v3944, %v3944
        %v4067 = vmul.f32 %v3947, %v3947
        %v4068 = vmul.f32 %v3952, %v3952
        %v4069 = vmul.f32 %v3955, %v3955
        %v4070 = vmul.f32 %v3960, %v3960
        %v4071 = vmul.f32 %v3963, %v3963
        %v4072 = vmul.f32 %v3968, %v3968
        %v4073 = vmul.f32 %v3971, %v3971
        %v4074 = vmul.f32 %v3976, %v3976
        %v4075 = vmul.f32 %v3979, %v3979
        %v4076 = vmul.f32 %v3984, %v3984
        %v4077 = vmul.f32 %v3987, %v3987
        %v4078 = vmul.f32 %v3992, %v3992
        %v4079 = vmul.f32 %v3995, %v3995
        %v4080 = vmul.f32 %v4000, %v4000
        %v4081 = vmul.f32 %v4003, %v4003
        %v4082 = vmul.f32 %v4008, %v4008
        %v4083 = vmul.f32 %v4011, %v4011
        %v4084 = vmul.f32 %v4016, %v4016
        %v4085 = vmul.f32 %v4019, %v4019
        %v4086 = vmul.f32 %v4024, %v4024
        %v4087 = vmul.f32 %v4027, %v4027
        %v4088 = vmul.f32 %v4032, %v4032
        %v4089 = vmul.f32 %v4035, %v4035
        %v4090 = vmul.f32 %v4040, %v4040
        %v4091 = vmul.f32 %v4043, %v4043
        %v4092 = vmul.f32 %v4048, %v4048
        %v4093 = vmul.f32 %v4051, %v4051
        %v4094 = vmul.f32 %v3896, %v4054
        %v4095 = vmul.f32 %v3899, %v4055
        %v4096 = vmul.f32 %v3904, %v4056
        %v4097 = vmul.f32 %v3907, %v4057
        %v4098 = vmul.f32 %v3912, %v4058
        %v4099 = vmul.f32 %v3915, %v4059
        %v4100 = vmul.f32 %v3920, %v4060
        %v4101 = vmul.f32 %v3923, %v4061
        %v4102 = vmul.f32 %v3928, %v4062
        %v4103 = vmul.f32 %v3931, %v4063
        %v4104 = vmul.f32 %v3936, %v4064
        %v4105 = vmul.f32 %v3939, %v4065
        %v4106 = vmul.f32 %v3944, %v4066
        %v4107 = vmul.f32 %v3947, %v4067
        %v4108 = vmul.f32 %v3952, %v4068
        %v4109 = vmul.f32 %v3955, %v4069
        %v4110 = vmul.f32 %v3960, %v4070
        %v4111 = vmul.f32 %v3963, %v4071
        %v4112 = vmul.f32 %v3968, %v4072
        %v4113 = vmul.f32 %v3971, %v4073
        %v4114 = vmul.f32 %v3976, %v4074
        %v4115 = vmul.f32 %v3979, %v4075
        %v4116 = vmul.f32 %v3984, %v4076
        %v4117 = vmul.f32 %v3987, %v4077
        %v4118 = vmul.f32 %v3992, %v4078
        %v4119 = vmul.f32 %v3995, %v4079
        %v4120 = vmul.f32 %v4000, %v4080
        %v4121 = vmul.f32 %v4003, %v4081
        %v4122 = vmul.f32 %v4008, %v4082
        %v4123 = vmul.f32 %v4011, %v4083
        %v4124 = vmul.f32 %v4016, %v4084
        %v4125 = vmul.f32 %v4019, %v4085
        %v4126 = vmul.f32 %v4024, %v4086
        %v4127 = vmul.f32 %v4027, %v4087
        %v4128 = vmul.f32 %v4032, %v4088
        %v4129 = vmul.f32 %v4035, %v4089
        %v4130 = vmul.f32 %v4040, %v4090
        %v4131 = vmul.f32 %v4043, %v4091
        %v4132 = vmul.f32 %v4048, %v4092
        %v4133 = vmul.f32 %v4051, %v4093
        %v4134 = vmul.f32 %v4094, 0.044715
        %v4135 = vmul.f32 %v4095, 0.044715
        %v4136 = vmul.f32 %v4096, 0.044715
        %v4137 = vmul.f32 %v4097, 0.044715
        %v4138 = vmul.f32 %v4098, 0.044715
        %v4139 = vmul.f32 %v4099, 0.044715
        %v4140 = vmul.f32 %v4100, 0.044715
        %v4141 = vmul.f32 %v4101, 0.044715
        %v4142 = vmul.f32 %v4102, 0.044715
        %v4143 = vmul.f32 %v4103, 0.044715
        %v4144 = vmul.f32 %v4104, 0.044715
        %v4145 = vmul.f32 %v4105, 0.044715
        %v4146 = vmul.f32 %v4106, 0.044715
        %v4147 = vmul.f32 %v4107, 0.044715
        %v4148 = vmul.f32 %v4108, 0.044715
        %v4149 = vmul.f32 %v4109, 0.044715
        %v4150 = vmul.f32 %v4110, 0.044715
        %v4151 = vmul.f32 %v4111, 0.044715
        %v4152 = vmul.f32 %v4112, 0.044715
        %v4153 = vmul.f32 %v4113, 0.044715
        %v4154 = vmul.f32 %v4114, 0.044715
        %v4155 = vmul.f32 %v4115, 0.044715
        %v4156 = vmul.f32 %v4116, 0.044715
        %v4157 = vmul.f32 %v4117, 0.044715
        %v4158 = vmul.f32 %v4118, 0.044715
        %v4159 = vmul.f32 %v4119, 0.044715
        %v4160 = vmul.f32 %v4120, 0.044715
        %v4161 = vmul.f32 %v4121, 0.044715
        %v4162 = vmul.f32 %v4122, 0.044715
        %v4163 = vmul.f32 %v4123, 0.044715
        %v4164 = vmul.f32 %v4124, 0.044715
        %v4165 = vmul.f32 %v4125, 0.044715
        %v4166 = vmul.f32 %v4126, 0.044715
        %v4167 = vmul.f32 %v4127, 0.044715
        %v4168 = vmul.f32 %v4128, 0.044715
        %v4169 = vmul.f32 %v4129, 0.044715
        %v4170 = vmul.f32 %v4130, 0.044715
        %v4171 = vmul.f32 %v4131, 0.044715
        %v4172 = vmul.f32 %v4132, 0.044715
        %v4173 = vmul.f32 %v4133, 0.044715
        %v4174 = vadd.f32 %v3896, %v4134
        %v4175 = vadd.f32 %v3899, %v4135
        %v4176 = vadd.f32 %v3904, %v4136
        %v4177 = vadd.f32 %v3907, %v4137
        %v4178 = vadd.f32 %v3912, %v4138
        %v4179 = vadd.f32 %v3915, %v4139
        %v4180 = vadd.f32 %v3920, %v4140
        %v4181 = vadd.f32 %v3923, %v4141
        %v4182 = vadd.f32 %v3928, %v4142
        %v4183 = vadd.f32 %v3931, %v4143
        %v4184 = vadd.f32 %v3936, %v4144
        %v4185 = vadd.f32 %v3939, %v4145
        %v4186 = vadd.f32 %v3944, %v4146
        %v4187 = vadd.f32 %v3947, %v4147
        %v4188 = vadd.f32 %v3952, %v4148
        %v4189 = vadd.f32 %v3955, %v4149
        %v4190 = vadd.f32 %v3960, %v4150
        %v4191 = vadd.f32 %v3963, %v4151
        %v4192 = vadd.f32 %v3968, %v4152
        %v4193 = vadd.f32 %v3971, %v4153
        %v4194 = vadd.f32 %v3976, %v4154
        %v4195 = vadd.f32 %v3979, %v4155
        %v4196 = vadd.f32 %v3984, %v4156
        %v4197 = vadd.f32 %v3987, %v4157
        %v4198 = vadd.f32 %v3992, %v4158
        %v4199 = vadd.f32 %v3995, %v4159
        %v4200 = vadd.f32 %v4000, %v4160
        %v4201 = vadd.f32 %v4003, %v4161
        %v4202 = vadd.f32 %v4008, %v4162
        %v4203 = vadd.f32 %v4011, %v4163
        %v4204 = vadd.f32 %v4016, %v4164
        %v4205 = vadd.f32 %v4019, %v4165
        %v4206 = vadd.f32 %v4024, %v4166
        %v4207 = vadd.f32 %v4027, %v4167
        %v4208 = vadd.f32 %v4032, %v4168
        %v4209 = vadd.f32 %v4035, %v4169
        %v4210 = vadd.f32 %v4040, %v4170
        %v4211 = vadd.f32 %v4043, %v4171
        %v4212 = vadd.f32 %v4048, %v4172
        %v4213 = vadd.f32 %v4051, %v4173
        %v4214 = vmul.f32 %v4174, 0.7978846
        %v4215 = vmul.f32 %v4175, 0.7978846
        %v4216 = vmul.f32 %v4176, 0.7978846
        %v4217 = vmul.f32 %v4177, 0.7978846
        %v4218 = vmul.f32 %v4178, 0.7978846
        %v4219 = vmul.f32 %v4179, 0.7978846
        %v4220 = vmul.f32 %v4180, 0.7978846
        %v4221 = vmul.f32 %v4181, 0.7978846
        %v4222 = vmul.f32 %v4182, 0.7978846
        %v4223 = vmul.f32 %v4183, 0.7978846
        %v4224 = vmul.f32 %v4184, 0.7978846
        %v4225 = vmul.f32 %v4185, 0.7978846
        %v4226 = vmul.f32 %v4186, 0.7978846
        %v4227 = vmul.f32 %v4187, 0.7978846
        %v4228 = vmul.f32 %v4188, 0.7978846
        %v4229 = vmul.f32 %v4189, 0.7978846
        %v4230 = vmul.f32 %v4190, 0.7978846
        %v4231 = vmul.f32 %v4191, 0.7978846
        %v4232 = vmul.f32 %v4192, 0.7978846
        %v4233 = vmul.f32 %v4193, 0.7978846
        %v4234 = vmul.f32 %v4194, 0.7978846
        %v4235 = vmul.f32 %v4195, 0.7978846
        %v4236 = vmul.f32 %v4196, 0.7978846
        %v4237 = vmul.f32 %v4197, 0.7978846
        %v4238 = vmul.f32 %v4198, 0.7978846
        %v4239 = vmul.f32 %v4199, 0.7978846
        %v4240 = vmul.f32 %v4200, 0.7978846
        %v4241 = vmul.f32 %v4201, 0.7978846
        %v4242 = vmul.f32 %v4202, 0.7978846
        %v4243 = vmul.f32 %v4203, 0.7978846
        %v4244 = vmul.f32 %v4204, 0.7978846
        %v4245 = vmul.f32 %v4205, 0.7978846
        %v4246 = vmul.f32 %v4206, 0.7978846
        %v4247 = vmul.f32 %v4207, 0.7978846
        %v4248 = vmul.f32 %v4208, 0.7978846
        %v4249 = vmul.f32 %v4209, 0.7978846
        %v4250 = vmul.f32 %v4210, 0.7978846
        %v4251 = vmul.f32 %v4211, 0.7978846
        %v4252 = vmul.f32 %v4212, 0.7978846
        %v4253 = vmul.f32 %v4213, 0.7978846
        %v4254 = vtanh.pop %v4214
        %v4255 = vtanh.pop %v4215
        %v4256 = vtanh.pop %v4216
        %v4257 = vtanh.pop %v4217
        %v4258 = vtanh.pop %v4218
        %v4259 = vtanh.pop %v4219
        %v4260 = vtanh.pop %v4220
        %v4261 = vtanh.pop %v4221
        %v4262 = vtanh.pop %v4222
        %v4263 = vtanh.pop %v4223
        %v4264 = vtanh.pop %v4224
        %v4265 = vtanh.pop %v4225
        %v4266 = vtanh.pop %v4226
        %v4267 = vtanh.pop %v4227
        %v4268 = vtanh.pop %v4228
        %v4269 = vtanh.pop %v4229
        %v4270 = vtanh.pop %v4230
        %v4271 = vtanh.pop %v4231
        %v4272 = vtanh.pop %v4232
        %v4273 = vtanh.pop %v4233
        %v4274 = vtanh.pop %v4234
        %v4275 = vtanh.pop %v4235
        %v4276 = vtanh.pop %v4236
        %v4277 = vtanh.pop %v4237
        %v4278 = vtanh.pop %v4238
        %v4279 = vtanh.pop %v4239
        %v4280 = vtanh.pop %v4240
        %v4281 = vtanh.pop %v4241
        %v4282 = vtanh.pop %v4242
        %v4283 = vtanh.pop %v4243
        %v4284 = vtanh.pop %v4244
        %v4285 = vtanh.pop %v4245
        %v4286 = vtanh.pop %v4246
        %v4287 = vtanh.pop %v4247
        %v4288 = vtanh.pop %v4248
        %v4289 = vtanh.pop %v4249
        %v4290 = vtanh.pop %v4250
        %v4291 = vtanh.pop %v4251
        %v4292 = vtanh.pop %v4252
        %v4293 = vtanh.pop %v4253
        %v4294 = vadd.f32 %v4254, 1.0
        %v4295 = vadd.f32 %v4255, 1.0
        %v4296 = vadd.f32 %v4256, 1.0
        %v4297 = vadd.f32 %v4257, 1.0
        %v4298 = vadd.f32 %v4258, 1.0
        %v4299 = vadd.f32 %v4259, 1.0
        %v4300 = vadd.f32 %v4260, 1.0
        %v4301 = vadd.f32 %v4261, 1.0
        %v4302 = vadd.f32 %v4262, 1.0
        %v4303 = vadd.f32 %v4263, 1.0
        %v4304 = vadd.f32 %v4264, 1.0
        %v4305 = vadd.f32 %v4265, 1.0
        %v4306 = vadd.f32 %v4266, 1.0
        %v4307 = vadd.f32 %v4267, 1.0
        %v4308 = vadd.f32 %v4268, 1.0
        %v4309 = vadd.f32 %v4269, 1.0
        %v4310 = vadd.f32 %v4270, 1.0
        %v4311 = vadd.f32 %v4271, 1.0
        %v4312 = vadd.f32 %v4272, 1.0
        %v4313 = vadd.f32 %v4273, 1.0
        %v4314 = vadd.f32 %v4274, 1.0
        %v4315 = vadd.f32 %v4275, 1.0
        %v4316 = vadd.f32 %v4276, 1.0
        %v4317 = vadd.f32 %v4277, 1.0
        %v4318 = vadd.f32 %v4278, 1.0
        %v4319 = vadd.f32 %v4279, 1.0
        %v4320 = vadd.f32 %v4280, 1.0
        %v4321 = vadd.f32 %v4281, 1.0
        %v4322 = vadd.f32 %v4282, 1.0
        %v4323 = vadd.f32 %v4283, 1.0
        %v4324 = vadd.f32 %v4284, 1.0
        %v4325 = vadd.f32 %v4285, 1.0
        %v4326 = vadd.f32 %v4286, 1.0
        %v4327 = vadd.f32 %v4287, 1.0
        %v4328 = vadd.f32 %v4288, 1.0
        %v4329 = vadd.f32 %v4289, 1.0
        %v4330 = vadd.f32 %v4290, 1.0
        %v4331 = vadd.f32 %v4291, 1.0
        %v4332 = vadd.f32 %v4292, 1.0
        %v4333 = vadd.f32 %v4293, 1.0
        %v4334 = vmul.f32 %v4294, 0.5
        %v4335 = vmul.f32 %v4295, 0.5
        %v4336 = vmul.f32 %v4296, 0.5
        %v4337 = vmul.f32 %v4297, 0.5
        %v4338 = vmul.f32 %v4298, 0.5
        %v4339 = vmul.f32 %v4299, 0.5
        %v4340 = vmul.f32 %v4300, 0.5
        %v4341 = vmul.f32 %v4301, 0.5
        %v4342 = vmul.f32 %v4302, 0.5
        %v4343 = vmul.f32 %v4303, 0.5
        %v4344 = vmul.f32 %v4304, 0.5
        %v4345 = vmul.f32 %v4305, 0.5
        %v4346 = vmul.f32 %v4306, 0.5
        %v4347 = vmul.f32 %v4307, 0.5
        %v4348 = vmul.f32 %v4308, 0.5
        %v4349 = vmul.f32 %v4309, 0.5
        %v4350 = vmul.f32 %v4310, 0.5
        %v4351 = vmul.f32 %v4311, 0.5
        %v4352 = vmul.f32 %v4312, 0.5
        %v4353 = vmul.f32 %v4313, 0.5
        %v4354 = vmul.f32 %v4314, 0.5
        %v4355 = vmul.f32 %v4315, 0.5
        %v4356 = vmul.f32 %v4316, 0.5
        %v4357 = vmul.f32 %v4317, 0.5
        %v4358 = vmul.f32 %v4318, 0.5
        %v4359 = vmul.f32 %v4319, 0.5
        %v4360 = vmul.f32 %v4320, 0.5
        %v4361 = vmul.f32 %v4321, 0.5
        %v4362 = vmul.f32 %v4322, 0.5
        %v4363 = vmul.f32 %v4323, 0.5
        %v4364 = vmul.f32 %v4324, 0.5
        %v4365 = vmul.f32 %v4325, 0.5
        %v4366 = vmul.f32 %v4326, 0.5
        %v4367 = vmul.f32 %v4327, 0.5
        %v4368 = vmul.f32 %v4328, 0.5
        %v4369 = vmul.f32 %v4329, 0.5
        %v4370 = vmul.f32 %v4330, 0.5
        %v4371 = vmul.f32 %v4331, 0.5
        %v4372 = vmul.f32 %v4332, 0.5
        %v4373 = vmul.f32 %v4333, 0.5
        %v4374 = vmul.f32 %v3896, %v4334
        %v4375 = vmul.f32 %v3899, %v4335
        %v4376 = vmul.f32 %v3904, %v4336
        %v4377 = vmul.f32 %v3907, %v4337
        %v4378 = vmul.f32 %v3912, %v4338
        %v4379 = vmul.f32 %v3915, %v4339
        %v4380 = vmul.f32 %v3920, %v4340
        %v4381 = vmul.f32 %v3923, %v4341
        %v4382 = vmul.f32 %v3928, %v4342
        %v4383 = vmul.f32 %v3931, %v4343
        %v4384 = vmul.f32 %v3936, %v4344
        %v4385 = vmul.f32 %v3939, %v4345
        %v4386 = vmul.f32 %v3944, %v4346
        %v4387 = vmul.f32 %v3947, %v4347
        %v4388 = vmul.f32 %v3952, %v4348
        %v4389 = vmul.f32 %v3955, %v4349
        %v4390 = vmul.f32 %v3960, %v4350
        %v4391 = vmul.f32 %v3963, %v4351
        %v4392 = vmul.f32 %v3968, %v4352
        %v4393 = vmul.f32 %v3971, %v4353
        %v4394 = vmul.f32 %v3976, %v4354
        %v4395 = vmul.f32 %v3979, %v4355
        %v4396 = vmul.f32 %v3984, %v4356
        %v4397 = vmul.f32 %v3987, %v4357
        %v4398 = vmul.f32 %v3992, %v4358
        %v4399 = vmul.f32 %v3995, %v4359
        %v4400 = vmul.f32 %v4000, %v4360
        %v4401 = vmul.f32 %v4003, %v4361
        %v4402 = vmul.f32 %v4008, %v4362
        %v4403 = vmul.f32 %v4011, %v4363
        %v4404 = vmul.f32 %v4016, %v4364
        %v4405 = vmul.f32 %v4019, %v4365
        %v4406 = vmul.f32 %v4024, %v4366
        %v4407 = vmul.f32 %v4027, %v4367
        %v4408 = vmul.f32 %v4032, %v4368
        %v4409 = vmul.f32 %v4035, %v4369
        %v4410 = vmul.f32 %v4040, %v4370
        %v4411 = vmul.f32 %v4043, %v4371
        %v4412 = vmul.f32 %v4048, %v4372
        %v4413 = vmul.f32 %v4051, %v4373
        %v4414 = vld [vmem:[%s3] sm:$0xff]
        %v4415 = vld [vmem:[%s3 + $0x8] sm:$0xff]
        %v4416 = vld [vmem:[%s3 + $0x10] sm:$0xff]
        %v4417 = vld [vmem:[%s3 + $0x18] sm:$0xff]
        %v4418 = vld [vmem:[%s4] sm:$0x1]
        %v4420 = vlaneseq
        %v4421 = vshrl.u32 %v4420, 7
        %v4422 = vsub.s32 0, %v4421
        %v4423 = vrot.slane %v4418, %v4422
        %vm4425 = vcmask 261120
        %v4427 = vsel %vm4425, %v4374, 0
        %v4430 = vsel %vm4425, %v4375, 0
        %v4433 = vsel %vm4425, %v4376, 0
        %v4436 = vsel %vm4425, %v4377, 0
        %v4439 = vsel %vm4425, %v4378, 0
        %v4442 = vsel %vm4425, %v4379, 0
        %v4445 = vsel %vm4425, %v4380, 0
        %v4448 = vsel %vm4425, %v4381, 0
        %v4451 = vsel %vm4425, %v4382, 0
        %v4454 = vsel %vm4425, %v4383, 0
        %v4457 = vsel %vm4425, %v4384, 0
        %v4460 = vsel %vm4425, %v4385, 0
        %v4463 = vsel %vm4425, %v4386, 0
        %v4466 = vsel %vm4425, %v4387, 0
        %v4469 = vsel %vm4425, %v4388, 0
        %v4472 = vsel %vm4425, %v4389, 0
        %v4475 = vsel %vm4425, %v4390, 0
        %v4478 = vsel %vm4425, %v4391, 0
        %v4481 = vsel %vm4425, %v4392, 0
        %v4484 = vsel %vm4425, %v4393, 0
        %v4487 = vsel %vm4425, %v4394, 0
        %v4490 = vsel %vm4425, %v4395, 0
        %v4493 = vsel %vm4425, %v4396, 0
        %v4496 = vsel %vm4425, %v4397, 0
        %v4499 = vsel %vm4425, %v4398, 0
        %v4502 = vsel %vm4425, %v4399, 0
        %v4505 = vsel %vm4425, %v4400, 0
        %v4508 = vsel %vm4425, %v4401, 0
        %v4511 = vsel %vm4425, %v4402, 0
        %v4514 = vsel %vm4425, %v4403, 0
        %v4517 = vsel %vm4425, %v4404, 0
        %v4520 = vsel %vm4425, %v4405, 0
        %v4523 = vsel %vm4425, %v4406, 0
        %v4526 = vsel %vm4425, %v4407, 0
        %v4529 = vsel %vm4425, %v4408, 0
        %v4532 = vsel %vm4425, %v4409, 0
        %v4535 = vsel %vm4425, %v4410, 0
        %v4538 = vsel %vm4425, %v4411, 0
        %v4541 = vsel %vm4425, %v4412, 0
        %v4544 = vsel %vm4425, %v4413, 0
        %4546 = vmatprep.subr.mxu0 0.0
        %4547 = vmatpush1.msra.mxu0 %v4414
        %4548 = vmatprep.subr.mxu0 0.0
        %4549 = vmatpush1.msra.mxu0 %v4415
        %4550 = vmatprep.subr.mxu0 0.0
        %4551 = vmatpush1.msra.mxu0 %v4416
        %4552 = vmatprep.subr.mxu0 0.0
        %4553 = vmatpush1.msra.mxu0 %v4417
        %4554 = vmatprep.subr.mxu0 0.0
        %4555 = vmatpush1.msra.mxu0 0.0
        %4556 = vmatprep.subr.mxu0 0.0
        %4557 = vmatpush1.msra.mxu0 0.0
        %4558 = vmatprep.subr.mxu0 0.0
        %4559 = vmatpush1.msra.mxu0 0.0
        %4560 = vmatprep.subr.mxu0 0.0
        %4561 = vmatpush1.msra.mxu0 0.0
        %4562 = vmatprep.subr.mxu0 0.0
        %4563 = vmatpush1.msra.mxu0 0.0
        %4564 = vmatprep.subr.mxu0 0.0
        %4565 = vmatpush1.msra.mxu0 0.0
        %4566 = vmatprep.subr.mxu0 0.0
        %4567 = vmatpush1.msra.mxu0 0.0
        %4568 = vmatprep.subr.mxu0 0.0
        %4569 = vmatpush1.msra.mxu0 0.0
        %4570 = vmatprep.subr.mxu0 0.0
        %4571 = vmatpush1.msra.mxu0 0.0
        %4572 = vmatprep.subr.mxu0 0.0
        %4573 = vmatpush1.msra.mxu0 0.0
        %4574 = vmatprep.subr.mxu0 0.0
        %4575 = vmatpush1.msra.mxu0 0.0
        %4576 = vmatprep.subr.mxu0 0.0
        %4577 = vmatpush1.msra.mxu0 0.0
        %4578 = vmatprep.subr.mxu0 0.0
        %4579 = vmatpush1.msra.mxu0 0.0
        %4580 = vmatprep.subr.mxu0 0.0
        %4581 = vmatpush1.msra.mxu0 0.0
        %4582 = vmatprep.subr.mxu0 0.0
        %4583 = vmatpush1.msra.mxu0 0.0
        %4584 = vmatprep.subr.mxu0 0.0
        %4585 = vmatpush1.msra.mxu0 0.0
        %4586 = vmatprep.subr.mxu0 0.0
        %4587 = vmatpush1.msra.mxu0 0.0
        %4588 = vmatprep.subr.mxu0 0.0
        %4589 = vmatpush1.msra.mxu0 0.0
        %4590 = vmatprep.subr.mxu0 0.0
        %4591 = vmatpush1.msra.mxu0 0.0
        %4592 = vmatprep.subr.mxu0 0.0
        %4593 = vmatpush1.msra.mxu0 0.0
        %4594 = vmatprep.subr.mxu0 0.0
        %4595 = vmatpush1.msra.mxu0 0.0
        %4596 = vmatprep.subr.mxu0 0.0
        %4597 = vmatpush1.msra.mxu0 0.0
        %4598 = vmatprep.subr.mxu0 0.0
        %4599 = vmatpush1.msra.mxu0 0.0
        %4600 = vmatprep.subr.mxu0 0.0
        %4601 = vmatpush1.msra.mxu0 0.0
        %4602 = vmatprep.subr.mxu0 0.0
        %4603 = vmatpush1.msra.mxu0 0.0
        %4604 = vmatprep.subr.mxu0 0.0
        %4605 = vmatpush1.msra.mxu0 0.0
        %4606 = vmatprep.subr.mxu0 0.0
        %4607 = vmatpush1.msra.mxu0 0.0
        %4608 = vmatprep.subr.mxu0 0.0
        %4609 = vmatpush1.msra.mxu0 0.0
        %4610 = vmatprep.mubr.f32.mxu0 0.0
        %4611 = vmatmul.mubr.f32.gmra.mrb[0].mxu0 %v4427
        %v4612 = vpop.f32.mrb[0].mxu0
        %v4613 = vadd.f32 %v4423, %v4612
        %v4614 = vpop.f32.mrb[0].mxu0
        %4615 = vmatprep.mubr.f32.mxu0 0.0
        %4616 = vmatmul.mubr.f32.gmra.mrb[0].mxu0 %v4430
        %v4617 = vpop.f32.mrb[0].mxu0
        %v4618 = vadd.f32 %v4423, %v4617
        %v4619 = vpop.f32.mrb[0].mxu0
        %4620 = vmatprep.mubr.f32.mxu0 0.0
        %4621 = vmatmul.mubr.f32.gmra.mrb[0].mxu0 %v4433
        %v4622 = vpop.f32.mrb[0].mxu0
        %v4623 = vadd.f32 %v4423, %v4622
        %v4624 = vpop.f32.mrb[0].mxu0
        %4625 = vmatprep.mubr.f32.mxu0 0.0
        %4626 = vmatmul.mubr.f32.gmra.mrb[0].mxu0 %v4436
        %v4627 = vpop.f32.mrb[0].mxu0
        %v4628 = vadd.f32 %v4423, %v4627
        %v4629 = vpop.f32.mrb[0].mxu0
        %4630 = vmatprep.mubr.f32.mxu0 0.0
        %4631 = vmatmul.mubr.f32.gmra.mrb[0].mxu0 %v4439
        %v4632 = vpop.f32.mrb[0].mxu0
        %v4633 = vadd.f32 %v4423, %v4632
        %v4634 = vpop.f32.mrb[0].mxu0
        %4635 = vmatprep.mubr.f32.mxu0 0.0
        %4636 = vmatmul.mubr.f32.gmra.mrb[0].mxu0 %v4442
        %v4637 = vpop.f32.mrb[0].mxu0
        %v4638 = vadd.f32 %v4423, %v4637
        %v4639 = vpop.f32.mrb[0].mxu0
        %4640 = vmatprep.mubr.f32.mxu0 0.0
        %4641 = vmatmul.mubr.f32.gmra.mrb[0].mxu0 %v4445
        %v4642 = vpop.f32.mrb[0].mxu0
        %v4643 = vadd.f32 %v4423, %v4642
        %v4644 = vpop.f32.mrb[0].mxu0
        %4645 = vmatprep.mubr.f32.mxu0 0.0
        %4646 = vmatmul.mubr.f32.gmra.mrb[0].mxu0 %v4448
        %v4647 = vpop.f32.mrb[0].mxu0
        %v4648 = vadd.f32 %v4423, %v4647
        %v4649 = vpop.f32.mrb[0].mxu0
        %4650 = vmatprep.mubr.f32.mxu0 0.0
        %4651 = vmatmul.mubr.f32.gmra.mrb[0].mxu0 %v4451
        %v4652 = vpop.f32.mrb[0].mxu0
        %v4653 = vadd.f32 %v4423, %v4652
        %v4654 = vpop.f32.mrb[0].mxu0
        %4655 = vmatprep.mubr.f32.mxu0 0.0
        %4656 = vmatmul.mubr.f32.gmra.mrb[0].mxu0 %v4454
        %v4657 = vpop.f32.mrb[0].mxu0
        %v4658 = vadd.f32 %v4423, %v4657
        %v4659 = vpop.f32.mrb[0].mxu0
        %4660 = vmatprep.mubr.f32.mxu0 0.0
        %4661 = vmatmul.mubr.f32.gmra.mrb[0].mxu0 %v4457
        %v4662 = vpop.f32.mrb[0].mxu0
        %v4663 = vadd.f32 %v4423, %v4662
        %v4664 = vpop.f32.mrb[0].mxu0
        %4665 = vmatprep.mubr.f32.mxu0 0.0
        %4666 = vmatmul.mubr.f32.gmra.mrb[0].mxu0 %v4460
        %v4667 = vpop.f32.mrb[0].mxu0
        %v4668 = vadd.f32 %v4423, %v4667
        %v4669 = vpop.f32.mrb[0].mxu0
        %4670 = vmatprep.mubr.f32.mxu0 0.0
        %4671 = vmatmul.mubr.f32.gmra.mrb[0].mxu0 %v4463
        %v4672 = vpop.f32.mrb[0].mxu0
        %v4673 = vadd.f32 %v4423, %v4672
        %v4674 = vpop.f32.mrb[0].mxu0
        %4675 = vmatprep.mubr.f32.mxu0 0.0
        %4676 = vmatmul.mubr.f32.gmra.mrb[0].mxu0 %v4466
        %v4677 = vpop.f32.mrb[0].mxu0
        %v4678 = vadd.f32 %v4423, %v4677
        %v4679 = vpop.f32.mrb[0].mxu0
        %4680 = vmatprep.mubr.f32.mxu0 0.0
        %4681 = vmatmul.mubr.f32.gmra.mrb[0].mxu0 %v4469
        %v4682 = vpop.f32.mrb[0].mxu0
        %v4683 = vadd.f32 %v4423, %v4682
        %v4684 = vpop.f32.mrb[0].mxu0
        %4685 = vmatprep.mubr.f32.mxu0 0.0
        %4686 = vmatmul.mubr.f32.gmra.mrb[0].mxu0 %v4472
        %v4687 = vpop.f32.mrb[0].mxu0
        %v4688 = vadd.f32 %v4423, %v4687
        %v4689 = vpop.f32.mrb[0].mxu0
        %4690 = vmatprep.mubr.f32.mxu0 0.0
        %4691 = vmatmul.mubr.f32.gmra.mrb[0].mxu0 %v4475
        %v4692 = vpop.f32.mrb[0].mxu0
        %v4693 = vadd.f32 %v4423, %v4692
        %v4694 = vpop.f32.mrb[0].mxu0
        %4695 = vmatprep.mubr.f32.mxu0 0.0
        %4696 = vmatmul.mubr.f32.gmra.mrb[0].mxu0 %v4478
        %v4697 = vpop.f32.mrb[0].mxu0
        %v4698 = vadd.f32 %v4423, %v4697
        %v4699 = vpop.f32.mrb[0].mxu0
        %4700 = vmatprep.mubr.f32.mxu0 0.0
        %4701 = vmatmul.mubr.f32.gmra.mrb[0].mxu0 %v4481
        %v4702 = vpop.f32.mrb[0].mxu0
        %v4703 = vadd.f32 %v4423, %v4702
        %v4704 = vpop.f32.mrb[0].mxu0
        %4705 = vmatprep.mubr.f32.mxu0 0.0
        %4706 = vmatmul.mubr.f32.gmra.mrb[0].mxu0 %v4484
        %v4707 = vpop.f32.mrb[0].mxu0
        %v4708 = vadd.f32 %v4423, %v4707
        %v4709 = vpop.f32.mrb[0].mxu0
        %4710 = vmatprep.mubr.f32.mxu0 0.0
        %4711 = vmatmul.mubr.f32.gmra.mrb[0].mxu0 %v4487
        %v4712 = vpop.f32.mrb[0].mxu0
        %v4713 = vadd.f32 %v4423, %v4712
        %v4714 = vpop.f32.mrb[0].mxu0
        %4715 = vmatprep.mubr.f32.mxu0 0.0
        %4716 = vmatmul.mubr.f32.gmra.mrb[0].mxu0 %v4490
        %v4717 = vpop.f32.mrb[0].mxu0
        %v4718 = vadd.f32 %v4423, %v4717
        %v4719 = vpop.f32.mrb[0].mxu0
        %4720 = vmatprep.mubr.f32.mxu0 0.0
        %4721 = vmatmul.mubr.f32.gmra.mrb[0].mxu0 %v4493
        %v4722 = vpop.f32.mrb[0].mxu0
        %v4723 = vadd.f32 %v4423, %v4722
        %v4724 = vpop.f32.mrb[0].mxu0
        %4725 = vmatprep.mubr.f32.mxu0 0.0
        %4726 = vmatmul.mubr.f32.gmra.mrb[0].mxu0 %v4496
        %v4727 = vpop.f32.mrb[0].mxu0
        %v4728 = vadd.f32 %v4423, %v4727
        %v4729 = vpop.f32.mrb[0].mxu0
        %4730 = vmatprep.mubr.f32.mxu0 0.0
        %4731 = vmatmul.mubr.f32.gmra.mrb[0].mxu0 %v4499
        %v4732 = vpop.f32.mrb[0].mxu0
        %v4733 = vadd.f32 %v4423, %v4732
        %v4734 = vpop.f32.mrb[0].mxu0
        %4735 = vmatprep.mubr.f32.mxu0 0.0
        %4736 = vmatmul.mubr.f32.gmra.mrb[0].mxu0 %v4502
        %v4737 = vpop.f32.mrb[0].mxu0
        %v4738 = vadd.f32 %v4423, %v4737
        %v4739 = vpop.f32.mrb[0].mxu0
        %4740 = vmatprep.mubr.f32.mxu0 0.0
        %4741 = vmatmul.mubr.f32.gmra.mrb[0].mxu0 %v4505
        %v4742 = vpop.f32.mrb[0].mxu0
        %v4743 = vadd.f32 %v4423, %v4742
        %v4744 = vpop.f32.mrb[0].mxu0
        %4745 = vmatprep.mubr.f32.mxu0 0.0
        %4746 = vmatmul.mubr.f32.gmra.mrb[0].mxu0 %v4508
        %v4747 = vpop.f32.mrb[0].mxu0
        %v4748 = vadd.f32 %v4423, %v4747
        %v4749 = vpop.f32.mrb[0].mxu0
        %4750 = vmatprep.mubr.f32.mxu0 0.0
        %4751 = vmatmul.mubr.f32.gmra.mrb[0].mxu0 %v4511
        %v4752 = vpop.f32.mrb[0].mxu0
        %v4753 = vadd.f32 %v4423, %v4752
        %v4754 = vpop.f32.mrb[0].mxu0
        %4755 = vmatprep.mubr.f32.mxu0 0.0
        %4756 = vmatmul.mubr.f32.gmra.mrb[0].mxu0 %v4514
        %v4757 = vpop.f32.mrb[0].mxu0
        %v4758 = vadd.f32 %v4423, %v4757
        %v4759 = vpop.f32.mrb[0].mxu0
        %4760 = vmatprep.mubr.f32.mxu0 0.0
        %4761 = vmatmul.mubr.f32.gmra.mrb[0].mxu0 %v4517
        %v4762 = vpop.f32.mrb[0].mxu0
        %v4763 = vadd.f32 %v4423, %v4762
        %v4764 = vpop.f32.mrb[0].mxu0
        %4765 = vmatprep.mubr.f32.mxu0 0.0
        %4766 = vmatmul.mubr.f32.gmra.mrb[0].mxu0 %v4520
        %v4767 = vpop.f32.mrb[0].mxu0
        %v4768 = vadd.f32 %v4423, %v4767
        %v4769 = vpop.f32.mrb[0].mxu0
        %4770 = vmatprep.mubr.f32.mxu0 0.0
        %4771 = vmatmul.mubr.f32.gmra.mrb[0].mxu0 %v4523
        %v4772 = vpop.f32.mrb[0].mxu0
        %v4773 = vadd.f32 %v4423, %v4772
        %v4774 = vpop.f32.mrb[0].mxu0
        %4775 = vmatprep.mubr.f32.mxu0 0.0
        %4776 = vmatmul.mubr.f32.gmra.mrb[0].mxu0 %v4526
        %v4777 = vpop.f32.mrb[0].mxu0
        %v4778 = vadd.f32 %v4423, %v4777
        %v4779 = vpop.f32.mrb[0].mxu0
        %4780 = vmatprep.mubr.f32.mxu0 0.0
        %4781 = vmatmul.mubr.f32.gmra.mrb[0].mxu0 %v4529
        %v4782 = vpop.f32.mrb[0].mxu0
        %v4783 = vadd.f32 %v4423, %v4782
        %v4784 = vpop.f32.mrb[0].mxu0
        %4785 = vmatprep.mubr.f32.mxu0 0.0
        %4786 = vmatmul.mubr.f32.gmra.mrb[0].mxu0 %v4532
        %v4787 = vpop.f32.mrb[0].mxu0
        %v4788 = vadd.f32 %v4423, %v4787
        %v4789 = vpop.f32.mrb[0].mxu0
        %4790 = vmatprep.mubr.f32.mxu0 0.0
        %4791 = vmatmul.mubr.f32.gmra.mrb[0].mxu0 %v4535
        %v4792 = vpop.f32.mrb[0].mxu0
        %v4793 = vadd.f32 %v4423, %v4792
        %v4794 = vpop.f32.mrb[0].mxu0
        %4795 = vmatprep.mubr.f32.mxu0 0.0
        %4796 = vmatmul.mubr.f32.gmra.mrb[0].mxu0 %v4538
        %v4797 = vpop.f32.mrb[0].mxu0
        %v4798 = vadd.f32 %v4423, %v4797
        %v4799 = vpop.f32.mrb[0].mxu0
        %4800 = vmatprep.mubr.f32.mxu0 0.0
        %4801 = vmatmul.mubr.f32.gmra.mrb[0].mxu0 %v4541
        %v4802 = vpop.f32.mrb[0].mxu0
        %v4803 = vadd.f32 %v4423, %v4802
        %v4804 = vpop.f32.mrb[0].mxu0
        %4805 = vmatprep.mubr.f32.mxu0 0.0
        %4806 = vmatmul.mubr.f32.gmra.mrb[0].mxu0 %v4544
        %v4807 = vpop.f32.mrb[0].mxu0
        %v4808 = vadd.f32 %v4423, %v4807
        %v4809 = vpop.f32.mrb[0].mxu0
        %4810 = vdwg.mxu0
        %vm4811 = vcmask 64512
        %4812 = vst.msk [vmem:[%s231] sm:$0xff] %vm4811, %v4613
        %4813 = vst.msk [vmem:[%s231 + $0x8] sm:$0xff] %vm4811, %v4618
        %4814 = vst.msk [vmem:[%s231 + $0x10] sm:$0xff] %vm4811, %v4623
        %4815 = vst.msk [vmem:[%s231 + $0x18] sm:$0xff] %vm4811, %v4628
        %4816 = vst.msk [vmem:[%s231 + $0x20] sm:$0xff] %vm4811, %v4633
        %4817 = vst.msk [vmem:[%s231 + $0x28] sm:$0xff] %vm4811, %v4638
        %4818 = vst.msk [vmem:[%s231 + $0x30] sm:$0xff] %vm4811, %v4643
        %4819 = vst.msk [vmem:[%s231 + $0x38] sm:$0xff] %vm4811, %v4648
        %4820 = vst.msk [vmem:[%s231 + $0x40] sm:$0xff] %vm4811, %v4653
        %4821 = vst.msk [vmem:[%s231 + $0x48] sm:$0xff] %vm4811, %v4658
        %4822 = vst.msk [vmem:[%s231 + $0x50] sm:$0xff] %vm4811, %v4663
        %4823 = vst.msk [vmem:[%s231 + $0x58] sm:$0xff] %vm4811, %v4668
        %4824 = vst.msk [vmem:[%s231 + $0x60] sm:$0xff] %vm4811, %v4673
        %4825 = vst.msk [vmem:[%s231 + $0x68] sm:$0xff] %vm4811, %v4678
        %4826 = vst.msk [vmem:[%s231 + $0x70] sm:$0xff] %vm4811, %v4683
        %4827 = vst.msk [vmem:[%s231 + $0x78] sm:$0xff] %vm4811, %v4688
        %4828 = vst.msk [vmem:[%s231 + $0x80] sm:$0xff] %vm4811, %v4693
        %4829 = vst.msk [vmem:[%s231 + $0x88] sm:$0xff] %vm4811, %v4698
        %4830 = vst.msk [vmem:[%s231 + $0x90] sm:$0xff] %vm4811, %v4703
        %4831 = vst.msk [vmem:[%s231 + $0x98] sm:$0xff] %vm4811, %v4708
        %4832 = vst.msk [vmem:[%s231 + $0xa0] sm:$0xff] %vm4811, %v4713
        %4833 = vst.msk [vmem:[%s231 + $0xa8] sm:$0xff] %vm4811, %v4718
        %4834 = vst.msk [vmem:[%s231 + $0xb0] sm:$0xff] %vm4811, %v4723
        %4835 = vst.msk [vmem:[%s231 + $0xb8] sm:$0xff] %vm4811, %v4728
        %4836 = vst.msk [vmem:[%s231 + $0xc0] sm:$0xff] %vm4811, %v4733
        %4837 = vst.msk [vmem:[%s231 + $0xc8] sm:$0xff] %vm4811, %v4738
        %4838 = vst.msk [vmem:[%s231 + $0xd0] sm:$0xff] %vm4811, %v4743
        %4839 = vst.msk [vmem:[%s231 + $0xd8] sm:$0xff] %vm4811, %v4748
        %4840 = vst.msk [vmem:[%s231 + $0xe0] sm:$0xff] %vm4811, %v4753
        %4841 = vst.msk [vmem:[%s231 + $0xe8] sm:$0xff] %vm4811, %v4758
        %4842 = vst.msk [vmem:[%s231 + $0xf0] sm:$0xff] %vm4811, %v4763
        %4843 = vst.msk [vmem:[%s231 + $0xf8] sm:$0xff] %vm4811, %v4768
        %4844 = vst.msk [vmem:[%s231 + $0x100] sm:$0xff] %vm4811, %v4773
        %4845 = vst.msk [vmem:[%s231 + $0x108] sm:$0xff] %vm4811, %v4778
        %4846 = vst.msk [vmem:[%s231 + $0x110] sm:$0xff] %vm4811, %v4783
        %4847 = vst.msk [vmem:[%s231 + $0x118] sm:$0xff] %vm4811, %v4788
        %4848 = vst.msk [vmem:[%s231 + $0x120] sm:$0xff] %vm4811, %v4793
        %4849 = vst.msk [vmem:[%s231 + $0x128] sm:$0xff] %vm4811, %v4798
        %4850 = vst.msk [vmem:[%s231 + $0x130] sm:$0xff] %vm4811, %v4803
        %4851 = vst.msk [vmem:[%s231 + $0x138] sm:$0xff] %vm4811, %v4808
        %s4852 = sand.u32 %s134, 1
        %s4853 = sand.u32 %s134, 1
        %s4854 = smul.addr %s4853, 320
        %s4855 = scalar_lea.vmem [#allocation2], %s4854
        // Predicated region
        $region41: #{_lambda_.1} parent=39 // pred_check
          %p4856 = pneg %p144
        $region42: #{_lambda_.1} parent=39 // pred_check_branch
          %4858 = sbr.rel (%p4856) target = $region44
        $region43: #{_lambda_.1} parent=39 // pred_region
          %s4859 = smul.u32 40, %s16
          %s4860 = ssub.s32 157, %s4859
          %p4861 = scmp.lt.s32.totalorder %s4860, 40
          %s4862 = scalar_select %p4861, %s4860, 40
          %s4863 = smul.u32 128, %s4862
          %p4864 = scmp.ne.s32.totalorder 0, %s4863
          %s4865 = smul.addr %s4859, 8
          %s4866 = scalar_lea.vmem %s5, %s4865
          // Predicated region
          $region45: #{_lambda_.1} parent=43 // pred_check
            %p4867 = pneg %p4864
          $region46: #{_lambda_.1} parent=43 // pred_check_branch
            %4869 = sbr.rel (%p4867) target = $region48
          $region47: #{_lambda_.1} parent=43 // pred_region
            // Predicated region
            $region49: #{_lambda_.1} parent=47 // pred_check
              _
            $region50: #{_lambda_.1} parent=47 // pred_check_branch
              %4871 = sbr.rel (0) target = $region52
            $region51: #{_lambda_.1} parent=47 // pred_region
              // Predicated region
              $region71: #{_lambda_.1} parent=51 // pred_check
                _
              $region72: #{_lambda_.1} parent=51 // pred_check_branch
                %4999 = sbr.rel (0) target = $region74
              $region73: #{_lambda_.1} parent=51 // pred_region
                %s5000 = sdiv.u32.pop %s4862, 40
                %s5001 = srem.u32.pop %s4862, 40
                // While loop
                $region75: #{_lambda_.1} parent=73 // loop_pre_header
                  _
                $region76: #{_lambda_.1} parent=73 // loop_header
                  %s5003 = sphi 0, %s5005
                  %p5004 = scmp.ge.s32.totalorder %s5003, %s5000
                  %s5008 = sphi 0, %s5093
                  %s5009 = sphi %s4855, %s5096
                  %s5010 = sphi %s4866, %s5097
                $region77: #{_lambda_.1} parent=73 // loop_header_branch
                  %5007 = sbr.rel (%p5004) target = $region81
                $region78: #{_lambda_.1} parent=73 // loop_body
                  %v5011 = vld [vmem:[%s5009] sm:$0xff]
                  %5012 = vst [vmem:[%s5010] sm:$0xff] %v5011
                  %v5013 = vld [vmem:[%s5009 + $0x8] sm:$0xff]
                  %5014 = vst [vmem:[%s5010 + $0x8] sm:$0xff] %v5013
                  %v5015 = vld [vmem:[%s5009 + $0x10] sm:$0xff]
                  %5016 = vst [vmem:[%s5010 + $0x10] sm:$0xff] %v5015
                  %v5017 = vld [vmem:[%s5009 + $0x18] sm:$0xff]
                  %5018 = vst [vmem:[%s5010 + $0x18] sm:$0xff] %v5017
                  %v5019 = vld [vmem:[%s5009 + $0x20] sm:$0xff]
                  %5020 = vst [vmem:[%s5010 + $0x20] sm:$0xff] %v5019
                  %v5021 = vld [vmem:[%s5009 + $0x28] sm:$0xff]
                  %5022 = vst [vmem:[%s5010 + $0x28] sm:$0xff] %v5021
                  %v5023 = vld [vmem:[%s5009 + $0x30] sm:$0xff]
                  %5024 = vst [vmem:[%s5010 + $0x30] sm:$0xff] %v5023
                  %v5025 = vld [vmem:[%s5009 + $0x38] sm:$0xff]
                  %5026 = vst [vmem:[%s5010 + $0x38] sm:$0xff] %v5025
                  %v5027 = vld [vmem:[%s5009 + $0x40] sm:$0xff]
                  %5028 = vst [vmem:[%s5010 + $0x40] sm:$0xff] %v5027
                  %v5029 = vld [vmem:[%s5009 + $0x48] sm:$0xff]
                  %5030 = vst [vmem:[%s5010 + $0x48] sm:$0xff] %v5029
                  %v5031 = vld [vmem:[%s5009 + $0x50] sm:$0xff]
                  %5032 = vst [vmem:[%s5010 + $0x50] sm:$0xff] %v5031
                  %v5033 = vld [vmem:[%s5009 + $0x58] sm:$0xff]
                  %5034 = vst [vmem:[%s5010 + $0x58] sm:$0xff] %v5033
                  %v5035 = vld [vmem:[%s5009 + $0x60] sm:$0xff]
                  %5036 = vst [vmem:[%s5010 + $0x60] sm:$0xff] %v5035
                  %v5037 = vld [vmem:[%s5009 + $0x68] sm:$0xff]
                  %5038 = vst [vmem:[%s5010 + $0x68] sm:$0xff] %v5037
                  %v5039 = vld [vmem:[%s5009 + $0x70] sm:$0xff]
                  %5040 = vst [vmem:[%s5010 + $0x70] sm:$0xff] %v5039
                  %v5041 = vld [vmem:[%s5009 + $0x78] sm:$0xff]
                  %5042 = vst [vmem:[%s5010 + $0x78] sm:$0xff] %v5041
                  %v5043 = vld [vmem:[%s5009 + $0x80] sm:$0xff]
                  %5044 = vst [vmem:[%s5010 + $0x80] sm:$0xff] %v5043
                  %v5045 = vld [vmem:[%s5009 + $0x88] sm:$0xff]
                  %5046 = vst [vmem:[%s5010 + $0x88] sm:$0xff] %v5045
                  %v5047 = vld [vmem:[%s5009 + $0x90] sm:$0xff]
                  %5048 = vst [vmem:[%s5010 + $0x90] sm:$0xff] %v5047
                  %v5049 = vld [vmem:[%s5009 + $0x98] sm:$0xff]
                  %5050 = vst [vmem:[%s5010 + $0x98] sm:$0xff] %v5049
                  %v5051 = vld [vmem:[%s5009 + $0xa0] sm:$0xff]
                  %5052 = vst [vmem:[%s5010 + $0xa0] sm:$0xff] %v5051
                  %v5053 = vld [vmem:[%s5009 + $0xa8] sm:$0xff]
                  %5054 = vst [vmem:[%s5010 + $0xa8] sm:$0xff] %v5053
                  %v5055 = vld [vmem:[%s5009 + $0xb0] sm:$0xff]
                  %5056 = vst [vmem:[%s5010 + $0xb0] sm:$0xff] %v5055
                  %v5057 = vld [vmem:[%s5009 + $0xb8] sm:$0xff]
                  %5058 = vst [vmem:[%s5010 + $0xb8] sm:$0xff] %v5057
                  %v5059 = vld [vmem:[%s5009 + $0xc0] sm:$0xff]
                  %5060 = vst [vmem:[%s5010 + $0xc0] sm:$0xff] %v5059
                  %v5061 = vld [vmem:[%s5009 + $0xc8] sm:$0xff]
                  %5062 = vst [vmem:[%s5010 + $0xc8] sm:$0xff] %v5061
                  %v5063 = vld [vmem:[%s5009 + $0xd0] sm:$0xff]
                  %5064 = vst [vmem:[%s5010 + $0xd0] sm:$0xff] %v5063
                  %v5065 = vld [vmem:[%s5009 + $0xd8] sm:$0xff]
                  %5066 = vst [vmem:[%s5010 + $0xd8] sm:$0xff] %v5065
                  %v5067 = vld [vmem:[%s5009 + $0xe0] sm:$0xff]
                  %5068 = vst [vmem:[%s5010 + $0xe0] sm:$0xff] %v5067
                  %v5069 = vld [vmem:[%s5009 + $0xe8] sm:$0xff]
                  %5070 = vst [vmem:[%s5010 + $0xe8] sm:$0xff] %v5069
                  %v5071 = vld [vmem:[%s5009 + $0xf0] sm:$0xff]
                  %5072 = vst [vmem:[%s5010 + $0xf0] sm:$0xff] %v5071
                  %v5073 = vld [vmem:[%s5009 + $0xf8] sm:$0xff]
                  %5074 = vst [vmem:[%s5010 + $0xf8] sm:$0xff] %v5073
                  %v5075 = vld [vmem:[%s5009 + $0x100] sm:$0xff]
                  %5076 = vst [vmem:[%s5010 + $0x100] sm:$0xff] %v5075
                  %v5077 = vld [vmem:[%s5009 + $0x108] sm:$0xff]
                  %5078 = vst [vmem:[%s5010 + $0x108] sm:$0xff] %v5077
                  %v5079 = vld [vmem:[%s5009 + $0x110] sm:$0xff]
                  %5080 = vst [vmem:[%s5010 + $0x110] sm:$0xff] %v5079
                  %v5081 = vld [vmem:[%s5009 + $0x118] sm:$0xff]
                  %5082 = vst [vmem:[%s5010 + $0x118] sm:$0xff] %v5081
                  %v5083 = vld [vmem:[%s5009 + $0x120] sm:$0xff]
                  %5084 = vst [vmem:[%s5010 + $0x120] sm:$0xff] %v5083
                  %v5085 = vld [vmem:[%s5009 + $0x128] sm:$0xff]
                  %5086 = vst [vmem:[%s5010 + $0x128] sm:$0xff] %v5085
                  %v5087 = vld [vmem:[%s5009 + $0x130] sm:$0xff]
                  %5088 = vst [vmem:[%s5010 + $0x130] sm:$0xff] %v5087
                  %v5089 = vld [vmem:[%s5009 + $0x138] sm:$0xff]
                  %5090 = vst [vmem:[%s5010 + $0x138] sm:$0xff] %v5089
                  %s5091 = sadd.s32 1, %s5008
                  %p5092 = scmp.ge.s32.totalorder %s5091, %s5000
                  %s5093 = scalar_select %p5092, 0, %s5091
                  %s5094 = smul.u32 %s5093, 320
                  %s5095 = smul.u32 %s5093, 320
                  %s5096 = scalar_lea.vmem %s4855, %s5094 [#allocation2]
                  %s5097 = scalar_lea.vmem %s4866, %s5095
                $region79: #{_lambda_.1} parent=73 // loop_footer
                  %s5005 = sadd.s32 %s5003, 1
                $region80: #{_lambda_.1} parent=73 // loop_footer_branch
                  %5002 = sbr.rel target = $region76
                $region81: #{_lambda_.1} parent=73 // loop_exit
                  _
                %s5098 = sdiv.u32.pop %s4862, 40
                %s5099 = srem.u32.pop %s4862, 40
                %s5100 = smul.u32 %s5098, 40
                %s5101 = smul.u32 8, %s5100
                %s5102 = scalar_lea.vmem %s4855, %s5101 [#allocation2]
                %s5103 = smul.u32 8, %s5100
                %s5104 = scalar_lea.vmem %s4866, %s5103
                // While loop
                $region82: #{_lambda_.1} parent=73 // loop_pre_header
                  _
                $region83: #{_lambda_.1} parent=73 // loop_header
                  %s5106 = sphi 0, %s5108
                  %p5107 = scmp.ge.s32.totalorder %s5106, %s5099
                  %s5111 = sphi 0, %s5118
                  %s5112 = sphi %s5102, %s5121
                  %s5113 = sphi %s5104, %s5122
                $region84: #{_lambda_.1} parent=73 // loop_header_branch
                  %5110 = sbr.rel (%p5107) target = $region88
                $region85: #{_lambda_.1} parent=73 // loop_body
                  %v5114 = vld [vmem:[%s5112] sm:$0xff]
                  %5115 = vst [vmem:[%s5113] sm:$0xff] %v5114
                  %s5116 = sadd.s32 1, %s5111
                  %p5117 = scmp.ge.s32.totalorder %s5116, %s5099
                  %s5118 = scalar_select %p5117, 0, %s5116
                  %s5119 = smul.u32 %s5118, 8
                  %s5120 = smul.u32 %s5118, 8
                  %s5121 = scalar_lea.vmem %s5102, %s5119 [#allocation2]
                  %s5122 = scalar_lea.vmem %s5104, %s5120
                $region86: #{_lambda_.1} parent=73 // loop_footer
                  %s5108 = sadd.s32 %s5106, 1
                $region87: #{_lambda_.1} parent=73 // loop_footer_branch
                  %5105 = sbr.rel target = $region83
                $region88: #{_lambda_.1} parent=73 // loop_exit
                  _
              $region74: #{_lambda_.1} parent=51 // pred_fallthru
                _
              // Predicated region
              $region89: #{_lambda_.1} parent=51 // pred_check
                _
              $region90: #{_lambda_.1} parent=51 // pred_check_branch
                %5124 = sbr.rel target = $region92
              $region91: #{_lambda_.1} parent=51 // pred_region
                _
              $region92: #{_lambda_.1} parent=51 // pred_fallthru
                _
            $region52: #{_lambda_.1} parent=47 // pred_fallthru
              _
            // Predicated region
            $region53: #{_lambda_.1} parent=47 // pred_check
              _
            $region54: #{_lambda_.1} parent=47 // pred_check_branch
              %4873 = sbr.rel target = $region56
            $region55: #{_lambda_.1} parent=47 // pred_region
              %s4875 = sdiv.u32.pop %s4862, 40
              %s4876 = srem.u32.pop %s4862, 40
              // While loop
              $region57: #{_lambda_.1} parent=55 // loop_pre_header
                _
              $region58: #{_lambda_.1} parent=55 // loop_header
                %s4878 = sphi 0, %s4880
                %p4879 = scmp.ge.s32.totalorder %s4878, %s4875
                %s4883 = sphi 0, %s4968
                %s4884 = sphi %s4855, %s4971
                %s4885 = sphi %s4866, %s4972
              $region59: #{_lambda_.1} parent=55 // loop_header_branch
                %4882 = sbr.rel (%p4879) target = $region63
              $region60: #{_lambda_.1} parent=55 // loop_body
                %v4886 = vld [vmem:[%s4884] sm:$0xff]
                %4887 = vst [vmem:[%s4885] sm:$0xff] %v4886
                %v4888 = vld [vmem:[%s4884 + $0x8] sm:$0xff]
                %4889 = vst [vmem:[%s4885 + $0x8] sm:$0xff] %v4888
                %v4890 = vld [vmem:[%s4884 + $0x10] sm:$0xff]
                %4891 = vst [vmem:[%s4885 + $0x10] sm:$0xff] %v4890
                %v4892 = vld [vmem:[%s4884 + $0x18] sm:$0xff]
                %4893 = vst [vmem:[%s4885 + $0x18] sm:$0xff] %v4892
                %v4894 = vld [vmem:[%s4884 + $0x20] sm:$0xff]
                %4895 = vst [vmem:[%s4885 + $0x20] sm:$0xff] %v4894
                %v4896 = vld [vmem:[%s4884 + $0x28] sm:$0xff]
                %4897 = vst [vmem:[%s4885 + $0x28] sm:$0xff] %v4896
                %v4898 = vld [vmem:[%s4884 + $0x30] sm:$0xff]
                %4899 = vst [vmem:[%s4885 + $0x30] sm:$0xff] %v4898
                %v4900 = vld [vmem:[%s4884 + $0x38] sm:$0xff]
                %4901 = vst [vmem:[%s4885 + $0x38] sm:$0xff] %v4900
                %v4902 = vld [vmem:[%s4884 + $0x40] sm:$0xff]
                %4903 = vst [vmem:[%s4885 + $0x40] sm:$0xff] %v4902
                %v4904 = vld [vmem:[%s4884 + $0x48] sm:$0xff]
                %4905 = vst [vmem:[%s4885 + $0x48] sm:$0xff] %v4904
                %v4906 = vld [vmem:[%s4884 + $0x50] sm:$0xff]
                %4907 = vst [vmem:[%s4885 + $0x50] sm:$0xff] %v4906
                %v4908 = vld [vmem:[%s4884 + $0x58] sm:$0xff]
                %4909 = vst [vmem:[%s4885 + $0x58] sm:$0xff] %v4908
                %v4910 = vld [vmem:[%s4884 + $0x60] sm:$0xff]
                %4911 = vst [vmem:[%s4885 + $0x60] sm:$0xff] %v4910
                %v4912 = vld [vmem:[%s4884 + $0x68] sm:$0xff]
                %4913 = vst [vmem:[%s4885 + $0x68] sm:$0xff] %v4912
                %v4914 = vld [vmem:[%s4884 + $0x70] sm:$0xff]
                %4915 = vst [vmem:[%s4885 + $0x70] sm:$0xff] %v4914
                %v4916 = vld [vmem:[%s4884 + $0x78] sm:$0xff]
                %4917 = vst [vmem:[%s4885 + $0x78] sm:$0xff] %v4916
                %v4918 = vld [vmem:[%s4884 + $0x80] sm:$0xff]
                %4919 = vst [vmem:[%s4885 + $0x80] sm:$0xff] %v4918
                %v4920 = vld [vmem:[%s4884 + $0x88] sm:$0xff]
                %4921 = vst [vmem:[%s4885 + $0x88] sm:$0xff] %v4920
                %v4922 = vld [vmem:[%s4884 + $0x90] sm:$0xff]
                %4923 = vst [vmem:[%s4885 + $0x90] sm:$0xff] %v4922
                %v4924 = vld [vmem:[%s4884 + $0x98] sm:$0xff]
                %4925 = vst [vmem:[%s4885 + $0x98] sm:$0xff] %v4924
                %v4926 = vld [vmem:[%s4884 + $0xa0] sm:$0xff]
                %4927 = vst [vmem:[%s4885 + $0xa0] sm:$0xff] %v4926
                %v4928 = vld [vmem:[%s4884 + $0xa8] sm:$0xff]
                %4929 = vst [vmem:[%s4885 + $0xa8] sm:$0xff] %v4928
                %v4930 = vld [vmem:[%s4884 + $0xb0] sm:$0xff]
                %4931 = vst [vmem:[%s4885 + $0xb0] sm:$0xff] %v4930
                %v4932 = vld [vmem:[%s4884 + $0xb8] sm:$0xff]
                %4933 = vst [vmem:[%s4885 + $0xb8] sm:$0xff] %v4932
                %v4934 = vld [vmem:[%s4884 + $0xc0] sm:$0xff]
                %4935 = vst [vmem:[%s4885 + $0xc0] sm:$0xff] %v4934
                %v4936 = vld [vmem:[%s4884 + $0xc8] sm:$0xff]
                %4937 = vst [vmem:[%s4885 + $0xc8] sm:$0xff] %v4936
                %v4938 = vld [vmem:[%s4884 + $0xd0] sm:$0xff]
                %4939 = vst [vmem:[%s4885 + $0xd0] sm:$0xff] %v4938
                %v4940 = vld [vmem:[%s4884 + $0xd8] sm:$0xff]
                %4941 = vst [vmem:[%s4885 + $0xd8] sm:$0xff] %v4940
                %v4942 = vld [vmem:[%s4884 + $0xe0] sm:$0xff]
                %4943 = vst [vmem:[%s4885 + $0xe0] sm:$0xff] %v4942
                %v4944 = vld [vmem:[%s4884 + $0xe8] sm:$0xff]
                %4945 = vst [vmem:[%s4885 + $0xe8] sm:$0xff] %v4944
                %v4946 = vld [vmem:[%s4884 + $0xf0] sm:$0xff]
                %4947 = vst [vmem:[%s4885 + $0xf0] sm:$0xff] %v4946
                %v4948 = vld [vmem:[%s4884 + $0xf8] sm:$0xff]
                %4949 = vst [vmem:[%s4885 + $0xf8] sm:$0xff] %v4948
                %v4950 = vld [vmem:[%s4884 + $0x100] sm:$0xff]
                %4951 = vst [vmem:[%s4885 + $0x100] sm:$0xff] %v4950
                %v4952 = vld [vmem:[%s4884 + $0x108] sm:$0xff]
                %4953 = vst [vmem:[%s4885 + $0x108] sm:$0xff] %v4952
                %v4954 = vld [vmem:[%s4884 + $0x110] sm:$0xff]
                %4955 = vst [vmem:[%s4885 + $0x110] sm:$0xff] %v4954
                %v4956 = vld [vmem:[%s4884 + $0x118] sm:$0xff]
                %4957 = vst [vmem:[%s4885 + $0x118] sm:$0xff] %v4956
                %v4958 = vld [vmem:[%s4884 + $0x120] sm:$0xff]
                %4959 = vst [vmem:[%s4885 + $0x120] sm:$0xff] %v4958
                %v4960 = vld [vmem:[%s4884 + $0x128] sm:$0xff]
                %4961 = vst [vmem:[%s4885 + $0x128] sm:$0xff] %v4960
                %v4962 = vld [vmem:[%s4884 + $0x130] sm:$0xff]
                %4963 = vst [vmem:[%s4885 + $0x130] sm:$0xff] %v4962
                %v4964 = vld [vmem:[%s4884 + $0x138] sm:$0xff]
                %4965 = vst [vmem:[%s4885 + $0x138] sm:$0xff] %v4964
                %s4966 = sadd.s32 1, %s4883
                %p4967 = scmp.ge.s32.totalorder %s4966, %s4875
                %s4968 = scalar_select %p4967, 0, %s4966
                %s4969 = smul.u32 %s4968, 320
                %s4970 = smul.u32 %s4968, 320
                %s4971 = scalar_lea.vmem %s4855, %s4969 [#allocation2]
                %s4972 = scalar_lea.vmem %s4866, %s4970
              $region61: #{_lambda_.1} parent=55 // loop_footer
                %s4880 = sadd.s32 %s4878, 1
              $region62: #{_lambda_.1} parent=55 // loop_footer_branch
                %4877 = sbr.rel target = $region58
              $region63: #{_lambda_.1} parent=55 // loop_exit
                _
              %s4973 = sdiv.u32.pop %s4862, 40
              %s4974 = srem.u32.pop %s4862, 40
              %s4975 = smul.u32 %s4973, 40
              %s4976 = smul.u32 8, %s4975
              %s4977 = scalar_lea.vmem %s4855, %s4976 [#allocation2]
              %s4978 = smul.u32 8, %s4975
              %s4979 = scalar_lea.vmem %s4866, %s4978
              // While loop
              $region64: #{_lambda_.1} parent=55 // loop_pre_header
                _
              $region65: #{_lambda_.1} parent=55 // loop_header
                %s4981 = sphi 0, %s4983
                %p4982 = scmp.ge.s32.totalorder %s4981, %s4974
                %s4986 = sphi 0, %s4993
                %s4987 = sphi %s4977, %s4996
                %s4988 = sphi %s4979, %s4997
              $region66: #{_lambda_.1} parent=55 // loop_header_branch
                %4985 = sbr.rel (%p4982) target = $region70
              $region67: #{_lambda_.1} parent=55 // loop_body
                %v4989 = vld [vmem:[%s4987] sm:$0xff]
                %4990 = vst [vmem:[%s4988] sm:$0xff] %v4989
                %s4991 = sadd.s32 1, %s4986
                %p4992 = scmp.ge.s32.totalorder %s4991, %s4974
                %s4993 = scalar_select %p4992, 0, %s4991
                %s4994 = smul.u32 %s4993, 8
                %s4995 = smul.u32 %s4993, 8
                %s4996 = scalar_lea.vmem %s4977, %s4994 [#allocation2]
                %s4997 = scalar_lea.vmem %s4979, %s4995
              $region68: #{_lambda_.1} parent=55 // loop_footer
                %s4983 = sadd.s32 %s4981, 1
              $region69: #{_lambda_.1} parent=55 // loop_footer_branch
                %4980 = sbr.rel target = $region65
              $region70: #{_lambda_.1} parent=55 // loop_exit
                _
            $region56: #{_lambda_.1} parent=47 // pred_fallthru
              _
          $region48: #{_lambda_.1} parent=43 // pred_fallthru
            _
          %5125 = vnop
        $region44: #{_lambda_.1} parent=39 // pred_fallthru
          _
      $region40: #{_lambda_.1} parent=5 // pred_fallthru
        _
      %p5126 = scmp.le.s32.totalorder 2, %s11
      // Predicated region
      $region93: #{_lambda_.1} parent=5 // pred_check
        %p5127 = pneg %p5126
      $region94: #{_lambda_.1} parent=5 // pred_check_branch
        %5129 = sbr.rel (%p5127) target = $region96
      $region95: #{_lambda_.1} parent=5 // pred_region
        %s5130 = ssub.s32 %s11, 2
        // Predicated region
        $region97: #{_lambda_.1} parent=95 // pred_check
          %p5131 = pneg %p150
        $region98: #{_lambda_.1} parent=95 // pred_check_branch
          %5133 = sbr.rel (%p5131) target = $region100
        $region99: #{_lambda_.1} parent=95 // pred_region
          %s5134 = sand.u32 %s135, 1
          %s5135 = sand.u32 %s135, 1
          %s5136 = smul.addr %s5135, 320
          %s5137 = scalar_lea.vmem [#allocation2], %s5136
        $region100: #{_lambda_.1} parent=95 // pred_fallthru
          _
      $region96: #{_lambda_.1} parent=5 // pred_fallthru
        _
    $region6: #{_lambda_.1} parent=1 // loop_footer
      %s15 = sadd.s32 1, %s11
    $region7: #{_lambda_.1} parent=1 // loop_footer_branch
      %10 = sbr.rel target = $region3
    $region8: #{_lambda_.1} parent=1 // loop_exit
      _

</llo_original>
